<compile_context>
chip_gen: v5e
topology: v5e:2x2
jax: 0.10.0
libtpu: 0.0.40
codegen_flags: <defaults>
</compile_context>

<pallas_src>
import functools

import jax
import jax.numpy as jnp
from jax import lax
from jax.experimental import pallas as pl
from jax.experimental.pallas import tpu as pltpu


def _cbam_kernel(x_ref, w1_ref, w2_ref, wc_ref, o_ref, pad_ref, sflat_ref,
                 *, H, W, kernel_size):
    """One batch element. x_ref: (C, H*W), channels on sublanes, flattened
    spatial on lanes (lane-dense minor dim)."""
    K = kernel_size
    pad = K // 2

    x = x_ref[...].astype(jnp.float32)                      # (C, HW)

    # ---------------- Channel attention ----------------
    avg_p = jnp.mean(x, axis=1, keepdims=True)              # (C, 1)
    max_p = jnp.max(x, axis=1, keepdims=True)               # (C, 1)
    pools = jnp.concatenate([avg_p, max_p], axis=1)         # (C, 2): both branches fused

    w1 = w1_ref[...]                                        # (Cmid, C)  = fc1.weight
    w2 = w2_ref[...]                                        # (C, Cmid)  = fc2.weight
    h1 = jnp.maximum(
        jnp.dot(w1, pools, preferred_element_type=jnp.float32), 0.0)   # (Cmid, 2)
    h2 = jnp.dot(w2, h1, preferred_element_type=jnp.float32)            # (C, 2)
    ca = jax.nn.sigmoid(h2[:, 0:1] + h2[:, 1:2])             # (C, 1)

    x1 = x + x * ca                                          # x = x + x * CA(x), lane-dense

    # ---------------- Spatial attention -----------------
    avg_c = jnp.mean(x1, axis=0, keepdims=True)              # (1, HW) mean over channels
    max_c = jnp.max(x1, axis=0, keepdims=True)               # (1, HW) max  over channels

    # Zero halo + pack the two channel-reduced maps into a zero-padded
    # (2, H+2p, W+2p) VMEM scratch; the KxK conv becomes static slice + FMA.
    pad_ref[...] = jnp.zeros_like(pad_ref)
    for h in range(H):
        pad_ref[0, pad + h:pad + h + 1, pad:pad + W] = avg_c[:, h * W:(h + 1) * W]
        pad_ref[1, pad + h:pad + h + 1, pad:pad + W] = max_c[:, h * W:(h + 1) * W]

    # 2-in / 1-out KxK cross-correlation with zero padding, unrolled over taps.
    # TODO(synk): for large H*W switch this to lax.fori_loop over the tap index
    # (dynamic pl.ds into pad_ref) to bound live ranges / avoid spills.
    conv = jnp.zeros((H, W), jnp.float32)
    for ci in range(2):                                      # 0 = avg map, 1 = max map
        base = ci * K * K
        for dy in range(K):
            for dx in range(K):
                w_tap = wc_ref[base + dy * K + dx]           # SMEM scalar
                conv = conv + w_tap * pad_ref[ci, dy:dy + H, dx:dx + W]
    sa2d = jax.nn.sigmoid(conv)                              # (H, W)

    # Re-flatten the (H, W) attention map to (1, HW) via a tiny scratch so the
    # final elementwise pass and the output store stay lane-dense over H*W.
    for h in range(H):
        sflat_ref[:, h * W:(h + 1) * W] = sa2d[h:h + 1, :]
    sa = sflat_ref[...]                                      # (1, HW)

    o_ref[...] = (x1 + x1 * sa).astype(o_ref.dtype)          # x = x + x * SA(x)


def cbam_pallas(x_nchw, fc1_w, fc2_w, conv_w):
    """x_nchw: (N,C,H,W); fc1_w: (Cmid,C); fc2_w: (C,Cmid); conv_w: (1,2,K,K)."""
    N, C, H, W = x_nchw.shape
    Cmid = fc1_w.shape[0]
    K = conv_w.shape[-1]
    pad = K // 2
    HW = H * W

    # NCHW kept as-is; only a free contiguous reshape so the kernel sees a
    # (C, H*W) block (no HBM transposes at the boundary).
    x_flat = x_nchw.reshape(N, C, HW)
    wc_flat = conv_w.reshape(-1)                             # (2*K*K,) scalar table -> SMEM

    block_bytes = C * HW * jnp.dtype(x_nchw.dtype).itemsize
    vmem_limit = int(min(64 * 1024 * 1024, max(32 * 1024 * 1024, 8 * block_bytes)))

    out_flat = pl.pallas_call(
        functools.partial(_cbam_kernel, H=H, W=W, kernel_size=K),
        out_shape=jax.ShapeDtypeStruct((N, C, HW), x_nchw.dtype),
        grid=(N,),
        in_specs=[
            pl.BlockSpec((None, C, HW), lambda n: (n, 0, 0)),
            pl.BlockSpec((Cmid, C), lambda n: (0, 0)),
            pl.BlockSpec((C, Cmid), lambda n: (0, 0)),
            pl.BlockSpec(memory_space=pltpu.MemorySpace.SMEM),   # conv taps as scalars
        ],
        out_specs=pl.BlockSpec((None, C, HW), lambda n: (n, 0, 0)),
        scratch_shapes=[
            pltpu.VMEM((2, H + 2 * pad, W + 2 * pad), jnp.float32),  # zero-padded maps
            pltpu.VMEM((1, HW), jnp.float32),                        # flat SA map
        ],
        compiler_params=pltpu.CompilerParams(
            dimension_semantics=("parallel",),
            vmem_limit_bytes=vmem_limit,
        ),
    )(x_flat, fc1_w, fc2_w, wc_flat)
    # TODO(synk): for large H*W*C add an H-tile grid axis (two-pass pooling via
    # pl.when-gated scratch) so the per-step block stays inside v7x's 64 MiB VMEM.
    return out_flat.reshape(N, C, H, W)


def cbam_reference(x, fc1_w, fc2_w, conv_w):
    """Pure-JAX reference mirroring the PyTorch module (NCHW)."""
    avg = jnp.mean(x, axis=(2, 3), keepdims=True)
    mx = jnp.max(x, axis=(2, 3), keepdims=True)

    def mlp(p):
        h = jnp.einsum('mc,ncij->nmij', fc1_w, p)
        h = jnp.maximum(h, 0.0)
        return jnp.einsum('cm,nmij->ncij', fc2_w, h)

    ca = jax.nn.sigmoid(mlp(avg) + mlp(mx))
    x1 = x + x * ca
    avg_c = jnp.mean(x1, axis=1, keepdims=True)
    max_c = jnp.max(x1, axis=1, keepdims=True)
    cat = jnp.concatenate([avg_c, max_c], axis=1)            # (N, 2, H, W)
    pad = conv_w.shape[-1] // 2
    conv = lax.conv_general_dilated(cat, conv_w, window_strides=(1, 1),
                                    padding=((pad, pad), (pad, pad)),
                                    dimension_numbers=('NCHW', 'OIHW', 'NCHW'))
    sa = jax.nn.sigmoid(conv)
    return x1 + x1 * sa


if __name__ == "__main__":
    key = jax.random.PRNGKey(0)
    kx, k1, k2, k3 = jax.random.split(key, 4)
    N, C, H, W = 2, 4, 16, 16
    ratio, K = 1, 7
    Cmid = C // ratio

    x = jax.random.normal(kx, (N, C, H, W), jnp.float32)
    # deterministic synthetic parameters (shapes from the module __init__):
    fc1_w = jax.random.normal(k1, (Cmid, C), jnp.float32) * 0.3      # Conv2d 1x1, no bias
    fc2_w = jax.random.normal(k2, (C, Cmid), jnp.float32) * 0.3      # Conv2d 1x1, no bias
    conv_w = jax.random.normal(k3, (1, 2, K, K), jnp.float32) * 0.2  # SpatialAttention conv

    out = jax.block_until_ready(cbam_pallas(x, fc1_w, fc2_w, conv_w))
    ref = cbam_reference(x, fc1_w, fc2_w, conv_w)
    assert out.shape == x.shape and out.dtype == x.dtype
    assert jnp.allclose(out, ref, rtol=1e-4, atol=1e-4), \
        f"max abs err = {float(jnp.max(jnp.abs(out - ref)))}"
    print("KERNEL_OK")
</pallas_src>

<mosaic_0001>
module attributes {stable_mosaic.version = 11 : i64} {
  func.func @_cbam_kernel(%arg0: i32, %arg1: memref<1x4x256xf32, #tpu.memory_space<vmem>>, %arg2: memref<4x4xf32, #tpu.memory_space<vmem>>, %arg3: memref<4x4xf32, #tpu.memory_space<vmem>>, %arg4: memref<98xf32, #tpu.memory_space<smem>>, %arg5: memref<1x4x256xf32, #tpu.memory_space<vmem>>, %arg6: memref<2x22x22xf32, #tpu.memory_space<vmem>>, %arg7: memref<1x256xf32, #tpu.memory_space<vmem>>) attributes {dimension_semantics = [#tpu.dimension_semantics<parallel>], iteration_bounds = array<i64: 2>, scalar_prefetch = 0 : i64, scratch_operands = 2 : i64, tpu.core_type = #tpu.core_type<tc>, window_params = [{transform_indices = @transform_0, window_bounds = array<i64: 1, 4, 256>}, {pipeline_mode = #tpu.pipeline_mode<synchronous>, transform_indices = @transform_1, window_bounds = array<i64: 4, 4>}, {pipeline_mode = #tpu.pipeline_mode<synchronous>, transform_indices = @transform_2, window_bounds = array<i64: 4, 4>}, {transform_indices = @transform_3, window_bounds = array<i64: 98>}, {transform_indices = @transform_4, window_bounds = array<i64: 1, 4, 256>}]} {
    %c0 = arith.constant 0 : index
    %c0_0 = arith.constant 0 : index
    %c0_1 = arith.constant 0 : index
    %0 = vector.load %arg1[%c0, %c0_0, %c0_1] : memref<1x4x256xf32, #tpu.memory_space<vmem>>, vector<1x4x256xf32>
    %1 = vector.shape_cast %0 : vector<1x4x256xf32> to vector<4x256xf32>
    %cst = arith.constant dense<0.000000e+00> : vector<4xf32>
    %2 = vector.multi_reduction <add>, %1, %cst [1] : vector<4x256xf32> to vector<4xf32>
    %3 = vector.shape_cast %2 : vector<4xf32> to vector<4x1xf32>
    %cst_2 = arith.constant 2.560000e+02 : f32
    %4 = vector.broadcast %cst_2 : f32 to vector<4x1xf32>
    %5 = arith.divf %3, %4 : vector<4x1xf32>
    %cst_3 = arith.constant dense<0xFF800000> : vector<4xf32>
    %6 = vector.multi_reduction <maximumf>, %1, %cst_3 [1] : vector<4x256xf32> to vector<4xf32>
    %7 = vector.shape_cast %6 : vector<4xf32> to vector<4x1xf32>
    %8 = tpu.concatenate %5, %7 in 1 : vector<4x1xf32>, vector<4x1xf32> -> vector<4x2xf32>
    %c0_4 = arith.constant 0 : index
    %c0_5 = arith.constant 0 : index
    %9 = vector.load %arg2[%c0_4, %c0_5] : memref<4x4xf32, #tpu.memory_space<vmem>>, vector<4x4xf32>
    %c0_6 = arith.constant 0 : index
    %c0_7 = arith.constant 0 : index
    %10 = vector.load %arg3[%c0_6, %c0_7] : memref<4x4xf32, #tpu.memory_space<vmem>>, vector<4x4xf32>
    %cst_8 = arith.constant dense<0.000000e+00> : vector<4x2xf32>
    %11 = tpu.matmul %9, %8, %cst_8 {dimension_numbers = #tpu.dot_dimension_numbers<[1], [0], [0], [1], [0, 0, 1, 1], [], []>} : vector<4x4xf32>, vector<4x2xf32>, vector<4x2xf32> -> vector<4x2xf32>
    %cst_9 = arith.constant 0.000000e+00 : f32
    %12 = vector.broadcast %cst_9 : f32 to vector<4x2xf32>
    %13 = arith.maximumf %11, %12 : vector<4x2xf32>
    %cst_10 = arith.constant dense<0.000000e+00> : vector<4x2xf32>
    %14 = tpu.matmul %10, %13, %cst_10 {dimension_numbers = #tpu.dot_dimension_numbers<[1], [0], [0], [1], [0, 0, 1, 1], [], []>} : vector<4x4xf32>, vector<4x2xf32>, vector<4x2xf32> -> vector<4x2xf32>
    %15 = vector.extract_strided_slice %14 {offsets = [0, 0], sizes = [4, 1], strides = [1, 1]} : vector<4x2xf32> to vector<4x1xf32>
    %16 = vector.extract_strided_slice %14 {offsets = [0, 1], sizes = [4, 1], strides = [1, 1]} : vector<4x2xf32> to vector<4x1xf32>
    %17 = arith.addf %15, %16 : vector<4x1xf32>
    %18 = arith.negf %17 : vector<4x1xf32>
    %19 = math.exp %18 : vector<4x1xf32>
    %cst_11 = arith.constant 1.000000e+00 : f32
    %20 = vector.broadcast %cst_11 : f32 to vector<4x1xf32>
    %21 = arith.addf %20, %19 : vector<4x1xf32>
    %22 = arith.divf %20, %21 : vector<4x1xf32>
    %23 = vector.broadcast %22 : vector<4x1xf32> to vector<4x256xf32>
    %24 = arith.mulf %1, %23 : vector<4x256xf32>
    %25 = arith.addf %1, %24 : vector<4x256xf32>
    %cst_12 = arith.constant dense<0.000000e+00> : vector<256xf32>
    %26 = vector.multi_reduction <add>, %25, %cst_12 [0] : vector<4x256xf32> to vector<256xf32>
    %27 = vector.shape_cast %26 : vector<256xf32> to vector<1x256xf32>
    %cst_13 = arith.constant 4.000000e+00 : f32
    %28 = vector.broadcast %cst_13 : f32 to vector<1x256xf32>
    %29 = arith.divf %27, %28 : vector<1x256xf32>
    %cst_14 = arith.constant dense<0xFF800000> : vector<256xf32>
    %30 = vector.multi_reduction <maximumf>, %25, %cst_14 [0] : vector<4x256xf32> to vector<256xf32>
    %31 = vector.shape_cast %30 : vector<256xf32> to vector<1x256xf32>
    %cst_15 = arith.constant 0.000000e+00 : f32
    %32 = vector.broadcast %cst_15 : f32 to vector<2x22x22xf32>
    %c0_16 = arith.constant 0 : index
    %c0_17 = arith.constant 0 : index
    %c0_18 = arith.constant 0 : index
    %33 = vector.load %arg6[%c0_16, %c0_17, %c0_18] : memref<2x22x22xf32, #tpu.memory_space<vmem>>, vector<2x22x22xf32>
    tpu.vector_store %arg6[%c0_16, %c0_17, %c0_18], %32 {strides = array<i32>} : memref<2x22x22xf32, #tpu.memory_space<vmem>>, vector<2x22x22xf32>,
    %34 = vector.extract_strided_slice %29 {offsets = [0, 0], sizes = [1, 16], strides = [1, 1]} : vector<1x256xf32> to vector<1x16xf32>
    %c0_19 = arith.constant 0 : index
    %c3 = arith.constant 3 : index
    %c3_20 = arith.constant 3 : index
    %35 = vector.load %arg6[%c0_19, %c3, %c3_20] : memref<2x22x22xf32, #tpu.memory_space<vmem>>, vector<1x1x16xf32>
    %36 = vector.shape_cast %35 : vector<1x1x16xf32> to vector<1x16xf32>
    %37 = vector.shape_cast %34 : vector<1x16xf32> to vector<1x1x16xf32>
    tpu.vector_store %arg6[%c0_19, %c3, %c3_20], %37 {strides = array<i32>} : memref<2x22x22xf32, #tpu.memory_space<vmem>>, vector<1x1x16xf32>,
    %38 = vector.extract_strided_slice %31 {offsets = [0, 0], sizes = [1, 16], strides = [1, 1]} : vector<1x256xf32> to vector<1x16xf32>
    %c1 = arith.constant 1 : index
    %c3_21 = arith.constant 3 : index
    %c3_22 = arith.constant 3 : index
    %39 = vector.load %arg6[%c1, %c3_21, %c3_22] : memref<2x22x22xf32, #tpu.memory_space<vmem>>, vector<1x1x16xf32>
    %40 = vector.shape_cast %39 : vector<1x1x16xf32> to vector<1x16xf32>
    %41 = vector.shape_cast %38 : vector<1x16xf32> to vector<1x1x16xf32>
    tpu.vector_store %arg6[%c1, %c3_21, %c3_22], %41 {strides = array<i32>} : memref<2x22x22xf32, #tpu.memory_space<vmem>>, vector<1x1x16xf32>,
    %42 = vector.extract_strided_slice %29 {offsets = [0, 16], sizes = [1, 16], strides = [1, 1]} : vector<1x256xf32> to vector<1x16xf32>
    %c0_23 = arith.constant 0 : index
    %c4 = arith.constant 4 : index
    %c3_24 = arith.constant 3 : index
    %43 = vector.load %arg6[%c0_23, %c4, %c3_24] : memref<2x22x22xf32, #tpu.memory_space<vmem>>, vector<1x1x16xf32>
    %44 = vector.shape_cast %43 : vector<1x1x16xf32> to vector<1x16xf32>
    %45 = vector.shape_cast %42 : vector<1x16xf32> to vector<1x1x16xf32>
    tpu.vector_store %arg6[%c0_23, %c4, %c3_24], %45 {strides = array<i32>} : memref<2x22x22xf32, #tpu.memory_space<vmem>>, vector<1x1x16xf32>,
    %46 = vector.extract_strided_slice %31 {offsets = [0, 16], sizes = [1, 16], strides = [1, 1]} : vector<1x256xf32> to vector<1x16xf32>
    %c1_25 = arith.constant 1 : index
    %c4_26 = arith.constant 4 : index
    %c3_27 = arith.constant 3 : index
    %47 = vector.load %arg6[%c1_25, %c4_26, %c3_27] : memref<2x22x22xf32, #tpu.memory_space<vmem>>, vector<1x1x16xf32>
    %48 = vector.shape_cast %47 : vector<1x1x16xf32> to vector<1x16xf32>
    %49 = vector.shape_cast %46 : vector<1x16xf32> to vector<1x1x16xf32>
    tpu.vector_store %arg6[%c1_25, %c4_26, %c3_27], %49 {strides = array<i32>} : memref<2x22x22xf32, #tpu.memory_space<vmem>>, vector<1x1x16xf32>,
    %50 = vector.extract_strided_slice %29 {offsets = [0, 32], sizes = [1, 16], strides = [1, 1]} : vector<1x256xf32> to vector<1x16xf32>
    %c0_28 = arith.constant 0 : index
    %c5 = arith.constant 5 : index
    %c3_29 = arith.constant 3 : index
    %51 = vector.load %arg6[%c0_28, %c5, %c3_29] : memref<2x22x22xf32, #tpu.memory_space<vmem>>, vector<1x1x16xf32>
    %52 = vector.shape_cast %51 : vector<1x1x16xf32> to vector<1x16xf32>
    %53 = vector.shape_cast %50 : vector<1x16xf32> to vector<1x1x16xf32>
    tpu.vector_store %arg6[%c0_28, %c5, %c3_29], %53 {strides = array<i32>} : memref<2x22x22xf32, #tpu.memory_space<vmem>>, vector<1x1x16xf32>,
    %54 = vector.extract_strided_slice %31 {offsets = [0, 32], sizes = [1, 16], strides = [1, 1]} : vector<1x256xf32> to vector<1x16xf32>
    %c1_30 = arith.constant 1 : index
    %c5_31 = arith.constant 5 : index
    %c3_32 = arith.constant 3 : index
    %55 = vector.load %arg6[%c1_30, %c5_31, %c3_32] : memref<2x22x22xf32, #tpu.memory_space<vmem>>, vector<1x1x16xf32>
    %56 = vector.shape_cast %55 : vector<1x1x16xf32> to vector<1x16xf32>
    %57 = vector.shape_cast %54 : vector<1x16xf32> to vector<1x1x16xf32>
    tpu.vector_store %arg6[%c1_30, %c5_31, %c3_32], %57 {strides = array<i32>} : memref<2x22x22xf32, #tpu.memory_space<vmem>>, vector<1x1x16xf32>,
    %58 = vector.extract_strided_slice %29 {offsets = [0, 48], sizes = [1, 16], strides = [1, 1]} : vector<1x256xf32> to vector<1x16xf32>
    %c0_33 = arith.constant 0 : index
    %c6 = arith.constant 6 : index
    %c3_34 = arith.constant 3 : index
    %59 = vector.load %arg6[%c0_33, %c6, %c3_34] : memref<2x22x22xf32, #tpu.memory_space<vmem>>, vector<1x1x16xf32>
    %60 = vector.shape_cast %59 : vector<1x1x16xf32> to vector<1x16xf32>
    %61 = vector.shape_cast %58 : vector<1x16xf32> to vector<1x1x16xf32>
    tpu.vector_store %arg6[%c0_33, %c6, %c3_34], %61 {strides = array<i32>} : memref<2x22x22xf32, #tpu.memory_space<vmem>>, vector<1x1x16xf32>,
    %62 = vector.extract_strided_slice %31 {offsets = [0, 48], sizes = [1, 16], strides = [1, 1]} : vector<1x256xf32> to vector<1x16xf32>
    %c1_35 = arith.constant 1 : index
    %c6_36 = arith.constant 6 : index
    %c3_37 = arith.constant 3 : index
    %63 = vector.load %arg6[%c1_35, %c6_36, %c3_37] : memref<2x22x22xf32, #tpu.memory_space<vmem>>, vector<1x1x16xf32>
    %64 = vector.shape_cast %63 : vector<1x1x16xf32> to vector<1x16xf32>
    %65 = vector.shape_cast %62 : vector<1x16xf32> to vector<1x1x16xf32>
    tpu.vector_store %arg6[%c1_35, %c6_36, %c3_37], %65 {strides = array<i32>} : memref<2x22x22xf32, #tpu.memory_space<vmem>>, vector<1x1x16xf32>,
    %66 = vector.extract_strided_slice %29 {offsets = [0, 64], sizes = [1, 16], strides = [1, 1]} : vector<1x256xf32> to vector<1x16xf32>
    %c0_38 = arith.constant 0 : index
    %c7 = arith.constant 7 : index
    %c3_39 = arith.constant 3 : index
    %67 = vector.load %arg6[%c0_38, %c7, %c3_39] : memref<2x22x22xf32, #tpu.memory_space<vmem>>, vector<1x1x16xf32>
    %68 = vector.shape_cast %67 : vector<1x1x16xf32> to vector<1x16xf32>
    %69 = vector.shape_cast %66 : vector<1x16xf32> to vector<1x1x16xf32>
    tpu.vector_store %arg6[%c0_38, %c7, %c3_39], %69 {strides = array<i32>} : memref<2x22x22xf32, #tpu.memory_space<vmem>>, vector<1x1x16xf32>,
    %70 = vector.extract_strided_slice %31 {offsets = [0, 64], sizes = [1, 16], strides = [1, 1]} : vector<1x256xf32> to vector<1x16xf32>
    %c1_40 = arith.constant 1 : index
    %c7_41 = arith.constant 7 : index
    %c3_42 = arith.constant 3 : index
    %71 = vector.load %arg6[%c1_40, %c7_41, %c3_42] : memref<2x22x22xf32, #tpu.memory_space<vmem>>, vector<1x1x16xf32>
    %72 = vector.shape_cast %71 : vector<1x1x16xf32> to vector<1x16xf32>
    %73 = vector.shape_cast %70 : vector<1x16xf32> to vector<1x1x16xf32>
    tpu.vector_store %arg6[%c1_40, %c7_41, %c3_42], %73 {strides = array<i32>} : memref<2x22x22xf32, #tpu.memory_space<vmem>>, vector<1x1x16xf32>,
    %74 = vector.extract_strided_slice %29 {offsets = [0, 80], sizes = [1, 16], strides = [1, 1]} : vector<1x256xf32> to vector<1x16xf32>
    %c0_43 = arith.constant 0 : index
    %c8 = arith.constant 8 : index
    %c3_44 = arith.constant 3 : index
    %75 = vector.load %arg6[%c0_43, %c8, %c3_44] : memref<2x22x22xf32, #tpu.memory_space<vmem>>, vector<1x1x16xf32>
    %76 = vector.shape_cast %75 : vector<1x1x16xf32> to vector<1x16xf32>
    %77 = vector.shape_cast %74 : vector<1x16xf32> to vector<1x1x16xf32>
    tpu.vector_store %arg6[%c0_43, %c8, %c3_44], %77 {strides = array<i32>} : memref<2x22x22xf32, #tpu.memory_space<vmem>>, vector<1x1x16xf32>,
    %78 = vector.extract_strided_slice %31 {offsets = [0, 80], sizes = [1, 16], strides = [1, 1]} : vector<1x256xf32> to vector<1x16xf32>
    %c1_45 = arith.constant 1 : index
    %c8_46 = arith.constant 8 : index
    %c3_47 = arith.constant 3 : index
    %79 = vector.load %arg6[%c1_45, %c8_46, %c3_47] : memref<2x22x22xf32, #tpu.memory_space<vmem>>, vector<1x1x16xf32>
    %80 = vector.shape_cast %79 : vector<1x1x16xf32> to vector<1x16xf32>
    %81 = vector.shape_cast %78 : vector<1x16xf32> to vector<1x1x16xf32>
    tpu.vector_store %arg6[%c1_45, %c8_46, %c3_47], %81 {strides = array<i32>} : memref<2x22x22xf32, #tpu.memory_space<vmem>>, vector<1x1x16xf32>,
    %82 = vector.extract_strided_slice %29 {offsets = [0, 96], sizes = [1, 16], strides = [1, 1]} : vector<1x256xf32> to vector<1x16xf32>
    %c0_48 = arith.constant 0 : index
    %c9 = arith.constant 9 : index
    %c3_49 = arith.constant 3 : index
    %83 = vector.load %arg6[%c0_48, %c9, %c3_49] : memref<2x22x22xf32, #tpu.memory_space<vmem>>, vector<1x1x16xf32>
    %84 = vector.shape_cast %83 : vector<1x1x16xf32> to vector<1x16xf32>
    %85 = vector.shape_cast %82 : vector<1x16xf32> to vector<1x1x16xf32>
    tpu.vector_store %arg6[%c0_48, %c9, %c3_49], %85 {strides = array<i32>} : memref<2x22x22xf32, #tpu.memory_space<vmem>>, vector<1x1x16xf32>,
    %86 = vector.extract_strided_slice %31 {offsets = [0, 96], sizes = [1, 16], strides = [1, 1]} : vector<1x256xf32> to vector<1x16xf32>
    %c1_50 = arith.constant 1 : index
    %c9_51 = arith.constant 9 : index
    %c3_52 = arith.constant 3 : index
    %87 = vector.load %arg6[%c1_50, %c9_51, %c3_52] : memref<2x22x22xf32, #tpu.memory_space<vmem>>, vector<1x1x16xf32>
    %88 = vector.shape_cast %87 : vector<1x1x16xf32> to vector<1x16xf32>
    %89 = vector.shape_cast %86 : vector<1x16xf32> to vector<1x1x16xf32>
    tpu.vector_store %arg6[%c1_50, %c9_51, %c3_52], %89 {strides = array<i32>} : memref<2x22x22xf32, #tpu.memory_space<vmem>>, vector<1x1x16xf32>,
    %90 = vector.extract_strided_slice %29 {offsets = [0, 112], sizes = [1, 16], strides = [1, 1]} : vector<1x256xf32> to vector<1x16xf32>
    %c0_53 = arith.constant 0 : index
    %c10 = arith.constant 10 : index
    %c3_54 = arith.constant 3 : index
    %91 = vector.load %arg6[%c0_53, %c10, %c3_54] : memref<2x22x22xf32, #tpu.memory_space<vmem>>, vector<1x1x16xf32>
    %92 = vector.shape_cast %91 : vector<1x1x16xf32> to vector<1x16xf32>
    %93 = vector.shape_cast %90 : vector<1x16xf32> to vector<1x1x16xf32>
    tpu.vector_store %arg6[%c0_53, %c10, %c3_54], %93 {strides = array<i32>} : memref<2x22x22xf32, #tpu.memory_space<vmem>>, vector<1x1x16xf32>,
    %94 = vector.extract_strided_slice %31 {offsets = [0, 112], sizes = [1, 16], strides = [1, 1]} : vector<1x256xf32> to vector<1x16xf32>
    %c1_55 = arith.constant 1 : index
    %c10_56 = arith.constant 10 : index
    %c3_57 = arith.constant 3 : index
    %95 = vector.load %arg6[%c1_55, %c10_56, %c3_57] : memref<2x22x22xf32, #tpu.memory_space<vmem>>, vector<1x1x16xf32>
    %96 = vector.shape_cast %95 : vector<1x1x16xf32> to vector<1x16xf32>
    %97 = vector.shape_cast %94 : vector<1x16xf32> to vector<1x1x16xf32>
    tpu.vector_store %arg6[%c1_55, %c10_56, %c3_57], %97 {strides = array<i32>} : memref<2x22x22xf32, #tpu.memory_space<vmem>>, vector<1x1x16xf32>,
    %98 = vector.extract_strided_slice %29 {offsets = [0, 128], sizes = [1, 16], strides = [1, 1]} : vector<1x256xf32> to vector<1x16xf32>
    %c0_58 = arith.constant 0 : index
    %c11 = arith.constant 11 : index
    %c3_59 = arith.constant 3 : index
    %99 = vector.load %arg6[%c0_58, %c11, %c3_59] : memref<2x22x22xf32, #tpu.memory_space<vmem>>, vector<1x1x16xf32>
    %100 = vector.shape_cast %99 : vector<1x1x16xf32> to vector<1x16xf32>
    %101 = vector.shape_cast %98 : vector<1x16xf32> to vector<1x1x16xf32>
    tpu.vector_store %arg6[%c0_58, %c11, %c3_59], %101 {strides = array<i32>} : memref<2x22x22xf32, #tpu.memory_space<vmem>>, vector<1x1x16xf32>,
    %102 = vector.extract_strided_slice %31 {offsets = [0, 128], sizes = [1, 16], strides = [1, 1]} : vector<1x256xf32> to vector<1x16xf32>
    %c1_60 = arith.constant 1 : index
    %c11_61 = arith.constant 11 : index
    %c3_62 = arith.constant 3 : index
    %103 = vector.load %arg6[%c1_60, %c11_61, %c3_62] : memref<2x22x22xf32, #tpu.memory_space<vmem>>, vector<1x1x16xf32>
    %104 = vector.shape_cast %103 : vector<1x1x16xf32> to vector<1x16xf32>
    %105 = vector.shape_cast %102 : vector<1x16xf32> to vector<1x1x16xf32>
    tpu.vector_store %arg6[%c1_60, %c11_61, %c3_62], %105 {strides = array<i32>} : memref<2x22x22xf32, #tpu.memory_space<vmem>>, vector<1x1x16xf32>,
    %106 = vector.extract_strided_slice %29 {offsets = [0, 144], sizes = [1, 16], strides = [1, 1]} : vector<1x256xf32> to vector<1x16xf32>
    %c0_63 = arith.constant 0 : index
    %c12 = arith.constant 12 : index
    %c3_64 = arith.constant 3 : index
    %107 = vector.load %arg6[%c0_63, %c12, %c3_64] : memref<2x22x22xf32, #tpu.memory_space<vmem>>, vector<1x1x16xf32>
    %108 = vector.shape_cast %107 : vector<1x1x16xf32> to vector<1x16xf32>
    %109 = vector.shape_cast %106 : vector<1x16xf32> to vector<1x1x16xf32>
    tpu.vector_store %arg6[%c0_63, %c12, %c3_64], %109 {strides = array<i32>} : memref<2x22x22xf32, #tpu.memory_space<vmem>>, vector<1x1x16xf32>,
    %110 = vector.extract_strided_slice %31 {offsets = [0, 144], sizes = [1, 16], strides = [1, 1]} : vector<1x256xf32> to vector<1x16xf32>
    %c1_65 = arith.constant 1 : index
    %c12_66 = arith.constant 12 : index
    %c3_67 = arith.constant 3 : index
    %111 = vector.load %arg6[%c1_65, %c12_66, %c3_67] : memref<2x22x22xf32, #tpu.memory_space<vmem>>, vector<1x1x16xf32>
    %112 = vector.shape_cast %111 : vector<1x1x16xf32> to vector<1x16xf32>
    %113 = vector.shape_cast %110 : vector<1x16xf32> to vector<1x1x16xf32>
    tpu.vector_store %arg6[%c1_65, %c12_66, %c3_67], %113 {strides = array<i32>} : memref<2x22x22xf32, #tpu.memory_space<vmem>>, vector<1x1x16xf32>,
    %114 = vector.extract_strided_slice %29 {offsets = [0, 160], sizes = [1, 16], strides = [1, 1]} : vector<1x256xf32> to vector<1x16xf32>
    %c0_68 = arith.constant 0 : index
    %c13 = arith.constant 13 : index
    %c3_69 = arith.constant 3 : index
    %115 = vector.load %arg6[%c0_68, %c13, %c3_69] : memref<2x22x22xf32, #tpu.memory_space<vmem>>, vector<1x1x16xf32>
    %116 = vector.shape_cast %115 : vector<1x1x16xf32> to vector<1x16xf32>
    %117 = vector.shape_cast %114 : vector<1x16xf32> to vector<1x1x16xf32>
    tpu.vector_store %arg6[%c0_68, %c13, %c3_69], %117 {strides = array<i32>} : memref<2x22x22xf32, #tpu.memory_space<vmem>>, vector<1x1x16xf32>,
    %118 = vector.extract_strided_slice %31 {offsets = [0, 160], sizes = [1, 16], strides = [1, 1]} : vector<1x256xf32> to vector<1x16xf32>
    %c1_70 = arith.constant 1 : index
    %c13_71 = arith.constant 13 : index
    %c3_72 = arith.constant 3 : index
    %119 = vector.load %arg6[%c1_70, %c13_71, %c3_72] : memref<2x22x22xf32, #tpu.memory_space<vmem>>, vector<1x1x16xf32>
    %120 = vector.shape_cast %119 : vector<1x1x16xf32> to vector<1x16xf32>
    %121 = vector.shape_cast %118 : vector<1x16xf32> to vector<1x1x16xf32>
    tpu.vector_store %arg6[%c1_70, %c13_71, %c3_72], %121 {strides = array<i32>} : memref<2x22x22xf32, #tpu.memory_space<vmem>>, vector<1x1x16xf32>,
    %122 = vector.extract_strided_slice %29 {offsets = [0, 176], sizes = [1, 16], strides = [1, 1]} : vector<1x256xf32> to vector<1x16xf32>
    %c0_73 = arith.constant 0 : index
    %c14 = arith.constant 14 : index
    %c3_74 = arith.constant 3 : index
    %123 = vector.load %arg6[%c0_73, %c14, %c3_74] : memref<2x22x22xf32, #tpu.memory_space<vmem>>, vector<1x1x16xf32>
    %124 = vector.shape_cast %123 : vector<1x1x16xf32> to vector<1x16xf32>
    %125 = vector.shape_cast %122 : vector<1x16xf32> to vector<1x1x16xf32>
    tpu.vector_store %arg6[%c0_73, %c14, %c3_74], %125 {strides = array<i32>} : memref<2x22x22xf32, #tpu.memory_space<vmem>>, vector<1x1x16xf32>,
    %126 = vector.extract_strided_slice %31 {offsets = [0, 176], sizes = [1, 16], strides = [1, 1]} : vector<1x256xf32> to vector<1x16xf32>
    %c1_75 = arith.constant 1 : index
    %c14_76 = arith.constant 14 : index
    %c3_77 = arith.constant 3 : index
    %127 = vector.load %arg6[%c1_75, %c14_76, %c3_77] : memref<2x22x22xf32, #tpu.memory_space<vmem>>, vector<1x1x16xf32>
    %128 = vector.shape_cast %127 : vector<1x1x16xf32> to vector<1x16xf32>
    %129 = vector.shape_cast %126 : vector<1x16xf32> to vector<1x1x16xf32>
    tpu.vector_store %arg6[%c1_75, %c14_76, %c3_77], %129 {strides = array<i32>} : memref<2x22x22xf32, #tpu.memory_space<vmem>>, vector<1x1x16xf32>,
    %130 = vector.extract_strided_slice %29 {offsets = [0, 192], sizes = [1, 16], strides = [1, 1]} : vector<1x256xf32> to vector<1x16xf32>
    %c0_78 = arith.constant 0 : index
    %c15 = arith.constant 15 : index
    %c3_79 = arith.constant 3 : index
    %131 = vector.load %arg6[%c0_78, %c15, %c3_79] : memref<2x22x22xf32, #tpu.memory_space<vmem>>, vector<1x1x16xf32>
    %132 = vector.shape_cast %131 : vector<1x1x16xf32> to vector<1x16xf32>
    %133 = vector.shape_cast %130 : vector<1x16xf32> to vector<1x1x16xf32>
    tpu.vector_store %arg6[%c0_78, %c15, %c3_79], %133 {strides = array<i32>} : memref<2x22x22xf32, #tpu.memory_space<vmem>>, vector<1x1x16xf32>,
    %134 = vector.extract_strided_slice %31 {offsets = [0, 192], sizes = [1, 16], strides = [1, 1]} : vector<1x256xf32> to vector<1x16xf32>
    %c1_80 = arith.constant 1 : index
    %c15_81 = arith.constant 15 : index
    %c3_82 = arith.constant 3 : index
    %135 = vector.load %arg6[%c1_80, %c15_81, %c3_82] : memref<2x22x22xf32, #tpu.memory_space<vmem>>, vector<1x1x16xf32>
    %136 = vector.shape_cast %135 : vector<1x1x16xf32> to vector<1x16xf32>
    %137 = vector.shape_cast %134 : vector<1x16xf32> to vector<1x1x16xf32>
    tpu.vector_store %arg6[%c1_80, %c15_81, %c3_82], %137 {strides = array<i32>} : memref<2x22x22xf32, #tpu.memory_space<vmem>>, vector<1x1x16xf32>,
    %138 = vector.extract_strided_slice %29 {offsets = [0, 208], sizes = [1, 16], strides = [1, 1]} : vector<1x256xf32> to vector<1x16xf32>
    %c0_83 = arith.constant 0 : index
    %c16 = arith.constant 16 : index
    %c3_84 = arith.constant 3 : index
    %139 = vector.load %arg6[%c0_83, %c16, %c3_84] : memref<2x22x22xf32, #tpu.memory_space<vmem>>, vector<1x1x16xf32>
    %140 = vector.shape_cast %139 : vector<1x1x16xf32> to vector<1x16xf32>
    %141 = vector.shape_cast %138 : vector<1x16xf32> to vector<1x1x16xf32>
    tpu.vector_store %arg6[%c0_83, %c16, %c3_84], %141 {strides = array<i32>} : memref<2x22x22xf32, #tpu.memory_space<vmem>>, vector<1x1x16xf32>,
    %142 = vector.extract_strided_slice %31 {offsets = [0, 208], sizes = [1, 16], strides = [1, 1]} : vector<1x256xf32> to vector<1x16xf32>
    %c1_85 = arith.constant 1 : index
    %c16_86 = arith.constant 16 : index
    %c3_87 = arith.constant 3 : index
    %143 = vector.load %arg6[%c1_85, %c16_86, %c3_87] : memref<2x22x22xf32, #tpu.memory_space<vmem>>, vector<1x1x16xf32>
    %144 = vector.shape_cast %143 : vector<1x1x16xf32> to vector<1x16xf32>
    %145 = vector.shape_cast %142 : vector<1x16xf32> to vector<1x1x16xf32>
    tpu.vector_store %arg6[%c1_85, %c16_86, %c3_87], %145 {strides = array<i32>} : memref<2x22x22xf32, #tpu.memory_space<vmem>>, vector<1x1x16xf32>,
    %146 = vector.extract_strided_slice %29 {offsets = [0, 224], sizes = [1, 16], strides = [1, 1]} : vector<1x256xf32> to vector<1x16xf32>
    %c0_88 = arith.constant 0 : index
    %c17 = arith.constant 17 : index
    %c3_89 = arith.constant 3 : index
    %147 = vector.load %arg6[%c0_88, %c17, %c3_89] : memref<2x22x22xf32, #tpu.memory_space<vmem>>, vector<1x1x16xf32>
    %148 = vector.shape_cast %147 : vector<1x1x16xf32> to vector<1x16xf32>
    %149 = vector.shape_cast %146 : vector<1x16xf32> to vector<1x1x16xf32>
    tpu.vector_store %arg6[%c0_88, %c17, %c3_89], %149 {strides = array<i32>} : memref<2x22x22xf32, #tpu.memory_space<vmem>>, vector<1x1x16xf32>,
    %150 = vector.extract_strided_slice %31 {offsets = [0, 224], sizes = [1, 16], strides = [1, 1]} : vector<1x256xf32> to vector<1x16xf32>
    %c1_90 = arith.constant 1 : index
    %c17_91 = arith.constant 17 : index
    %c3_92 = arith.constant 3 : index
    %151 = vector.load %arg6[%c1_90, %c17_91, %c3_92] : memref<2x22x22xf32, #tpu.memory_space<vmem>>, vector<1x1x16xf32>
    %152 = vector.shape_cast %151 : vector<1x1x16xf32> to vector<1x16xf32>
    %153 = vector.shape_cast %150 : vector<1x16xf32> to vector<1x1x16xf32>
    tpu.vector_store %arg6[%c1_90, %c17_91, %c3_92], %153 {strides = array<i32>} : memref<2x22x22xf32, #tpu.memory_space<vmem>>, vector<1x1x16xf32>,
    %154 = vector.extract_strided_slice %29 {offsets = [0, 240], sizes = [1, 16], strides = [1, 1]} : vector<1x256xf32> to vector<1x16xf32>
    %c0_93 = arith.constant 0 : index
    %c18 = arith.constant 18 : index
    %c3_94 = arith.constant 3 : index
    %155 = vector.load %arg6[%c0_93, %c18, %c3_94] : memref<2x22x22xf32, #tpu.memory_space<vmem>>, vector<1x1x16xf32>
    %156 = vector.shape_cast %155 : vector<1x1x16xf32> to vector<1x16xf32>
    %157 = vector.shape_cast %154 : vector<1x16xf32> to vector<1x1x16xf32>
    tpu.vector_store %arg6[%c0_93, %c18, %c3_94], %157 {strides = array<i32>} : memref<2x22x22xf32, #tpu.memory_space<vmem>>, vector<1x1x16xf32>,
    %158 = vector.extract_strided_slice %31 {offsets = [0, 240], sizes = [1, 16], strides = [1, 1]} : vector<1x256xf32> to vector<1x16xf32>
    %c1_95 = arith.constant 1 : index
    %c18_96 = arith.constant 18 : index
    %c3_97 = arith.constant 3 : index
    %159 = vector.load %arg6[%c1_95, %c18_96, %c3_97] : memref<2x22x22xf32, #tpu.memory_space<vmem>>, vector<1x1x16xf32>
    %160 = vector.shape_cast %159 : vector<1x1x16xf32> to vector<1x16xf32>
    %161 = vector.shape_cast %158 : vector<1x16xf32> to vector<1x1x16xf32>
    tpu.vector_store %arg6[%c1_95, %c18_96, %c3_97], %161 {strides = array<i32>} : memref<2x22x22xf32, #tpu.memory_space<vmem>>, vector<1x1x16xf32>,
    %cst_98 = arith.constant 0.000000e+00 : f32
    %162 = vector.broadcast %cst_98 : f32 to vector<16x16xf32>
    %c0_99 = arith.constant 0 : index
    %163 = memref.load %arg4[%c0_99] : memref<98xf32, #tpu.memory_space<smem>>
    %c0_100 = arith.constant 0 : index
    %c0_101 = arith.constant 0 : index
    %c0_102 = arith.constant 0 : index
    %164 = vector.load %arg6[%c0_100, %c0_101, %c0_102] : memref<2x22x22xf32, #tpu.memory_space<vmem>>, vector<1x16x16xf32>
    %165 = vector.shape_cast %164 : vector<1x16x16xf32> to vector<16x16xf32>
    %166 = vector.broadcast %163 : f32 to vector<16x16xf32>
    %167 = arith.mulf %166, %165 : vector<16x16xf32>
    %168 = arith.addf %162, %167 : vector<16x16xf32>
    %c1_103 = arith.constant 1 : index
    %169 = memref.load %arg4[%c1_103] : memref<98xf32, #tpu.memory_space<smem>>
    %c0_104 = arith.constant 0 : index
    %c0_105 = arith.constant 0 : index
    %c1_106 = arith.constant 1 : index
    %170 = vector.load %arg6[%c0_104, %c0_105, %c1_106] : memref<2x22x22xf32, #tpu.memory_space<vmem>>, vector<1x16x16xf32>
    %171 = vector.shape_cast %170 : vector<1x16x16xf32> to vector<16x16xf32>
    %172 = vector.broadcast %169 : f32 to vector<16x16xf32>
    %173 = arith.mulf %172, %171 : vector<16x16xf32>
    %174 = arith.addf %168, %173 : vector<16x16xf32>
    %c2 = arith.constant 2 : index
    %175 = memref.load %arg4[%c2] : memref<98xf32, #tpu.memory_space<smem>>
    %c0_107 = arith.constant 0 : index
    %c0_108 = arith.constant 0 : index
    %c2_109 = arith.constant 2 : index
    %176 = vector.load %arg6[%c0_107, %c0_108, %c2_109] : memref<2x22x22xf32, #tpu.memory_space<vmem>>, vector<1x16x16xf32>
    %177 = vector.shape_cast %176 : vector<1x16x16xf32> to vector<16x16xf32>
    %178 = vector.broadcast %175 : f32 to vector<16x16xf32>
    %179 = arith.mulf %178, %177 : vector<16x16xf32>
    %180 = arith.addf %174, %179 : vector<16x16xf32>
    %c3_110 = arith.constant 3 : index
    %181 = memref.load %arg4[%c3_110] : memref<98xf32, #tpu.memory_space<smem>>
    %c0_111 = arith.constant 0 : index
    %c0_112 = arith.constant 0 : index
    %c3_113 = arith.constant 3 : index
    %182 = vector.load %arg6[%c0_111, %c0_112, %c3_113] : memref<2x22x22xf32, #tpu.memory_space<vmem>>, vector<1x16x16xf32>
    %183 = vector.shape_cast %182 : vector<1x16x16xf32> to vector<16x16xf32>
    %184 = vector.broadcast %181 : f32 to vector<16x16xf32>
    %185 = arith.mulf %184, %183 : vector<16x16xf32>
    %186 = arith.addf %180, %185 : vector<16x16xf32>
    %c4_114 = arith.constant 4 : index
    %187 = memref.load %arg4[%c4_114] : memref<98xf32, #tpu.memory_space<smem>>
    %c0_115 = arith.constant 0 : index
    %c0_116 = arith.constant 0 : index
    %c4_117 = arith.constant 4 : index
    %188 = vector.load %arg6[%c0_115, %c0_116, %c4_117] : memref<2x22x22xf32, #tpu.memory_space<vmem>>, vector<1x16x16xf32>
    %189 = vector.shape_cast %188 : vector<1x16x16xf32> to vector<16x16xf32>
    %190 = vector.broadcast %187 : f32 to vector<16x16xf32>
    %191 = arith.mulf %190, %189 : vector<16x16xf32>
    %192 = arith.addf %186, %191 : vector<16x16xf32>
    %c5_118 = arith.constant 5 : index
    %193 = memref.load %arg4[%c5_118] : memref<98xf32, #tpu.memory_space<smem>>
    %c0_119 = arith.constant 0 : index
    %c0_120 = arith.constant 0 : index
    %c5_121 = arith.constant 5 : index
    %194 = vector.load %arg6[%c0_119, %c0_120, %c5_121] : memref<2x22x22xf32, #tpu.memory_space<vmem>>, vector<1x16x16xf32>
    %195 = vector.shape_cast %194 : vector<1x16x16xf32> to vector<16x16xf32>
    %196 = vector.broadcast %193 : f32 to vector<16x16xf32>
    %197 = arith.mulf %196, %195 : vector<16x16xf32>
    %198 = arith.addf %192, %197 : vector<16x16xf32>
    %c6_122 = arith.constant 6 : index
    %199 = memref.load %arg4[%c6_122] : memref<98xf32, #tpu.memory_space<smem>>
    %c0_123 = arith.constant 0 : index
    %c0_124 = arith.constant 0 : index
    %c6_125 = arith.constant 6 : index
    %200 = vector.load %arg6[%c0_123, %c0_124, %c6_125] : memref<2x22x22xf32, #tpu.memory_space<vmem>>, vector<1x16x16xf32>
    %201 = vector.shape_cast %200 : vector<1x16x16xf32> to vector<16x16xf32>
    %202 = vector.broadcast %199 : f32 to vector<16x16xf32>
    %203 = arith.mulf %202, %201 : vector<16x16xf32>
    %204 = arith.addf %198, %203 : vector<16x16xf32>
    %c7_126 = arith.constant 7 : index
    %205 = memref.load %arg4[%c7_126] : memref<98xf32, #tpu.memory_space<smem>>
    %c0_127 = arith.constant 0 : index
    %c1_128 = arith.constant 1 : index
    %c0_129 = arith.constant 0 : index
    %206 = vector.load %arg6[%c0_127, %c1_128, %c0_129] : memref<2x22x22xf32, #tpu.memory_space<vmem>>, vector<1x16x16xf32>
    %207 = vector.shape_cast %206 : vector<1x16x16xf32> to vector<16x16xf32>
    %208 = vector.broadcast %205 : f32 to vector<16x16xf32>
    %209 = arith.mulf %208, %207 : vector<16x16xf32>
    %210 = arith.addf %204, %209 : vector<16x16xf32>
    %c8_130 = arith.constant 8 : index
    %211 = memref.load %arg4[%c8_130] : memref<98xf32, #tpu.memory_space<smem>>
    %c0_131 = arith.constant 0 : index
    %c1_132 = arith.constant 1 : index
    %c1_133 = arith.constant 1 : index
    %212 = vector.load %arg6[%c0_131, %c1_132, %c1_133] : memref<2x22x22xf32, #tpu.memory_space<vmem>>, vector<1x16x16xf32>
    %213 = vector.shape_cast %212 : vector<1x16x16xf32> to vector<16x16xf32>
    %214 = vector.broadcast %211 : f32 to vector<16x16xf32>
    %215 = arith.mulf %214, %213 : vector<16x16xf32>
    %216 = arith.addf %210, %215 : vector<16x16xf32>
    %c9_134 = arith.constant 9 : index
    %217 = memref.load %arg4[%c9_134] : memref<98xf32, #tpu.memory_space<smem>>
    %c0_135 = arith.constant 0 : index
    %c1_136 = arith.constant 1 : index
    %c2_137 = arith.constant 2 : index
    %218 = vector.load %arg6[%c0_135, %c1_136, %c2_137] : memref<2x22x22xf32, #tpu.memory_space<vmem>>, vector<1x16x16xf32>
    %219 = vector.shape_cast %218 : vector<1x16x16xf32> to vector<16x16xf32>
    %220 = vector.broadcast %217 : f32 to vector<16x16xf32>
    %221 = arith.mulf %220, %219 : vector<16x16xf32>
    %222 = arith.addf %216, %221 : vector<16x16xf32>
    %c10_138 = arith.constant 10 : index
    %223 = memref.load %arg4[%c10_138] : memref<98xf32, #tpu.memory_space<smem>>
    %c0_139 = arith.constant 0 : index
    %c1_140 = arith.constant 1 : index
    %c3_141 = arith.constant 3 : index
    %224 = vector.load %arg6[%c0_139, %c1_140, %c3_141] : memref<2x22x22xf32, #tpu.memory_space<vmem>>, vector<1x16x16xf32>
    %225 = vector.shape_cast %224 : vector<1x16x16xf32> to vector<16x16xf32>
    %226 = vector.broadcast %223 : f32 to vector<16x16xf32>
    %227 = arith.mulf %226, %225 : vector<16x16xf32>
    %228 = arith.addf %222, %227 : vector<16x16xf32>
    %c11_142 = arith.constant 11 : index
    %229 = memref.load %arg4[%c11_142] : memref<98xf32, #tpu.memory_space<smem>>
    %c0_143 = arith.constant 0 : index
    %c1_144 = arith.constant 1 : index
    %c4_145 = arith.constant 4 : index
    %230 = vector.load %arg6[%c0_143, %c1_144, %c4_145] : memref<2x22x22xf32, #tpu.memory_space<vmem>>, vector<1x16x16xf32>
    %231 = vector.shape_cast %230 : vector<1x16x16xf32> to vector<16x16xf32>
    %232 = vector.broadcast %229 : f32 to vector<16x16xf32>
    %233 = arith.mulf %232, %231 : vector<16x16xf32>
    %234 = arith.addf %228, %233 : vector<16x16xf32>
    %c12_146 = arith.constant 12 : index
    %235 = memref.load %arg4[%c12_146] : memref<98xf32, #tpu.memory_space<smem>>
    %c0_147 = arith.constant 0 : index
    %c1_148 = arith.constant 1 : index
    %c5_149 = arith.constant 5 : index
    %236 = vector.load %arg6[%c0_147, %c1_148, %c5_149] : memref<2x22x22xf32, #tpu.memory_space<vmem>>, vector<1x16x16xf32>
    %237 = vector.shape_cast %236 : vector<1x16x16xf32> to vector<16x16xf32>
    %238 = vector.broadcast %235 : f32 to vector<16x16xf32>
    %239 = arith.mulf %238, %237 : vector<16x16xf32>
    %240 = arith.addf %234, %239 : vector<16x16xf32>
    %c13_150 = arith.constant 13 : index
    %241 = memref.load %arg4[%c13_150] : memref<98xf32, #tpu.memory_space<smem>>
    %c0_151 = arith.constant 0 : index
    %c1_152 = arith.constant 1 : index
    %c6_153 = arith.constant 6 : index
    %242 = vector.load %arg6[%c0_151, %c1_152, %c6_153] : memref<2x22x22xf32, #tpu.memory_space<vmem>>, vector<1x16x16xf32>
    %243 = vector.shape_cast %242 : vector<1x16x16xf32> to vector<16x16xf32>
    %244 = vector.broadcast %241 : f32 to vector<16x16xf32>
    %245 = arith.mulf %244, %243 : vector<16x16xf32>
    %246 = arith.addf %240, %245 : vector<16x16xf32>
    %c14_154 = arith.constant 14 : index
    %247 = memref.load %arg4[%c14_154] : memref<98xf32, #tpu.memory_space<smem>>
    %c0_155 = arith.constant 0 : index
    %c2_156 = arith.constant 2 : index
    %c0_157 = arith.constant 0 : index
    %248 = vector.load %arg6[%c0_155, %c2_156, %c0_157] : memref<2x22x22xf32, #tpu.memory_space<vmem>>, vector<1x16x16xf32>
    %249 = vector.shape_cast %248 : vector<1x16x16xf32> to vector<16x16xf32>
    %250 = vector.broadcast %247 : f32 to vector<16x16xf32>
    %251 = arith.mulf %250, %249 : vector<16x16xf32>
    %252 = arith.addf %246, %251 : vector<16x16xf32>
    %c15_158 = arith.constant 15 : index
    %253 = memref.load %arg4[%c15_158] : memref<98xf32, #tpu.memory_space<smem>>
    %c0_159 = arith.constant 0 : index
    %c2_160 = arith.constant 2 : index
    %c1_161 = arith.constant 1 : index
    %254 = vector.load %arg6[%c0_159, %c2_160, %c1_161] : memref<2x22x22xf32, #tpu.memory_space<vmem>>, vector<1x16x16xf32>
    %255 = vector.shape_cast %254 : vector<1x16x16xf32> to vector<16x16xf32>
    %256 = vector.broadcast %253 : f32 to vector<16x16xf32>
    %257 = arith.mulf %256, %255 : vector<16x16xf32>
    %258 = arith.addf %252, %257 : vector<16x16xf32>
    %c16_162 = arith.constant 16 : index
    %259 = memref.load %arg4[%c16_162] : memref<98xf32, #tpu.memory_space<smem>>
    %c0_163 = arith.constant 0 : index
    %c2_164 = arith.constant 2 : index
    %c2_165 = arith.constant 2 : index
    %260 = vector.load %arg6[%c0_163, %c2_164, %c2_165] : memref<2x22x22xf32, #tpu.memory_space<vmem>>, vector<1x16x16xf32>
    %261 = vector.shape_cast %260 : vector<1x16x16xf32> to vector<16x16xf32>
    %262 = vector.broadcast %259 : f32 to vector<16x16xf32>
    %263 = arith.mulf %262, %261 : vector<16x16xf32>
    %264 = arith.addf %258, %263 : vector<16x16xf32>
    %c17_166 = arith.constant 17 : index
    %265 = memref.load %arg4[%c17_166] : memref<98xf32, #tpu.memory_space<smem>>
    %c0_167 = arith.constant 0 : index
    %c2_168 = arith.constant 2 : index
    %c3_169 = arith.constant 3 : index
    %266 = vector.load %arg6[%c0_167, %c2_168, %c3_169] : memref<2x22x22xf32, #tpu.memory_space<vmem>>, vector<1x16x16xf32>
    %267 = vector.shape_cast %266 : vector<1x16x16xf32> to vector<16x16xf32>
    %268 = vector.broadcast %265 : f32 to vector<16x16xf32>
    %269 = arith.mulf %268, %267 : vector<16x16xf32>
    %270 = arith.addf %264, %269 : vector<16x16xf32>
    %c18_170 = arith.constant 18 : index
    %271 = memref.load %arg4[%c18_170] : memref<98xf32, #tpu.memory_space<smem>>
    %c0_171 = arith.constant 0 : index
    %c2_172 = arith.constant 2 : index
    %c4_173 = arith.constant 4 : index
    %272 = vector.load %arg6[%c0_171, %c2_172, %c4_173] : memref<2x22x22xf32, #tpu.memory_space<vmem>>, vector<1x16x16xf32>
    %273 = vector.shape_cast %272 : vector<1x16x16xf32> to vector<16x16xf32>
    %274 = vector.broadcast %271 : f32 to vector<16x16xf32>
    %275 = arith.mulf %274, %273 : vector<16x16xf32>
    %276 = arith.addf %270, %275 : vector<16x16xf32>
    %c19 = arith.constant 19 : index
    %277 = memref.load %arg4[%c19] : memref<98xf32, #tpu.memory_space<smem>>
    %c0_174 = arith.constant 0 : index
    %c2_175 = arith.constant 2 : index
    %c5_176 = arith.constant 5 : index
    %278 = vector.load %arg6[%c0_174, %c2_175, %c5_176] : memref<2x22x22xf32, #tpu.memory_space<vmem>>, vector<1x16x16xf32>
    %279 = vector.shape_cast %278 : vector<1x16x16xf32> to vector<16x16xf32>
    %280 = vector.broadcast %277 : f32 to vector<16x16xf32>
    %281 = arith.mulf %280, %279 : vector<16x16xf32>
    %282 = arith.addf %276, %281 : vector<16x16xf32>
    %c20 = arith.constant 20 : index
    %283 = memref.load %arg4[%c20] : memref<98xf32, #tpu.memory_space<smem>>
    %c0_177 = arith.constant 0 : index
    %c2_178 = arith.constant 2 : index
    %c6_179 = arith.constant 6 : index
    %284 = vector.load %arg6[%c0_177, %c2_178, %c6_179] : memref<2x22x22xf32, #tpu.memory_space<vmem>>, vector<1x16x16xf32>
    %285 = vector.shape_cast %284 : vector<1x16x16xf32> to vector<16x16xf32>
    %286 = vector.broadcast %283 : f32 to vector<16x16xf32>
    %287 = arith.mulf %286, %285 : vector<16x16xf32>
    %288 = arith.addf %282, %287 : vector<16x16xf32>
    %c21 = arith.constant 21 : index
    %289 = memref.load %arg4[%c21] : memref<98xf32, #tpu.memory_space<smem>>
    %c0_180 = arith.constant 0 : index
    %c3_181 = arith.constant 3 : index
    %c0_182 = arith.constant 0 : index
    %290 = vector.load %arg6[%c0_180, %c3_181, %c0_182] : memref<2x22x22xf32, #tpu.memory_space<vmem>>, vector<1x16x16xf32>
    %291 = vector.shape_cast %290 : vector<1x16x16xf32> to vector<16x16xf32>
    %292 = vector.broadcast %289 : f32 to vector<16x16xf32>
    %293 = arith.mulf %292, %291 : vector<16x16xf32>
    %294 = arith.addf %288, %293 : vector<16x16xf32>
    %c22 = arith.constant 22 : index
    %295 = memref.load %arg4[%c22] : memref<98xf32, #tpu.memory_space<smem>>
    %c0_183 = arith.constant 0 : index
    %c3_184 = arith.constant 3 : index
    %c1_185 = arith.constant 1 : index
    %296 = vector.load %arg6[%c0_183, %c3_184, %c1_185] : memref<2x22x22xf32, #tpu.memory_space<vmem>>, vector<1x16x16xf32>
    %297 = vector.shape_cast %296 : vector<1x16x16xf32> to vector<16x16xf32>
    %298 = vector.broadcast %295 : f32 to vector<16x16xf32>
    %299 = arith.mulf %298, %297 : vector<16x16xf32>
    %300 = arith.addf %294, %299 : vector<16x16xf32>
    %c23 = arith.constant 23 : index
    %301 = memref.load %arg4[%c23] : memref<98xf32, #tpu.memory_space<smem>>
    %c0_186 = arith.constant 0 : index
    %c3_187 = arith.constant 3 : index
    %c2_188 = arith.constant 2 : index
    %302 = vector.load %arg6[%c0_186, %c3_187, %c2_188] : memref<2x22x22xf32, #tpu.memory_space<vmem>>, vector<1x16x16xf32>
    %303 = vector.shape_cast %302 : vector<1x16x16xf32> to vector<16x16xf32>
    %304 = vector.broadcast %301 : f32 to vector<16x16xf32>
    %305 = arith.mulf %304, %303 : vector<16x16xf32>
    %306 = arith.addf %300, %305 : vector<16x16xf32>
    %c24 = arith.constant 24 : index
    %307 = memref.load %arg4[%c24] : memref<98xf32, #tpu.memory_space<smem>>
    %c0_189 = arith.constant 0 : index
    %c3_190 = arith.constant 3 : index
    %c3_191 = arith.constant 3 : index
    %308 = vector.load %arg6[%c0_189, %c3_190, %c3_191] : memref<2x22x22xf32, #tpu.memory_space<vmem>>, vector<1x16x16xf32>
    %309 = vector.shape_cast %308 : vector<1x16x16xf32> to vector<16x16xf32>
    %310 = vector.broadcast %307 : f32 to vector<16x16xf32>
    %311 = arith.mulf %310, %309 : vector<16x16xf32>
    %312 = arith.addf %306, %311 : vector<16x16xf32>
    %c25 = arith.constant 25 : index
    %313 = memref.load %arg4[%c25] : memref<98xf32, #tpu.memory_space<smem>>
    %c0_192 = arith.constant 0 : index
    %c3_193 = arith.constant 3 : index
    %c4_194 = arith.constant 4 : index
    %314 = vector.load %arg6[%c0_192, %c3_193, %c4_194] : memref<2x22x22xf32, #tpu.memory_space<vmem>>, vector<1x16x16xf32>
    %315 = vector.shape_cast %314 : vector<1x16x16xf32> to vector<16x16xf32>
    %316 = vector.broadcast %313 : f32 to vector<16x16xf32>
    %317 = arith.mulf %316, %315 : vector<16x16xf32>
    %318 = arith.addf %312, %317 : vector<16x16xf32>
    %c26 = arith.constant 26 : index
    %319 = memref.load %arg4[%c26] : memref<98xf32, #tpu.memory_space<smem>>
    %c0_195 = arith.constant 0 : index
    %c3_196 = arith.constant 3 : index
    %c5_197 = arith.constant 5 : index
    %320 = vector.load %arg6[%c0_195, %c3_196, %c5_197] : memref<2x22x22xf32, #tpu.memory_space<vmem>>, vector<1x16x16xf32>
    %321 = vector.shape_cast %320 : vector<1x16x16xf32> to vector<16x16xf32>
    %322 = vector.broadcast %319 : f32 to vector<16x16xf32>
    %323 = arith.mulf %322, %321 : vector<16x16xf32>
    %324 = arith.addf %318, %323 : vector<16x16xf32>
    %c27 = arith.constant 27 : index
    %325 = memref.load %arg4[%c27] : memref<98xf32, #tpu.memory_space<smem>>
    %c0_198 = arith.constant 0 : index
    %c3_199 = arith.constant 3 : index
    %c6_200 = arith.constant 6 : index
    %326 = vector.load %arg6[%c0_198, %c3_199, %c6_200] : memref<2x22x22xf32, #tpu.memory_space<vmem>>, vector<1x16x16xf32>
    %327 = vector.shape_cast %326 : vector<1x16x16xf32> to vector<16x16xf32>
    %328 = vector.broadcast %325 : f32 to vector<16x16xf32>
    %329 = arith.mulf %328, %327 : vector<16x16xf32>
    %330 = arith.addf %324, %329 : vector<16x16xf32>
    %c28 = arith.constant 28 : index
    %331 = memref.load %arg4[%c28] : memref<98xf32, #tpu.memory_space<smem>>
    %c0_201 = arith.constant 0 : index
    %c4_202 = arith.constant 4 : index
    %c0_203 = arith.constant 0 : index
    %332 = vector.load %arg6[%c0_201, %c4_202, %c0_203] : memref<2x22x22xf32, #tpu.memory_space<vmem>>, vector<1x16x16xf32>
    %333 = vector.shape_cast %332 : vector<1x16x16xf32> to vector<16x16xf32>
    %334 = vector.broadcast %331 : f32 to vector<16x16xf32>
    %335 = arith.mulf %334, %333 : vector<16x16xf32>
    %336 = arith.addf %330, %335 : vector<16x16xf32>
    %c29 = arith.constant 29 : index
    %337 = memref.load %arg4[%c29] : memref<98xf32, #tpu.memory_space<smem>>
    %c0_204 = arith.constant 0 : index
    %c4_205 = arith.constant 4 : index
    %c1_206 = arith.constant 1 : index
    %338 = vector.load %arg6[%c0_204, %c4_205, %c1_206] : memref<2x22x22xf32, #tpu.memory_space<vmem>>, vector<1x16x16xf32>
    %339 = vector.shape_cast %338 : vector<1x16x16xf32> to vector<16x16xf32>
    %340 = vector.broadcast %337 : f32 to vector<16x16xf32>
    %341 = arith.mulf %340, %339 : vector<16x16xf32>
    %342 = arith.addf %336, %341 : vector<16x16xf32>
    %c30 = arith.constant 30 : index
    %343 = memref.load %arg4[%c30] : memref<98xf32, #tpu.memory_space<smem>>
    %c0_207 = arith.constant 0 : index
    %c4_208 = arith.constant 4 : index
    %c2_209 = arith.constant 2 : index
    %344 = vector.load %arg6[%c0_207, %c4_208, %c2_209] : memref<2x22x22xf32, #tpu.memory_space<vmem>>, vector<1x16x16xf32>
    %345 = vector.shape_cast %344 : vector<1x16x16xf32> to vector<16x16xf32>
    %346 = vector.broadcast %343 : f32 to vector<16x16xf32>
    %347 = arith.mulf %346, %345 : vector<16x16xf32>
    %348 = arith.addf %342, %347 : vector<16x16xf32>
    %c31 = arith.constant 31 : index
    %349 = memref.load %arg4[%c31] : memref<98xf32, #tpu.memory_space<smem>>
    %c0_210 = arith.constant 0 : index
    %c4_211 = arith.constant 4 : index
    %c3_212 = arith.constant 3 : index
    %350 = vector.load %arg6[%c0_210, %c4_211, %c3_212] : memref<2x22x22xf32, #tpu.memory_space<vmem>>, vector<1x16x16xf32>
    %351 = vector.shape_cast %350 : vector<1x16x16xf32> to vector<16x16xf32>
    %352 = vector.broadcast %349 : f32 to vector<16x16xf32>
    %353 = arith.mulf %352, %351 : vector<16x16xf32>
    %354 = arith.addf %348, %353 : vector<16x16xf32>
    %c32 = arith.constant 32 : index
    %355 = memref.load %arg4[%c32] : memref<98xf32, #tpu.memory_space<smem>>
    %c0_213 = arith.constant 0 : index
    %c4_214 = arith.constant 4 : index
    %c4_215 = arith.constant 4 : index
    %356 = vector.load %arg6[%c0_213, %c4_214, %c4_215] : memref<2x22x22xf32, #tpu.memory_space<vmem>>, vector<1x16x16xf32>
    %357 = vector.shape_cast %356 : vector<1x16x16xf32> to vector<16x16xf32>
    %358 = vector.broadcast %355 : f32 to vector<16x16xf32>
    %359 = arith.mulf %358, %357 : vector<16x16xf32>
    %360 = arith.addf %354, %359 : vector<16x16xf32>
    %c33 = arith.constant 33 : index
    %361 = memref.load %arg4[%c33] : memref<98xf32, #tpu.memory_space<smem>>
    %c0_216 = arith.constant 0 : index
    %c4_217 = arith.constant 4 : index
    %c5_218 = arith.constant 5 : index
    %362 = vector.load %arg6[%c0_216, %c4_217, %c5_218] : memref<2x22x22xf32, #tpu.memory_space<vmem>>, vector<1x16x16xf32>
    %363 = vector.shape_cast %362 : vector<1x16x16xf32> to vector<16x16xf32>
    %364 = vector.broadcast %361 : f32 to vector<16x16xf32>
    %365 = arith.mulf %364, %363 : vector<16x16xf32>
    %366 = arith.addf %360, %365 : vector<16x16xf32>
    %c34 = arith.constant 34 : index
    %367 = memref.load %arg4[%c34] : memref<98xf32, #tpu.memory_space<smem>>
    %c0_219 = arith.constant 0 : index
    %c4_220 = arith.constant 4 : index
    %c6_221 = arith.constant 6 : index
    %368 = vector.load %arg6[%c0_219, %c4_220, %c6_221] : memref<2x22x22xf32, #tpu.memory_space<vmem>>, vector<1x16x16xf32>
    %369 = vector.shape_cast %368 : vector<1x16x16xf32> to vector<16x16xf32>
    %370 = vector.broadcast %367 : f32 to vector<16x16xf32>
    %371 = arith.mulf %370, %369 : vector<16x16xf32>
    %372 = arith.addf %366, %371 : vector<16x16xf32>
    %c35 = arith.constant 35 : index
    %373 = memref.load %arg4[%c35] : memref<98xf32, #tpu.memory_space<smem>>
    %c0_222 = arith.constant 0 : index
    %c5_223 = arith.constant 5 : index
    %c0_224 = arith.constant 0 : index
    %374 = vector.load %arg6[%c0_222, %c5_223, %c0_224] : memref<2x22x22xf32, #tpu.memory_space<vmem>>, vector<1x16x16xf32>
    %375 = vector.shape_cast %374 : vector<1x16x16xf32> to vector<16x16xf32>
    %376 = vector.broadcast %373 : f32 to vector<16x16xf32>
    %377 = arith.mulf %376, %375 : vector<16x16xf32>
    %378 = arith.addf %372, %377 : vector<16x16xf32>
    %c36 = arith.constant 36 : index
    %379 = memref.load %arg4[%c36] : memref<98xf32, #tpu.memory_space<smem>>
    %c0_225 = arith.constant 0 : index
    %c5_226 = arith.constant 5 : index
    %c1_227 = arith.constant 1 : index
    %380 = vector.load %arg6[%c0_225, %c5_226, %c1_227] : memref<2x22x22xf32, #tpu.memory_space<vmem>>, vector<1x16x16xf32>
    %381 = vector.shape_cast %380 : vector<1x16x16xf32> to vector<16x16xf32>
    %382 = vector.broadcast %379 : f32 to vector<16x16xf32>
    %383 = arith.mulf %382, %381 : vector<16x16xf32>
    %384 = arith.addf %378, %383 : vector<16x16xf32>
    %c37 = arith.constant 37 : index
    %385 = memref.load %arg4[%c37] : memref<98xf32, #tpu.memory_space<smem>>
    %c0_228 = arith.constant 0 : index
    %c5_229 = arith.constant 5 : index
    %c2_230 = arith.constant 2 : index
    %386 = vector.load %arg6[%c0_228, %c5_229, %c2_230] : memref<2x22x22xf32, #tpu.memory_space<vmem>>, vector<1x16x16xf32>
    %387 = vector.shape_cast %386 : vector<1x16x16xf32> to vector<16x16xf32>
    %388 = vector.broadcast %385 : f32 to vector<16x16xf32>
    %389 = arith.mulf %388, %387 : vector<16x16xf32>
    %390 = arith.addf %384, %389 : vector<16x16xf32>
    %c38 = arith.constant 38 : index
    %391 = memref.load %arg4[%c38] : memref<98xf32, #tpu.memory_space<smem>>
    %c0_231 = arith.constant 0 : index
    %c5_232 = arith.constant 5 : index
    %c3_233 = arith.constant 3 : index
    %392 = vector.load %arg6[%c0_231, %c5_232, %c3_233] : memref<2x22x22xf32, #tpu.memory_space<vmem>>, vector<1x16x16xf32>
    %393 = vector.shape_cast %392 : vector<1x16x16xf32> to vector<16x16xf32>
    %394 = vector.broadcast %391 : f32 to vector<16x16xf32>
    %395 = arith.mulf %394, %393 : vector<16x16xf32>
    %396 = arith.addf %390, %395 : vector<16x16xf32>
    %c39 = arith.constant 39 : index
    %397 = memref.load %arg4[%c39] : memref<98xf32, #tpu.memory_space<smem>>
    %c0_234 = arith.constant 0 : index
    %c5_235 = arith.constant 5 : index
    %c4_236 = arith.constant 4 : index
    %398 = vector.load %arg6[%c0_234, %c5_235, %c4_236] : memref<2x22x22xf32, #tpu.memory_space<vmem>>, vector<1x16x16xf32>
    %399 = vector.shape_cast %398 : vector<1x16x16xf32> to vector<16x16xf32>
    %400 = vector.broadcast %397 : f32 to vector<16x16xf32>
    %401 = arith.mulf %400, %399 : vector<16x16xf32>
    %402 = arith.addf %396, %401 : vector<16x16xf32>
    %c40 = arith.constant 40 : index
    %403 = memref.load %arg4[%c40] : memref<98xf32, #tpu.memory_space<smem>>
    %c0_237 = arith.constant 0 : index
    %c5_238 = arith.constant 5 : index
    %c5_239 = arith.constant 5 : index
    %404 = vector.load %arg6[%c0_237, %c5_238, %c5_239] : memref<2x22x22xf32, #tpu.memory_space<vmem>>, vector<1x16x16xf32>
    %405 = vector.shape_cast %404 : vector<1x16x16xf32> to vector<16x16xf32>
    %406 = vector.broadcast %403 : f32 to vector<16x16xf32>
    %407 = arith.mulf %406, %405 : vector<16x16xf32>
    %408 = arith.addf %402, %407 : vector<16x16xf32>
    %c41 = arith.constant 41 : index
    %409 = memref.load %arg4[%c41] : memref<98xf32, #tpu.memory_space<smem>>
    %c0_240 = arith.constant 0 : index
    %c5_241 = arith.constant 5 : index
    %c6_242 = arith.constant 6 : index
    %410 = vector.load %arg6[%c0_240, %c5_241, %c6_242] : memref<2x22x22xf32, #tpu.memory_space<vmem>>, vector<1x16x16xf32>
    %411 = vector.shape_cast %410 : vector<1x16x16xf32> to vector<16x16xf32>
    %412 = vector.broadcast %409 : f32 to vector<16x16xf32>
    %413 = arith.mulf %412, %411 : vector<16x16xf32>
    %414 = arith.addf %408, %413 : vector<16x16xf32>
    %c42 = arith.constant 42 : index
    %415 = memref.load %arg4[%c42] : memref<98xf32, #tpu.memory_space<smem>>
    %c0_243 = arith.constant 0 : index
    %c6_244 = arith.constant 6 : index
    %c0_245 = arith.constant 0 : index
    %416 = vector.load %arg6[%c0_243, %c6_244, %c0_245] : memref<2x22x22xf32, #tpu.memory_space<vmem>>, vector<1x16x16xf32>
    %417 = vector.shape_cast %416 : vector<1x16x16xf32> to vector<16x16xf32>
    %418 = vector.broadcast %415 : f32 to vector<16x16xf32>
    %419 = arith.mulf %418, %417 : vector<16x16xf32>
    %420 = arith.addf %414, %419 : vector<16x16xf32>
    %c43 = arith.constant 43 : index
    %421 = memref.load %arg4[%c43] : memref<98xf32, #tpu.memory_space<smem>>
    %c0_246 = arith.constant 0 : index
    %c6_247 = arith.constant 6 : index
    %c1_248 = arith.constant 1 : index
    %422 = vector.load %arg6[%c0_246, %c6_247, %c1_248] : memref<2x22x22xf32, #tpu.memory_space<vmem>>, vector<1x16x16xf32>
    %423 = vector.shape_cast %422 : vector<1x16x16xf32> to vector<16x16xf32>
    %424 = vector.broadcast %421 : f32 to vector<16x16xf32>
    %425 = arith.mulf %424, %423 : vector<16x16xf32>
    %426 = arith.addf %420, %425 : vector<16x16xf32>
    %c44 = arith.constant 44 : index
    %427 = memref.load %arg4[%c44] : memref<98xf32, #tpu.memory_space<smem>>
    %c0_249 = arith.constant 0 : index
    %c6_250 = arith.constant 6 : index
    %c2_251 = arith.constant 2 : index
    %428 = vector.load %arg6[%c0_249, %c6_250, %c2_251] : memref<2x22x22xf32, #tpu.memory_space<vmem>>, vector<1x16x16xf32>
    %429 = vector.shape_cast %428 : vector<1x16x16xf32> to vector<16x16xf32>
    %430 = vector.broadcast %427 : f32 to vector<16x16xf32>
    %431 = arith.mulf %430, %429 : vector<16x16xf32>
    %432 = arith.addf %426, %431 : vector<16x16xf32>
    %c45 = arith.constant 45 : index
    %433 = memref.load %arg4[%c45] : memref<98xf32, #tpu.memory_space<smem>>
    %c0_252 = arith.constant 0 : index
    %c6_253 = arith.constant 6 : index
    %c3_254 = arith.constant 3 : index
    %434 = vector.load %arg6[%c0_252, %c6_253, %c3_254] : memref<2x22x22xf32, #tpu.memory_space<vmem>>, vector<1x16x16xf32>
    %435 = vector.shape_cast %434 : vector<1x16x16xf32> to vector<16x16xf32>
    %436 = vector.broadcast %433 : f32 to vector<16x16xf32>
    %437 = arith.mulf %436, %435 : vector<16x16xf32>
    %438 = arith.addf %432, %437 : vector<16x16xf32>
    %c46 = arith.constant 46 : index
    %439 = memref.load %arg4[%c46] : memref<98xf32, #tpu.memory_space<smem>>
    %c0_255 = arith.constant 0 : index
    %c6_256 = arith.constant 6 : index
    %c4_257 = arith.constant 4 : index
    %440 = vector.load %arg6[%c0_255, %c6_256, %c4_257] : memref<2x22x22xf32, #tpu.memory_space<vmem>>, vector<1x16x16xf32>
    %441 = vector.shape_cast %440 : vector<1x16x16xf32> to vector<16x16xf32>
    %442 = vector.broadcast %439 : f32 to vector<16x16xf32>
    %443 = arith.mulf %442, %441 : vector<16x16xf32>
    %444 = arith.addf %438, %443 : vector<16x16xf32>
    %c47 = arith.constant 47 : index
    %445 = memref.load %arg4[%c47] : memref<98xf32, #tpu.memory_space<smem>>
    %c0_258 = arith.constant 0 : index
    %c6_259 = arith.constant 6 : index
    %c5_260 = arith.constant 5 : index
    %446 = vector.load %arg6[%c0_258, %c6_259, %c5_260] : memref<2x22x22xf32, #tpu.memory_space<vmem>>, vector<1x16x16xf32>
    %447 = vector.shape_cast %446 : vector<1x16x16xf32> to vector<16x16xf32>
    %448 = vector.broadcast %445 : f32 to vector<16x16xf32>
    %449 = arith.mulf %448, %447 : vector<16x16xf32>
    %450 = arith.addf %444, %449 : vector<16x16xf32>
    %c48 = arith.constant 48 : index
    %451 = memref.load %arg4[%c48] : memref<98xf32, #tpu.memory_space<smem>>
    %c0_261 = arith.constant 0 : index
    %c6_262 = arith.constant 6 : index
    %c6_263 = arith.constant 6 : index
    %452 = vector.load %arg6[%c0_261, %c6_262, %c6_263] : memref<2x22x22xf32, #tpu.memory_space<vmem>>, vector<1x16x16xf32>
    %453 = vector.shape_cast %452 : vector<1x16x16xf32> to vector<16x16xf32>
    %454 = vector.broadcast %451 : f32 to vector<16x16xf32>
    %455 = arith.mulf %454, %453 : vector<16x16xf32>
    %456 = arith.addf %450, %455 : vector<16x16xf32>
    %c49 = arith.constant 49 : index
    %457 = memref.load %arg4[%c49] : memref<98xf32, #tpu.memory_space<smem>>
    %c1_264 = arith.constant 1 : index
    %c0_265 = arith.constant 0 : index
    %c0_266 = arith.constant 0 : index
    %458 = vector.load %arg6[%c1_264, %c0_265, %c0_266] : memref<2x22x22xf32, #tpu.memory_space<vmem>>, vector<1x16x16xf32>
    %459 = vector.shape_cast %458 : vector<1x16x16xf32> to vector<16x16xf32>
    %460 = vector.broadcast %457 : f32 to vector<16x16xf32>
    %461 = arith.mulf %460, %459 : vector<16x16xf32>
    %462 = arith.addf %456, %461 : vector<16x16xf32>
    %c50 = arith.constant 50 : index
    %463 = memref.load %arg4[%c50] : memref<98xf32, #tpu.memory_space<smem>>
    %c1_267 = arith.constant 1 : index
    %c0_268 = arith.constant 0 : index
    %c1_269 = arith.constant 1 : index
    %464 = vector.load %arg6[%c1_267, %c0_268, %c1_269] : memref<2x22x22xf32, #tpu.memory_space<vmem>>, vector<1x16x16xf32>
    %465 = vector.shape_cast %464 : vector<1x16x16xf32> to vector<16x16xf32>
    %466 = vector.broadcast %463 : f32 to vector<16x16xf32>
    %467 = arith.mulf %466, %465 : vector<16x16xf32>
    %468 = arith.addf %462, %467 : vector<16x16xf32>
    %c51 = arith.constant 51 : index
    %469 = memref.load %arg4[%c51] : memref<98xf32, #tpu.memory_space<smem>>
    %c1_270 = arith.constant 1 : index
    %c0_271 = arith.constant 0 : index
    %c2_272 = arith.constant 2 : index
    %470 = vector.load %arg6[%c1_270, %c0_271, %c2_272] : memref<2x22x22xf32, #tpu.memory_space<vmem>>, vector<1x16x16xf32>
    %471 = vector.shape_cast %470 : vector<1x16x16xf32> to vector<16x16xf32>
    %472 = vector.broadcast %469 : f32 to vector<16x16xf32>
    %473 = arith.mulf %472, %471 : vector<16x16xf32>
    %474 = arith.addf %468, %473 : vector<16x16xf32>
    %c52 = arith.constant 52 : index
    %475 = memref.load %arg4[%c52] : memref<98xf32, #tpu.memory_space<smem>>
    %c1_273 = arith.constant 1 : index
    %c0_274 = arith.constant 0 : index
    %c3_275 = arith.constant 3 : index
    %476 = vector.load %arg6[%c1_273, %c0_274, %c3_275] : memref<2x22x22xf32, #tpu.memory_space<vmem>>, vector<1x16x16xf32>
    %477 = vector.shape_cast %476 : vector<1x16x16xf32> to vector<16x16xf32>
    %478 = vector.broadcast %475 : f32 to vector<16x16xf32>
    %479 = arith.mulf %478, %477 : vector<16x16xf32>
    %480 = arith.addf %474, %479 : vector<16x16xf32>
    %c53 = arith.constant 53 : index
    %481 = memref.load %arg4[%c53] : memref<98xf32, #tpu.memory_space<smem>>
    %c1_276 = arith.constant 1 : index
    %c0_277 = arith.constant 0 : index
    %c4_278 = arith.constant 4 : index
    %482 = vector.load %arg6[%c1_276, %c0_277, %c4_278] : memref<2x22x22xf32, #tpu.memory_space<vmem>>, vector<1x16x16xf32>
    %483 = vector.shape_cast %482 : vector<1x16x16xf32> to vector<16x16xf32>
    %484 = vector.broadcast %481 : f32 to vector<16x16xf32>
    %485 = arith.mulf %484, %483 : vector<16x16xf32>
    %486 = arith.addf %480, %485 : vector<16x16xf32>
    %c54 = arith.constant 54 : index
    %487 = memref.load %arg4[%c54] : memref<98xf32, #tpu.memory_space<smem>>
    %c1_279 = arith.constant 1 : index
    %c0_280 = arith.constant 0 : index
    %c5_281 = arith.constant 5 : index
    %488 = vector.load %arg6[%c1_279, %c0_280, %c5_281] : memref<2x22x22xf32, #tpu.memory_space<vmem>>, vector<1x16x16xf32>
    %489 = vector.shape_cast %488 : vector<1x16x16xf32> to vector<16x16xf32>
    %490 = vector.broadcast %487 : f32 to vector<16x16xf32>
    %491 = arith.mulf %490, %489 : vector<16x16xf32>
    %492 = arith.addf %486, %491 : vector<16x16xf32>
    %c55 = arith.constant 55 : index
    %493 = memref.load %arg4[%c55] : memref<98xf32, #tpu.memory_space<smem>>
    %c1_282 = arith.constant 1 : index
    %c0_283 = arith.constant 0 : index
    %c6_284 = arith.constant 6 : index
    %494 = vector.load %arg6[%c1_282, %c0_283, %c6_284] : memref<2x22x22xf32, #tpu.memory_space<vmem>>, vector<1x16x16xf32>
    %495 = vector.shape_cast %494 : vector<1x16x16xf32> to vector<16x16xf32>
    %496 = vector.broadcast %493 : f32 to vector<16x16xf32>
    %497 = arith.mulf %496, %495 : vector<16x16xf32>
    %498 = arith.addf %492, %497 : vector<16x16xf32>
    %c56 = arith.constant 56 : index
    %499 = memref.load %arg4[%c56] : memref<98xf32, #tpu.memory_space<smem>>
    %c1_285 = arith.constant 1 : index
    %c1_286 = arith.constant 1 : index
    %c0_287 = arith.constant 0 : index
    %500 = vector.load %arg6[%c1_285, %c1_286, %c0_287] : memref<2x22x22xf32, #tpu.memory_space<vmem>>, vector<1x16x16xf32>
    %501 = vector.shape_cast %500 : vector<1x16x16xf32> to vector<16x16xf32>
    %502 = vector.broadcast %499 : f32 to vector<16x16xf32>
    %503 = arith.mulf %502, %501 : vector<16x16xf32>
    %504 = arith.addf %498, %503 : vector<16x16xf32>
    %c57 = arith.constant 57 : index
    %505 = memref.load %arg4[%c57] : memref<98xf32, #tpu.memory_space<smem>>
    %c1_288 = arith.constant 1 : index
    %c1_289 = arith.constant 1 : index
    %c1_290 = arith.constant 1 : index
    %506 = vector.load %arg6[%c1_288, %c1_289, %c1_290] : memref<2x22x22xf32, #tpu.memory_space<vmem>>, vector<1x16x16xf32>
    %507 = vector.shape_cast %506 : vector<1x16x16xf32> to vector<16x16xf32>
    %508 = vector.broadcast %505 : f32 to vector<16x16xf32>
    %509 = arith.mulf %508, %507 : vector<16x16xf32>
    %510 = arith.addf %504, %509 : vector<16x16xf32>
    %c58 = arith.constant 58 : index
    %511 = memref.load %arg4[%c58] : memref<98xf32, #tpu.memory_space<smem>>
    %c1_291 = arith.constant 1 : index
    %c1_292 = arith.constant 1 : index
    %c2_293 = arith.constant 2 : index
    %512 = vector.load %arg6[%c1_291, %c1_292, %c2_293] : memref<2x22x22xf32, #tpu.memory_space<vmem>>, vector<1x16x16xf32>
    %513 = vector.shape_cast %512 : vector<1x16x16xf32> to vector<16x16xf32>
    %514 = vector.broadcast %511 : f32 to vector<16x16xf32>
    %515 = arith.mulf %514, %513 : vector<16x16xf32>
    %516 = arith.addf %510, %515 : vector<16x16xf32>
    %c59 = arith.constant 59 : index
    %517 = memref.load %arg4[%c59] : memref<98xf32, #tpu.memory_space<smem>>
    %c1_294 = arith.constant 1 : index
    %c1_295 = arith.constant 1 : index
    %c3_296 = arith.constant 3 : index
    %518 = vector.load %arg6[%c1_294, %c1_295, %c3_296] : memref<2x22x22xf32, #tpu.memory_space<vmem>>, vector<1x16x16xf32>
    %519 = vector.shape_cast %518 : vector<1x16x16xf32> to vector<16x16xf32>
    %520 = vector.broadcast %517 : f32 to vector<16x16xf32>
    %521 = arith.mulf %520, %519 : vector<16x16xf32>
    %522 = arith.addf %516, %521 : vector<16x16xf32>
    %c60 = arith.constant 60 : index
    %523 = memref.load %arg4[%c60] : memref<98xf32, #tpu.memory_space<smem>>
    %c1_297 = arith.constant 1 : index
    %c1_298 = arith.constant 1 : index
    %c4_299 = arith.constant 4 : index
    %524 = vector.load %arg6[%c1_297, %c1_298, %c4_299] : memref<2x22x22xf32, #tpu.memory_space<vmem>>, vector<1x16x16xf32>
    %525 = vector.shape_cast %524 : vector<1x16x16xf32> to vector<16x16xf32>
    %526 = vector.broadcast %523 : f32 to vector<16x16xf32>
    %527 = arith.mulf %526, %525 : vector<16x16xf32>
    %528 = arith.addf %522, %527 : vector<16x16xf32>
    %c61 = arith.constant 61 : index
    %529 = memref.load %arg4[%c61] : memref<98xf32, #tpu.memory_space<smem>>
    %c1_300 = arith.constant 1 : index
    %c1_301 = arith.constant 1 : index
    %c5_302 = arith.constant 5 : index
    %530 = vector.load %arg6[%c1_300, %c1_301, %c5_302] : memref<2x22x22xf32, #tpu.memory_space<vmem>>, vector<1x16x16xf32>
    %531 = vector.shape_cast %530 : vector<1x16x16xf32> to vector<16x16xf32>
    %532 = vector.broadcast %529 : f32 to vector<16x16xf32>
    %533 = arith.mulf %532, %531 : vector<16x16xf32>
    %534 = arith.addf %528, %533 : vector<16x16xf32>
    %c62 = arith.constant 62 : index
    %535 = memref.load %arg4[%c62] : memref<98xf32, #tpu.memory_space<smem>>
    %c1_303 = arith.constant 1 : index
    %c1_304 = arith.constant 1 : index
    %c6_305 = arith.constant 6 : index
    %536 = vector.load %arg6[%c1_303, %c1_304, %c6_305] : memref<2x22x22xf32, #tpu.memory_space<vmem>>, vector<1x16x16xf32>
    %537 = vector.shape_cast %536 : vector<1x16x16xf32> to vector<16x16xf32>
    %538 = vector.broadcast %535 : f32 to vector<16x16xf32>
    %539 = arith.mulf %538, %537 : vector<16x16xf32>
    %540 = arith.addf %534, %539 : vector<16x16xf32>
    %c63 = arith.constant 63 : index
    %541 = memref.load %arg4[%c63] : memref<98xf32, #tpu.memory_space<smem>>
    %c1_306 = arith.constant 1 : index
    %c2_307 = arith.constant 2 : index
    %c0_308 = arith.constant 0 : index
    %542 = vector.load %arg6[%c1_306, %c2_307, %c0_308] : memref<2x22x22xf32, #tpu.memory_space<vmem>>, vector<1x16x16xf32>
    %543 = vector.shape_cast %542 : vector<1x16x16xf32> to vector<16x16xf32>
    %544 = vector.broadcast %541 : f32 to vector<16x16xf32>
    %545 = arith.mulf %544, %543 : vector<16x16xf32>
    %546 = arith.addf %540, %545 : vector<16x16xf32>
    %c64 = arith.constant 64 : index
    %547 = memref.load %arg4[%c64] : memref<98xf32, #tpu.memory_space<smem>>
    %c1_309 = arith.constant 1 : index
    %c2_310 = arith.constant 2 : index
    %c1_311 = arith.constant 1 : index
    %548 = vector.load %arg6[%c1_309, %c2_310, %c1_311] : memref<2x22x22xf32, #tpu.memory_space<vmem>>, vector<1x16x16xf32>
    %549 = vector.shape_cast %548 : vector<1x16x16xf32> to vector<16x16xf32>
    %550 = vector.broadcast %547 : f32 to vector<16x16xf32>
    %551 = arith.mulf %550, %549 : vector<16x16xf32>
    %552 = arith.addf %546, %551 : vector<16x16xf32>
    %c65 = arith.constant 65 : index
    %553 = memref.load %arg4[%c65] : memref<98xf32, #tpu.memory_space<smem>>
    %c1_312 = arith.constant 1 : index
    %c2_313 = arith.constant 2 : index
    %c2_314 = arith.constant 2 : index
    %554 = vector.load %arg6[%c1_312, %c2_313, %c2_314] : memref<2x22x22xf32, #tpu.memory_space<vmem>>, vector<1x16x16xf32>
    %555 = vector.shape_cast %554 : vector<1x16x16xf32> to vector<16x16xf32>
    %556 = vector.broadcast %553 : f32 to vector<16x16xf32>
    %557 = arith.mulf %556, %555 : vector<16x16xf32>
    %558 = arith.addf %552, %557 : vector<16x16xf32>
    %c66 = arith.constant 66 : index
    %559 = memref.load %arg4[%c66] : memref<98xf32, #tpu.memory_space<smem>>
    %c1_315 = arith.constant 1 : index
    %c2_316 = arith.constant 2 : index
    %c3_317 = arith.constant 3 : index
    %560 = vector.load %arg6[%c1_315, %c2_316, %c3_317] : memref<2x22x22xf32, #tpu.memory_space<vmem>>, vector<1x16x16xf32>
    %561 = vector.shape_cast %560 : vector<1x16x16xf32> to vector<16x16xf32>
    %562 = vector.broadcast %559 : f32 to vector<16x16xf32>
    %563 = arith.mulf %562, %561 : vector<16x16xf32>
    %564 = arith.addf %558, %563 : vector<16x16xf32>
    %c67 = arith.constant 67 : index
    %565 = memref.load %arg4[%c67] : memref<98xf32, #tpu.memory_space<smem>>
    %c1_318 = arith.constant 1 : index
    %c2_319 = arith.constant 2 : index
    %c4_320 = arith.constant 4 : index
    %566 = vector.load %arg6[%c1_318, %c2_319, %c4_320] : memref<2x22x22xf32, #tpu.memory_space<vmem>>, vector<1x16x16xf32>
    %567 = vector.shape_cast %566 : vector<1x16x16xf32> to vector<16x16xf32>
    %568 = vector.broadcast %565 : f32 to vector<16x16xf32>
    %569 = arith.mulf %568, %567 : vector<16x16xf32>
    %570 = arith.addf %564, %569 : vector<16x16xf32>
    %c68 = arith.constant 68 : index
    %571 = memref.load %arg4[%c68] : memref<98xf32, #tpu.memory_space<smem>>
    %c1_321 = arith.constant 1 : index
    %c2_322 = arith.constant 2 : index
    %c5_323 = arith.constant 5 : index
    %572 = vector.load %arg6[%c1_321, %c2_322, %c5_323] : memref<2x22x22xf32, #tpu.memory_space<vmem>>, vector<1x16x16xf32>
    %573 = vector.shape_cast %572 : vector<1x16x16xf32> to vector<16x16xf32>
    %574 = vector.broadcast %571 : f32 to vector<16x16xf32>
    %575 = arith.mulf %574, %573 : vector<16x16xf32>
    %576 = arith.addf %570, %575 : vector<16x16xf32>
    %c69 = arith.constant 69 : index
    %577 = memref.load %arg4[%c69] : memref<98xf32, #tpu.memory_space<smem>>
    %c1_324 = arith.constant 1 : index
    %c2_325 = arith.constant 2 : index
    %c6_326 = arith.constant 6 : index
    %578 = vector.load %arg6[%c1_324, %c2_325, %c6_326] : memref<2x22x22xf32, #tpu.memory_space<vmem>>, vector<1x16x16xf32>
    %579 = vector.shape_cast %578 : vector<1x16x16xf32> to vector<16x16xf32>
    %580 = vector.broadcast %577 : f32 to vector<16x16xf32>
    %581 = arith.mulf %580, %579 : vector<16x16xf32>
    %582 = arith.addf %576, %581 : vector<16x16xf32>
    %c70 = arith.constant 70 : index
    %583 = memref.load %arg4[%c70] : memref<98xf32, #tpu.memory_space<smem>>
    %c1_327 = arith.constant 1 : index
    %c3_328 = arith.constant 3 : index
    %c0_329 = arith.constant 0 : index
    %584 = vector.load %arg6[%c1_327, %c3_328, %c0_329] : memref<2x22x22xf32, #tpu.memory_space<vmem>>, vector<1x16x16xf32>
    %585 = vector.shape_cast %584 : vector<1x16x16xf32> to vector<16x16xf32>
    %586 = vector.broadcast %583 : f32 to vector<16x16xf32>
    %587 = arith.mulf %586, %585 : vector<16x16xf32>
    %588 = arith.addf %582, %587 : vector<16x16xf32>
    %c71 = arith.constant 71 : index
    %589 = memref.load %arg4[%c71] : memref<98xf32, #tpu.memory_space<smem>>
    %c1_330 = arith.constant 1 : index
    %c3_331 = arith.constant 3 : index
    %c1_332 = arith.constant 1 : index
    %590 = vector.load %arg6[%c1_330, %c3_331, %c1_332] : memref<2x22x22xf32, #tpu.memory_space<vmem>>, vector<1x16x16xf32>
    %591 = vector.shape_cast %590 : vector<1x16x16xf32> to vector<16x16xf32>
    %592 = vector.broadcast %589 : f32 to vector<16x16xf32>
    %593 = arith.mulf %592, %591 : vector<16x16xf32>
    %594 = arith.addf %588, %593 : vector<16x16xf32>
    %c72 = arith.constant 72 : index
    %595 = memref.load %arg4[%c72] : memref<98xf32, #tpu.memory_space<smem>>
    %c1_333 = arith.constant 1 : index
    %c3_334 = arith.constant 3 : index
    %c2_335 = arith.constant 2 : index
    %596 = vector.load %arg6[%c1_333, %c3_334, %c2_335] : memref<2x22x22xf32, #tpu.memory_space<vmem>>, vector<1x16x16xf32>
    %597 = vector.shape_cast %596 : vector<1x16x16xf32> to vector<16x16xf32>
    %598 = vector.broadcast %595 : f32 to vector<16x16xf32>
    %599 = arith.mulf %598, %597 : vector<16x16xf32>
    %600 = arith.addf %594, %599 : vector<16x16xf32>
    %c73 = arith.constant 73 : index
    %601 = memref.load %arg4[%c73] : memref<98xf32, #tpu.memory_space<smem>>
    %c1_336 = arith.constant 1 : index
    %c3_337 = arith.constant 3 : index
    %c3_338 = arith.constant 3 : index
    %602 = vector.load %arg6[%c1_336, %c3_337, %c3_338] : memref<2x22x22xf32, #tpu.memory_space<vmem>>, vector<1x16x16xf32>
    %603 = vector.shape_cast %602 : vector<1x16x16xf32> to vector<16x16xf32>
    %604 = vector.broadcast %601 : f32 to vector<16x16xf32>
    %605 = arith.mulf %604, %603 : vector<16x16xf32>
    %606 = arith.addf %600, %605 : vector<16x16xf32>
    %c74 = arith.constant 74 : index
    %607 = memref.load %arg4[%c74] : memref<98xf32, #tpu.memory_space<smem>>
    %c1_339 = arith.constant 1 : index
    %c3_340 = arith.constant 3 : index
    %c4_341 = arith.constant 4 : index
    %608 = vector.load %arg6[%c1_339, %c3_340, %c4_341] : memref<2x22x22xf32, #tpu.memory_space<vmem>>, vector<1x16x16xf32>
    %609 = vector.shape_cast %608 : vector<1x16x16xf32> to vector<16x16xf32>
    %610 = vector.broadcast %607 : f32 to vector<16x16xf32>
    %611 = arith.mulf %610, %609 : vector<16x16xf32>
    %612 = arith.addf %606, %611 : vector<16x16xf32>
    %c75 = arith.constant 75 : index
    %613 = memref.load %arg4[%c75] : memref<98xf32, #tpu.memory_space<smem>>
    %c1_342 = arith.constant 1 : index
    %c3_343 = arith.constant 3 : index
    %c5_344 = arith.constant 5 : index
    %614 = vector.load %arg6[%c1_342, %c3_343, %c5_344] : memref<2x22x22xf32, #tpu.memory_space<vmem>>, vector<1x16x16xf32>
    %615 = vector.shape_cast %614 : vector<1x16x16xf32> to vector<16x16xf32>
    %616 = vector.broadcast %613 : f32 to vector<16x16xf32>
    %617 = arith.mulf %616, %615 : vector<16x16xf32>
    %618 = arith.addf %612, %617 : vector<16x16xf32>
    %c76 = arith.constant 76 : index
    %619 = memref.load %arg4[%c76] : memref<98xf32, #tpu.memory_space<smem>>
    %c1_345 = arith.constant 1 : index
    %c3_346 = arith.constant 3 : index
    %c6_347 = arith.constant 6 : index
    %620 = vector.load %arg6[%c1_345, %c3_346, %c6_347] : memref<2x22x22xf32, #tpu.memory_space<vmem>>, vector<1x16x16xf32>
    %621 = vector.shape_cast %620 : vector<1x16x16xf32> to vector<16x16xf32>
    %622 = vector.broadcast %619 : f32 to vector<16x16xf32>
    %623 = arith.mulf %622, %621 : vector<16x16xf32>
    %624 = arith.addf %618, %623 : vector<16x16xf32>
    %c77 = arith.constant 77 : index
    %625 = memref.load %arg4[%c77] : memref<98xf32, #tpu.memory_space<smem>>
    %c1_348 = arith.constant 1 : index
    %c4_349 = arith.constant 4 : index
    %c0_350 = arith.constant 0 : index
    %626 = vector.load %arg6[%c1_348, %c4_349, %c0_350] : memref<2x22x22xf32, #tpu.memory_space<vmem>>, vector<1x16x16xf32>
    %627 = vector.shape_cast %626 : vector<1x16x16xf32> to vector<16x16xf32>
    %628 = vector.broadcast %625 : f32 to vector<16x16xf32>
    %629 = arith.mulf %628, %627 : vector<16x16xf32>
    %630 = arith.addf %624, %629 : vector<16x16xf32>
    %c78 = arith.constant 78 : index
    %631 = memref.load %arg4[%c78] : memref<98xf32, #tpu.memory_space<smem>>
    %c1_351 = arith.constant 1 : index
    %c4_352 = arith.constant 4 : index
    %c1_353 = arith.constant 1 : index
    %632 = vector.load %arg6[%c1_351, %c4_352, %c1_353] : memref<2x22x22xf32, #tpu.memory_space<vmem>>, vector<1x16x16xf32>
    %633 = vector.shape_cast %632 : vector<1x16x16xf32> to vector<16x16xf32>
    %634 = vector.broadcast %631 : f32 to vector<16x16xf32>
    %635 = arith.mulf %634, %633 : vector<16x16xf32>
    %636 = arith.addf %630, %635 : vector<16x16xf32>
    %c79 = arith.constant 79 : index
    %637 = memref.load %arg4[%c79] : memref<98xf32, #tpu.memory_space<smem>>
    %c1_354 = arith.constant 1 : index
    %c4_355 = arith.constant 4 : index
    %c2_356 = arith.constant 2 : index
    %638 = vector.load %arg6[%c1_354, %c4_355, %c2_356] : memref<2x22x22xf32, #tpu.memory_space<vmem>>, vector<1x16x16xf32>
    %639 = vector.shape_cast %638 : vector<1x16x16xf32> to vector<16x16xf32>
    %640 = vector.broadcast %637 : f32 to vector<16x16xf32>
    %641 = arith.mulf %640, %639 : vector<16x16xf32>
    %642 = arith.addf %636, %641 : vector<16x16xf32>
    %c80 = arith.constant 80 : index
    %643 = memref.load %arg4[%c80] : memref<98xf32, #tpu.memory_space<smem>>
    %c1_357 = arith.constant 1 : index
    %c4_358 = arith.constant 4 : index
    %c3_359 = arith.constant 3 : index
    %644 = vector.load %arg6[%c1_357, %c4_358, %c3_359] : memref<2x22x22xf32, #tpu.memory_space<vmem>>, vector<1x16x16xf32>
    %645 = vector.shape_cast %644 : vector<1x16x16xf32> to vector<16x16xf32>
    %646 = vector.broadcast %643 : f32 to vector<16x16xf32>
    %647 = arith.mulf %646, %645 : vector<16x16xf32>
    %648 = arith.addf %642, %647 : vector<16x16xf32>
    %c81 = arith.constant 81 : index
    %649 = memref.load %arg4[%c81] : memref<98xf32, #tpu.memory_space<smem>>
    %c1_360 = arith.constant 1 : index
    %c4_361 = arith.constant 4 : index
    %c4_362 = arith.constant 4 : index
    %650 = vector.load %arg6[%c1_360, %c4_361, %c4_362] : memref<2x22x22xf32, #tpu.memory_space<vmem>>, vector<1x16x16xf32>
    %651 = vector.shape_cast %650 : vector<1x16x16xf32> to vector<16x16xf32>
    %652 = vector.broadcast %649 : f32 to vector<16x16xf32>
    %653 = arith.mulf %652, %651 : vector<16x16xf32>
    %654 = arith.addf %648, %653 : vector<16x16xf32>
    %c82 = arith.constant 82 : index
    %655 = memref.load %arg4[%c82] : memref<98xf32, #tpu.memory_space<smem>>
    %c1_363 = arith.constant 1 : index
    %c4_364 = arith.constant 4 : index
    %c5_365 = arith.constant 5 : index
    %656 = vector.load %arg6[%c1_363, %c4_364, %c5_365] : memref<2x22x22xf32, #tpu.memory_space<vmem>>, vector<1x16x16xf32>
    %657 = vector.shape_cast %656 : vector<1x16x16xf32> to vector<16x16xf32>
    %658 = vector.broadcast %655 : f32 to vector<16x16xf32>
    %659 = arith.mulf %658, %657 : vector<16x16xf32>
    %660 = arith.addf %654, %659 : vector<16x16xf32>
    %c83 = arith.constant 83 : index
    %661 = memref.load %arg4[%c83] : memref<98xf32, #tpu.memory_space<smem>>
    %c1_366 = arith.constant 1 : index
    %c4_367 = arith.constant 4 : index
    %c6_368 = arith.constant 6 : index
    %662 = vector.load %arg6[%c1_366, %c4_367, %c6_368] : memref<2x22x22xf32, #tpu.memory_space<vmem>>, vector<1x16x16xf32>
    %663 = vector.shape_cast %662 : vector<1x16x16xf32> to vector<16x16xf32>
    %664 = vector.broadcast %661 : f32 to vector<16x16xf32>
    %665 = arith.mulf %664, %663 : vector<16x16xf32>
    %666 = arith.addf %660, %665 : vector<16x16xf32>
    %c84 = arith.constant 84 : index
    %667 = memref.load %arg4[%c84] : memref<98xf32, #tpu.memory_space<smem>>
    %c1_369 = arith.constant 1 : index
    %c5_370 = arith.constant 5 : index
    %c0_371 = arith.constant 0 : index
    %668 = vector.load %arg6[%c1_369, %c5_370, %c0_371] : memref<2x22x22xf32, #tpu.memory_space<vmem>>, vector<1x16x16xf32>
    %669 = vector.shape_cast %668 : vector<1x16x16xf32> to vector<16x16xf32>
    %670 = vector.broadcast %667 : f32 to vector<16x16xf32>
    %671 = arith.mulf %670, %669 : vector<16x16xf32>
    %672 = arith.addf %666, %671 : vector<16x16xf32>
    %c85 = arith.constant 85 : index
    %673 = memref.load %arg4[%c85] : memref<98xf32, #tpu.memory_space<smem>>
    %c1_372 = arith.constant 1 : index
    %c5_373 = arith.constant 5 : index
    %c1_374 = arith.constant 1 : index
    %674 = vector.load %arg6[%c1_372, %c5_373, %c1_374] : memref<2x22x22xf32, #tpu.memory_space<vmem>>, vector<1x16x16xf32>
    %675 = vector.shape_cast %674 : vector<1x16x16xf32> to vector<16x16xf32>
    %676 = vector.broadcast %673 : f32 to vector<16x16xf32>
    %677 = arith.mulf %676, %675 : vector<16x16xf32>
    %678 = arith.addf %672, %677 : vector<16x16xf32>
    %c86 = arith.constant 86 : index
    %679 = memref.load %arg4[%c86] : memref<98xf32, #tpu.memory_space<smem>>
    %c1_375 = arith.constant 1 : index
    %c5_376 = arith.constant 5 : index
    %c2_377 = arith.constant 2 : index
    %680 = vector.load %arg6[%c1_375, %c5_376, %c2_377] : memref<2x22x22xf32, #tpu.memory_space<vmem>>, vector<1x16x16xf32>
    %681 = vector.shape_cast %680 : vector<1x16x16xf32> to vector<16x16xf32>
    %682 = vector.broadcast %679 : f32 to vector<16x16xf32>
    %683 = arith.mulf %682, %681 : vector<16x16xf32>
    %684 = arith.addf %678, %683 : vector<16x16xf32>
    %c87 = arith.constant 87 : index
    %685 = memref.load %arg4[%c87] : memref<98xf32, #tpu.memory_space<smem>>
    %c1_378 = arith.constant 1 : index
    %c5_379 = arith.constant 5 : index
    %c3_380 = arith.constant 3 : index
    %686 = vector.load %arg6[%c1_378, %c5_379, %c3_380] : memref<2x22x22xf32, #tpu.memory_space<vmem>>, vector<1x16x16xf32>
    %687 = vector.shape_cast %686 : vector<1x16x16xf32> to vector<16x16xf32>
    %688 = vector.broadcast %685 : f32 to vector<16x16xf32>
    %689 = arith.mulf %688, %687 : vector<16x16xf32>
    %690 = arith.addf %684, %689 : vector<16x16xf32>
    %c88 = arith.constant 88 : index
    %691 = memref.load %arg4[%c88] : memref<98xf32, #tpu.memory_space<smem>>
    %c1_381 = arith.constant 1 : index
    %c5_382 = arith.constant 5 : index
    %c4_383 = arith.constant 4 : index
    %692 = vector.load %arg6[%c1_381, %c5_382, %c4_383] : memref<2x22x22xf32, #tpu.memory_space<vmem>>, vector<1x16x16xf32>
    %693 = vector.shape_cast %692 : vector<1x16x16xf32> to vector<16x16xf32>
    %694 = vector.broadcast %691 : f32 to vector<16x16xf32>
    %695 = arith.mulf %694, %693 : vector<16x16xf32>
    %696 = arith.addf %690, %695 : vector<16x16xf32>
    %c89 = arith.constant 89 : index
    %697 = memref.load %arg4[%c89] : memref<98xf32, #tpu.memory_space<smem>>
    %c1_384 = arith.constant 1 : index
    %c5_385 = arith.constant 5 : index
    %c5_386 = arith.constant 5 : index
    %698 = vector.load %arg6[%c1_384, %c5_385, %c5_386] : memref<2x22x22xf32, #tpu.memory_space<vmem>>, vector<1x16x16xf32>
    %699 = vector.shape_cast %698 : vector<1x16x16xf32> to vector<16x16xf32>
    %700 = vector.broadcast %697 : f32 to vector<16x16xf32>
    %701 = arith.mulf %700, %699 : vector<16x16xf32>
    %702 = arith.addf %696, %701 : vector<16x16xf32>
    %c90 = arith.constant 90 : index
    %703 = memref.load %arg4[%c90] : memref<98xf32, #tpu.memory_space<smem>>
    %c1_387 = arith.constant 1 : index
    %c5_388 = arith.constant 5 : index
    %c6_389 = arith.constant 6 : index
    %704 = vector.load %arg6[%c1_387, %c5_388, %c6_389] : memref<2x22x22xf32, #tpu.memory_space<vmem>>, vector<1x16x16xf32>
    %705 = vector.shape_cast %704 : vector<1x16x16xf32> to vector<16x16xf32>
    %706 = vector.broadcast %703 : f32 to vector<16x16xf32>
    %707 = arith.mulf %706, %705 : vector<16x16xf32>
    %708 = arith.addf %702, %707 : vector<16x16xf32>
    %c91 = arith.constant 91 : index
    %709 = memref.load %arg4[%c91] : memref<98xf32, #tpu.memory_space<smem>>
    %c1_390 = arith.constant 1 : index
    %c6_391 = arith.constant 6 : index
    %c0_392 = arith.constant 0 : index
    %710 = vector.load %arg6[%c1_390, %c6_391, %c0_392] : memref<2x22x22xf32, #tpu.memory_space<vmem>>, vector<1x16x16xf32>
    %711 = vector.shape_cast %710 : vector<1x16x16xf32> to vector<16x16xf32>
    %712 = vector.broadcast %709 : f32 to vector<16x16xf32>
    %713 = arith.mulf %712, %711 : vector<16x16xf32>
    %714 = arith.addf %708, %713 : vector<16x16xf32>
    %c92 = arith.constant 92 : index
    %715 = memref.load %arg4[%c92] : memref<98xf32, #tpu.memory_space<smem>>
    %c1_393 = arith.constant 1 : index
    %c6_394 = arith.constant 6 : index
    %c1_395 = arith.constant 1 : index
    %716 = vector.load %arg6[%c1_393, %c6_394, %c1_395] : memref<2x22x22xf32, #tpu.memory_space<vmem>>, vector<1x16x16xf32>
    %717 = vector.shape_cast %716 : vector<1x16x16xf32> to vector<16x16xf32>
    %718 = vector.broadcast %715 : f32 to vector<16x16xf32>
    %719 = arith.mulf %718, %717 : vector<16x16xf32>
    %720 = arith.addf %714, %719 : vector<16x16xf32>
    %c93 = arith.constant 93 : index
    %721 = memref.load %arg4[%c93] : memref<98xf32, #tpu.memory_space<smem>>
    %c1_396 = arith.constant 1 : index
    %c6_397 = arith.constant 6 : index
    %c2_398 = arith.constant 2 : index
    %722 = vector.load %arg6[%c1_396, %c6_397, %c2_398] : memref<2x22x22xf32, #tpu.memory_space<vmem>>, vector<1x16x16xf32>
    %723 = vector.shape_cast %722 : vector<1x16x16xf32> to vector<16x16xf32>
    %724 = vector.broadcast %721 : f32 to vector<16x16xf32>
    %725 = arith.mulf %724, %723 : vector<16x16xf32>
    %726 = arith.addf %720, %725 : vector<16x16xf32>
    %c94 = arith.constant 94 : index
    %727 = memref.load %arg4[%c94] : memref<98xf32, #tpu.memory_space<smem>>
    %c1_399 = arith.constant 1 : index
    %c6_400 = arith.constant 6 : index
    %c3_401 = arith.constant 3 : index
    %728 = vector.load %arg6[%c1_399, %c6_400, %c3_401] : memref<2x22x22xf32, #tpu.memory_space<vmem>>, vector<1x16x16xf32>
    %729 = vector.shape_cast %728 : vector<1x16x16xf32> to vector<16x16xf32>
    %730 = vector.broadcast %727 : f32 to vector<16x16xf32>
    %731 = arith.mulf %730, %729 : vector<16x16xf32>
    %732 = arith.addf %726, %731 : vector<16x16xf32>
    %c95 = arith.constant 95 : index
    %733 = memref.load %arg4[%c95] : memref<98xf32, #tpu.memory_space<smem>>
    %c1_402 = arith.constant 1 : index
    %c6_403 = arith.constant 6 : index
    %c4_404 = arith.constant 4 : index
    %734 = vector.load %arg6[%c1_402, %c6_403, %c4_404] : memref<2x22x22xf32, #tpu.memory_space<vmem>>, vector<1x16x16xf32>
    %735 = vector.shape_cast %734 : vector<1x16x16xf32> to vector<16x16xf32>
    %736 = vector.broadcast %733 : f32 to vector<16x16xf32>
    %737 = arith.mulf %736, %735 : vector<16x16xf32>
    %738 = arith.addf %732, %737 : vector<16x16xf32>
    %c96 = arith.constant 96 : index
    %739 = memref.load %arg4[%c96] : memref<98xf32, #tpu.memory_space<smem>>
    %c1_405 = arith.constant 1 : index
    %c6_406 = arith.constant 6 : index
    %c5_407 = arith.constant 5 : index
    %740 = vector.load %arg6[%c1_405, %c6_406, %c5_407] : memref<2x22x22xf32, #tpu.memory_space<vmem>>, vector<1x16x16xf32>
    %741 = vector.shape_cast %740 : vector<1x16x16xf32> to vector<16x16xf32>
    %742 = vector.broadcast %739 : f32 to vector<16x16xf32>
    %743 = arith.mulf %742, %741 : vector<16x16xf32>
    %744 = arith.addf %738, %743 : vector<16x16xf32>
    %c97 = arith.constant 97 : index
    %745 = memref.load %arg4[%c97] : memref<98xf32, #tpu.memory_space<smem>>
    %c1_408 = arith.constant 1 : index
    %c6_409 = arith.constant 6 : index
    %c6_410 = arith.constant 6 : index
    %746 = vector.load %arg6[%c1_408, %c6_409, %c6_410] : memref<2x22x22xf32, #tpu.memory_space<vmem>>, vector<1x16x16xf32>
    %747 = vector.shape_cast %746 : vector<1x16x16xf32> to vector<16x16xf32>
    %748 = vector.broadcast %745 : f32 to vector<16x16xf32>
    %749 = arith.mulf %748, %747 : vector<16x16xf32>
    %750 = arith.addf %744, %749 : vector<16x16xf32>
    %751 = arith.negf %750 : vector<16x16xf32>
    %752 = math.exp %751 : vector<16x16xf32>
    %cst_411 = arith.constant 1.000000e+00 : f32
    %753 = vector.broadcast %cst_411 : f32 to vector<16x16xf32>
    %754 = arith.addf %753, %752 : vector<16x16xf32>
    %755 = arith.divf %753, %754 : vector<16x16xf32>
    %756 = vector.extract_strided_slice %755 {offsets = [0, 0], sizes = [1, 16], strides = [1, 1]} : vector<16x16xf32> to vector<1x16xf32>
    %c0_412 = arith.constant 0 : index
    %c0_413 = arith.constant 0 : index
    %757 = vector.load %arg7[%c0_412, %c0_413] : memref<1x256xf32, #tpu.memory_space<vmem>>, vector<1x16xf32>
    tpu.vector_store %arg7[%c0_412, %c0_413], %756 {strides = array<i32>} : memref<1x256xf32, #tpu.memory_space<vmem>>, vector<1x16xf32>,
    %758 = vector.extract_strided_slice %755 {offsets = [1, 0], sizes = [1, 16], strides = [1, 1]} : vector<16x16xf32> to vector<1x16xf32>
    %c0_414 = arith.constant 0 : index
    %c16_415 = arith.constant 16 : index
    %759 = vector.load %arg7[%c0_414, %c16_415] : memref<1x256xf32, #tpu.memory_space<vmem>>, vector<1x16xf32>
    tpu.vector_store %arg7[%c0_414, %c16_415], %758 {strides = array<i32>} : memref<1x256xf32, #tpu.memory_space<vmem>>, vector<1x16xf32>,
    %760 = vector.extract_strided_slice %755 {offsets = [2, 0], sizes = [1, 16], strides = [1, 1]} : vector<16x16xf32> to vector<1x16xf32>
    %c0_416 = arith.constant 0 : index
    %c32_417 = arith.constant 32 : index
    %761 = vector.load %arg7[%c0_416, %c32_417] : memref<1x256xf32, #tpu.memory_space<vmem>>, vector<1x16xf32>
    tpu.vector_store %arg7[%c0_416, %c32_417], %760 {strides = array<i32>} : memref<1x256xf32, #tpu.memory_space<vmem>>, vector<1x16xf32>,
    %762 = vector.extract_strided_slice %755 {offsets = [3, 0], sizes = [1, 16], strides = [1, 1]} : vector<16x16xf32> to vector<1x16xf32>
    %c0_418 = arith.constant 0 : index
    %c48_419 = arith.constant 48 : index
    %763 = vector.load %arg7[%c0_418, %c48_419] : memref<1x256xf32, #tpu.memory_space<vmem>>, vector<1x16xf32>
    tpu.vector_store %arg7[%c0_418, %c48_419], %762 {strides = array<i32>} : memref<1x256xf32, #tpu.memory_space<vmem>>, vector<1x16xf32>,
    %764 = vector.extract_strided_slice %755 {offsets = [4, 0], sizes = [1, 16], strides = [1, 1]} : vector<16x16xf32> to vector<1x16xf32>
    %c0_420 = arith.constant 0 : index
    %c64_421 = arith.constant 64 : index
    %765 = vector.load %arg7[%c0_420, %c64_421] : memref<1x256xf32, #tpu.memory_space<vmem>>, vector<1x16xf32>
    tpu.vector_store %arg7[%c0_420, %c64_421], %764 {strides = array<i32>} : memref<1x256xf32, #tpu.memory_space<vmem>>, vector<1x16xf32>,
    %766 = vector.extract_strided_slice %755 {offsets = [5, 0], sizes = [1, 16], strides = [1, 1]} : vector<16x16xf32> to vector<1x16xf32>
    %c0_422 = arith.constant 0 : index
    %c80_423 = arith.constant 80 : index
    %767 = vector.load %arg7[%c0_422, %c80_423] : memref<1x256xf32, #tpu.memory_space<vmem>>, vector<1x16xf32>
    tpu.vector_store %arg7[%c0_422, %c80_423], %766 {strides = array<i32>} : memref<1x256xf32, #tpu.memory_space<vmem>>, vector<1x16xf32>,
    %768 = vector.extract_strided_slice %755 {offsets = [6, 0], sizes = [1, 16], strides = [1, 1]} : vector<16x16xf32> to vector<1x16xf32>
    %c0_424 = arith.constant 0 : index
    %c96_425 = arith.constant 96 : index
    %769 = vector.load %arg7[%c0_424, %c96_425] : memref<1x256xf32, #tpu.memory_space<vmem>>, vector<1x16xf32>
    tpu.vector_store %arg7[%c0_424, %c96_425], %768 {strides = array<i32>} : memref<1x256xf32, #tpu.memory_space<vmem>>, vector<1x16xf32>,
    %770 = vector.extract_strided_slice %755 {offsets = [7, 0], sizes = [1, 16], strides = [1, 1]} : vector<16x16xf32> to vector<1x16xf32>
    %c0_426 = arith.constant 0 : index
    %c112 = arith.constant 112 : index
    %771 = vector.load %arg7[%c0_426, %c112] : memref<1x256xf32, #tpu.memory_space<vmem>>, vector<1x16xf32>
    tpu.vector_store %arg7[%c0_426, %c112], %770 {strides = array<i32>} : memref<1x256xf32, #tpu.memory_space<vmem>>, vector<1x16xf32>,
    %772 = vector.extract_strided_slice %755 {offsets = [8, 0], sizes = [1, 16], strides = [1, 1]} : vector<16x16xf32> to vector<1x16xf32>
    %c0_427 = arith.constant 0 : index
    %c128 = arith.constant 128 : index
    %773 = vector.load %arg7[%c0_427, %c128] : memref<1x256xf32, #tpu.memory_space<vmem>>, vector<1x16xf32>
    tpu.vector_store %arg7[%c0_427, %c128], %772 {strides = array<i32>} : memref<1x256xf32, #tpu.memory_space<vmem>>, vector<1x16xf32>,
    %774 = vector.extract_strided_slice %755 {offsets = [9, 0], sizes = [1, 16], strides = [1, 1]} : vector<16x16xf32> to vector<1x16xf32>
    %c0_428 = arith.constant 0 : index
    %c144 = arith.constant 144 : index
    %775 = vector.load %arg7[%c0_428, %c144] : memref<1x256xf32, #tpu.memory_space<vmem>>, vector<1x16xf32>
    tpu.vector_store %arg7[%c0_428, %c144], %774 {strides = array<i32>} : memref<1x256xf32, #tpu.memory_space<vmem>>, vector<1x16xf32>,
    %776 = vector.extract_strided_slice %755 {offsets = [10, 0], sizes = [1, 16], strides = [1, 1]} : vector<16x16xf32> to vector<1x16xf32>
    %c0_429 = arith.constant 0 : index
    %c160 = arith.constant 160 : index
    %777 = vector.load %arg7[%c0_429, %c160] : memref<1x256xf32, #tpu.memory_space<vmem>>, vector<1x16xf32>
    tpu.vector_store %arg7[%c0_429, %c160], %776 {strides = array<i32>} : memref<1x256xf32, #tpu.memory_space<vmem>>, vector<1x16xf32>,
    %778 = vector.extract_strided_slice %755 {offsets = [11, 0], sizes = [1, 16], strides = [1, 1]} : vector<16x16xf32> to vector<1x16xf32>
    %c0_430 = arith.constant 0 : index
    %c176 = arith.constant 176 : index
    %779 = vector.load %arg7[%c0_430, %c176] : memref<1x256xf32, #tpu.memory_space<vmem>>, vector<1x16xf32>
    tpu.vector_store %arg7[%c0_430, %c176], %778 {strides = array<i32>} : memref<1x256xf32, #tpu.memory_space<vmem>>, vector<1x16xf32>,
    %780 = vector.extract_strided_slice %755 {offsets = [12, 0], sizes = [1, 16], strides = [1, 1]} : vector<16x16xf32> to vector<1x16xf32>
    %c0_431 = arith.constant 0 : index
    %c192 = arith.constant 192 : index
    %781 = vector.load %arg7[%c0_431, %c192] : memref<1x256xf32, #tpu.memory_space<vmem>>, vector<1x16xf32>
    tpu.vector_store %arg7[%c0_431, %c192], %780 {strides = array<i32>} : memref<1x256xf32, #tpu.memory_space<vmem>>, vector<1x16xf32>,
    %782 = vector.extract_strided_slice %755 {offsets = [13, 0], sizes = [1, 16], strides = [1, 1]} : vector<16x16xf32> to vector<1x16xf32>
    %c0_432 = arith.constant 0 : index
    %c208 = arith.constant 208 : index
    %783 = vector.load %arg7[%c0_432, %c208] : memref<1x256xf32, #tpu.memory_space<vmem>>, vector<1x16xf32>
    tpu.vector_store %arg7[%c0_432, %c208], %782 {strides = array<i32>} : memref<1x256xf32, #tpu.memory_space<vmem>>, vector<1x16xf32>,
    %784 = vector.extract_strided_slice %755 {offsets = [14, 0], sizes = [1, 16], strides = [1, 1]} : vector<16x16xf32> to vector<1x16xf32>
    %c0_433 = arith.constant 0 : index
    %c224 = arith.constant 224 : index
    %785 = vector.load %arg7[%c0_433, %c224] : memref<1x256xf32, #tpu.memory_space<vmem>>, vector<1x16xf32>
    tpu.vector_store %arg7[%c0_433, %c224], %784 {strides = array<i32>} : memref<1x256xf32, #tpu.memory_space<vmem>>, vector<1x16xf32>,
    %786 = vector.extract_strided_slice %755 {offsets = [15, 0], sizes = [1, 16], strides = [1, 1]} : vector<16x16xf32> to vector<1x16xf32>
    %c0_434 = arith.constant 0 : index
    %c240 = arith.constant 240 : index
    %787 = vector.load %arg7[%c0_434, %c240] : memref<1x256xf32, #tpu.memory_space<vmem>>, vector<1x16xf32>
    tpu.vector_store %arg7[%c0_434, %c240], %786 {strides = array<i32>} : memref<1x256xf32, #tpu.memory_space<vmem>>, vector<1x16xf32>,
    %c0_435 = arith.constant 0 : index
    %c0_436 = arith.constant 0 : index
    %788 = vector.load %arg7[%c0_435, %c0_436] : memref<1x256xf32, #tpu.memory_space<vmem>>, vector<1x256xf32>
    %789 = vector.broadcast %788 : vector<1x256xf32> to vector<4x256xf32>
    %790 = arith.mulf %25, %789 : vector<4x256xf32>
    %791 = arith.addf %25, %790 : vector<4x256xf32>
    %c0_437 = arith.constant 0 : index
    %c0_438 = arith.constant 0 : index
    %c0_439 = arith.constant 0 : index
    %792 = vector.load %arg5[%c0_437, %c0_438, %c0_439] : memref<1x4x256xf32, #tpu.memory_space<vmem>>, vector<1x4x256xf32>
    %793 = vector.shape_cast %792 : vector<1x4x256xf32> to vector<4x256xf32>
    %794 = vector.shape_cast %791 : vector<4x256xf32> to vector<1x4x256xf32>
    tpu.vector_store %arg5[%c0_437, %c0_438, %c0_439], %794 {strides = array<i32>} : memref<1x4x256xf32, #tpu.memory_space<vmem>>, vector<1x4x256xf32>,
    return
  }
  func.func @transform_0(%arg0: i32) -> (i32, i32, i32) {
    %c0_i32 = arith.constant 0 : i32
    %c0_i32_0 = arith.constant 0 : i32
    %c0_i32_1 = arith.constant 0 : i32
    return %arg0, %c0_i32, %c0_i32_0 : i32, i32, i32
  }
  func.func @transform_1(%arg0: i32) -> (i32, i32) {
    %c0_i32 = arith.constant 0 : i32
    %c0_i32_0 = arith.constant 0 : i32
    %c0_i32_1 = arith.constant 0 : i32
    return %c0_i32, %c0_i32_0 : i32, i32
  }
  func.func @transform_2(%arg0: i32) -> (i32, i32) {
    %c0_i32 = arith.constant 0 : i32
    %c0_i32_0 = arith.constant 0 : i32
    %c0_i32_1 = arith.constant 0 : i32
    return %c0_i32, %c0_i32_0 : i32, i32
  }
  func.func @transform_3(%arg0: i32) -> i32 {
    %c0_i32 = arith.constant 0 : i32
    %c0_i32_0 = arith.constant 0 : i32
    return %c0_i32 : i32
  }
  func.func @transform_4(%arg0: i32) -> (i32, i32, i32) {
    %c0_i32 = arith.constant 0 : i32
    %c0_i32_0 = arith.constant 0 : i32
    %c0_i32_1 = arith.constant 0 : i32
    return %arg0, %c0_i32, %c0_i32_0 : i32, i32, i32
  }
}

</mosaic_0001>

<llo_original>
// kernel: tpu_custom_call.1
$region0: #{tpu_custom_call.1}
  #allocation0 [shape = 'u32[]', space=smem, size = 0x4, offset = 0x4, fixed_abs, tag = 'smem constant byte address 0x4 - core index']
  #allocation1 [shape = 'u32[72,128]{1,0:T(1,128)}', space=vmem, size = 0x9000, scoped, tag = 'internal scratch']
  #allocation2 [shape = 'f32[2,22,22]{2,1,0:T(8,128)}', space=vmem, size = 0x6000, scoped, tag = 'scratch operand']
  #allocation3 [shape = 'f32[1,256]{1,0:T(1,128)}', space=vmem, size = 0x400, scoped, tag = 'scratch operand']
  %s0 = inlined_call_operand.hbm [shape: f32[2,4,256], index: 0, kind: input, shape index: {}]
  %s1 = inlined_call_operand.hbm [shape: f32[4,4], index: 1, kind: input, shape index: {}]
  %s2 = inlined_call_operand.hbm [shape: f32[4,4], index: 2, kind: input, shape index: {}]
  %s3 = inlined_call_operand.vmem [shape: f32[98], index: 3, kind: input, shape index: {}]
  %s4 = inlined_call_operand.hbm [shape: f32[2,4,256], index: 4, kind: output, shape index: {}]
  %s5 = sld [smem:[#allocation0]]
  $region65: #{tpu_custom_call.1} parent=0
    _
  %s7 = ssub.s32 1, %s5
  %s8 = scalar_select 0, %s7, %s5
  $region1: #{tpu_custom_call.1} parent=0
    #allocation4 [shape = 'u8[8192]{0}', space=vmem, size = 0x2000, scoped, tag = 'input window, operand 0']
    #allocation5 [shape = 's32[2]{0}', space=sflag, size = 0x8, scoped, tag = 'scoped memory for tpu_custom_call.1']
    #allocation6 [shape = 's32[2]{0}', space=sflag, size = 0x8, scoped, tag = 'scoped memory for tpu_custom_call.1']
    #allocation7 [shape = 's32[2]{0}', space=sflag, size = 0x8, scoped, tag = 'scoped memory for tpu_custom_call.1']
    #allocation8 [shape = 'u8[2048]{0}', space=vmem, size = 0x800, scoped, tag = 'input window, operand 1, single buffered']
    #allocation9 [shape = 's32[1]{0}', space=sflag, size = 0x4, scoped, tag = 'scoped memory for tpu_custom_call.1']
    #allocation10 [shape = 'u8[2048]{0}', space=vmem, size = 0x800, scoped, tag = 'input window, operand 2, single buffered']
    #allocation11 [shape = 'u8[512]{0}', space=smem, size = 0x200, scoped, tag = 'input window, operand 3, single buffered']
    #allocation12 [shape = 'u8[8192]{0}', space=vmem, size = 0x2000, scoped, tag = 'output window, operand 0']
    %9 = vsyncpa [#allocation5], 0
    %s10 = scalar_lea.sflag [#allocation5], 1
    %11 = vsyncpa %s10, 0
    %12 = vsyncpa [#allocation9], 0
    %13 = vsyncpa [#allocation7], 0
    %14 = vsyncpa [#allocation6], 0
    %s15 = scalar_lea.sflag [#allocation6], 1
    %16 = vsyncpa %s15, 0
    loop: start=0, step=1, limit=4
    $region2: #{tpu_custom_call.1} parent=1 // loop_pre_header
      _
    $region3: #{tpu_custom_call.1} parent=1 // loop_header
      %s18 = sphi 0, %s22
      %p19 = scmp.ge.s32.totalorder %s18, 4
      %s28 = sphi 0, %s30
      %s31 = sphi 0, %s28
      %s32 = sphi 0, %s31
      %s48 = sphi 0, %s32
      %s52 = sphi 0, %s52
      %s54 = sphi 0, %s52
      %s55 = sphi 0, %s54
      %s69 = sphi 0, %s55
      %s73 = sphi 0, %s73
      %s75 = sphi 0, %s73
      %s76 = sphi 0, %s75
      %s90 = sphi 0, %s76
      %s94 = sphi 0, %s94
      %s96 = sphi 0, %s94
      %s97 = sphi 0, %s96
      %s111 = sphi 0, %s97
      %s117 = sphi 0, %s119
      %s120 = sphi 0, %s117
      %s121 = sphi 0, %s120
      %s137 = sphi 0, %s121
    $region4: #{tpu_custom_call.1} parent=1 // loop_header_branch
      %21 = sbr.rel (%p19) target = $region8
    $region5: #{tpu_custom_call.1} parent=1 // loop_body
      %s23 = ssub.s32 %s18, 1
      %s24 = ssub.s32 %s18, 2
      %s25 = sadd.s32 %s18, 1
      %s26 = ssub.s32 %s18, %s25
      %p27 = scmp.eq.s32.totalorder %s26, 0
      %s29 = sadd.s32 %s28, 1
      %s30 = scalar_select %p27, %s28, %s29
      %p33 = pneg %p27
      %p34 = scmp.eq.s32.totalorder %s18, 1
      %p35 = por %p33, %p34
      %p36 = scmp.ne.s32.totalorder %s28, %s31
      %p37 = scmp.eq.s32.totalorder %s18, 0
      %p38 = por %p36, %p37
      %p39 = scmp.ne.s32.totalorder %s28, %s31
      %p40 = scmp.eq.s32.totalorder %s23, 1
      %p41 = por %p39, %p40
      %p42 = scmp.ne.s32.totalorder %s31, %s32
      %p43 = scmp.eq.s32.totalorder %s23, 0
      %p44 = por %p42, %p43
      %p45 = scmp.ne.s32.totalorder %s31, %s32
      %p46 = scmp.eq.s32.totalorder %s24, 1
      %p47 = por %p45, %p46
      %p49 = scmp.ne.s32.totalorder %s32, %s48
      %p50 = scmp.eq.s32.totalorder %s24, 0
      %p51 = por %p49, %p50
      %s53 = sadd.s32 %s52, 1
      %p56 = scmp.eq.s32.totalorder %s18, 1
      %p57 = scmp.ne.s32.totalorder %s52, %s54
      %p58 = scmp.eq.s32.totalorder %s18, 0
      %p59 = por %p57, %p58
      %p60 = scmp.ne.s32.totalorder %s52, %s54
      %p61 = scmp.eq.s32.totalorder %s23, 1
      %p62 = por %p60, %p61
      %p63 = scmp.ne.s32.totalorder %s54, %s55
      %p64 = scmp.eq.s32.totalorder %s23, 0
      %p65 = por %p63, %p64
      %p66 = scmp.ne.s32.totalorder %s54, %s55
      %p67 = scmp.eq.s32.totalorder %s24, 1
      %p68 = por %p66, %p67
      %p70 = scmp.ne.s32.totalorder %s55, %s69
      %p71 = scmp.eq.s32.totalorder %s24, 0
      %p72 = por %p70, %p71
      %s74 = sadd.s32 %s73, 1
      %p77 = scmp.eq.s32.totalorder %s18, 1
      %p78 = scmp.ne.s32.totalorder %s73, %s75
      %p79 = scmp.eq.s32.totalorder %s18, 0
      %p80 = por %p78, %p79
      %p81 = scmp.ne.s32.totalorder %s73, %s75
      %p82 = scmp.eq.s32.totalorder %s23, 1
      %p83 = por %p81, %p82
      %p84 = scmp.ne.s32.totalorder %s75, %s76
      %p85 = scmp.eq.s32.totalorder %s23, 0
      %p86 = por %p84, %p85
      %p87 = scmp.ne.s32.totalorder %s75, %s76
      %p88 = scmp.eq.s32.totalorder %s24, 1
      %p89 = por %p87, %p88
      %p91 = scmp.ne.s32.totalorder %s76, %s90
      %p92 = scmp.eq.s32.totalorder %s24, 0
      %p93 = por %p91, %p92
      %s95 = sadd.s32 %s94, 1
      %p98 = scmp.eq.s32.totalorder %s18, 1
      %p99 = scmp.ne.s32.totalorder %s94, %s96
      %p100 = scmp.eq.s32.totalorder %s18, 0
      %p101 = por %p99, %p100
      %p102 = scmp.ne.s32.totalorder %s94, %s96
      %p103 = scmp.eq.s32.totalorder %s23, 1
      %p104 = por %p102, %p103
      %p105 = scmp.ne.s32.totalorder %s96, %s97
      %p106 = scmp.eq.s32.totalorder %s23, 0
      %p107 = por %p105, %p106
      %p108 = scmp.ne.s32.totalorder %s96, %s97
      %p109 = scmp.eq.s32.totalorder %s24, 1
      %p110 = por %p108, %p109
      %p112 = scmp.ne.s32.totalorder %s97, %s111
      %p113 = scmp.eq.s32.totalorder %s24, 0
      %p114 = por %p112, %p113
      %s115 = ssub.s32 %s18, %s25
      %p116 = scmp.eq.s32.totalorder %s115, 0
      %s118 = sadd.s32 %s117, 1
      %s119 = scalar_select %p116, %s117, %s118
      %p122 = pneg %p116
      %p123 = scmp.eq.s32.totalorder %s18, 1
      %p124 = por %p122, %p123
      %p125 = scmp.ne.s32.totalorder %s117, %s120
      %p126 = scmp.eq.s32.totalorder %s18, 0
      %p127 = por %p125, %p126
      %p128 = scmp.ne.s32.totalorder %s117, %s120
      %p129 = scmp.eq.s32.totalorder %s23, 1
      %p130 = por %p128, %p129
      %p131 = scmp.ne.s32.totalorder %s120, %s121
      %p132 = scmp.eq.s32.totalorder %s23, 0
      %p133 = por %p131, %p132
      %p134 = scmp.ne.s32.totalorder %s120, %s121
      %p135 = scmp.eq.s32.totalorder %s24, 1
      %p136 = por %p134, %p135
      %p138 = scmp.ne.s32.totalorder %s121, %s137
      %p139 = scmp.eq.s32.totalorder %s24, 0
      %p140 = por %p138, %p139
      %p141 = scmp.le.s32.totalorder 1, %s18
      %p142 = scmp.lt.s32.totalorder %s18, 3
      %p143 = pnand %p141, %p142
      %p144 = pneg %p143
      // Predicated region
      $region9: #{tpu_custom_call.1} parent=5 // pred_check
        _
      $region10: #{tpu_custom_call.1} parent=5 // pred_check_branch
        %146 = sbr.rel (%p143) target = $region12
      $region11: #{tpu_custom_call.1} parent=5 // pred_region
        %s147 = ssub.s32 %s18, 1
        // Predicated region
        $region13: #{tpu_custom_call.1} parent=11 // pred_check
          %p148 = pneg %p65
        $region14: #{tpu_custom_call.1} parent=11 // pred_check_branch
          %150 = sbr.rel (%p148) target = $region16
        $region15: #{tpu_custom_call.1} parent=11 // pred_region
          %152 = vsyncadd [#allocation9], 0
          %s154 = sshll.u32 %s1, 4
          %s155 = int_to_ptr.hbm [resolvable:$true] %s154
          %s156 = sshll.u32 [#allocation8], 4
          %s157 = int_to_ptr.vmem [resolvable:$true] %s156
          %159 = dma.hbm_to_vmem [thread:$0]  %s155, 64, %s157, [#allocation9]
        $region16: #{tpu_custom_call.1} parent=11 // pred_fallthru
          _
        // Predicated region
        $region17: #{tpu_custom_call.1} parent=11 // pred_check
          %p160 = pneg %p86
        $region18: #{tpu_custom_call.1} parent=11 // pred_check_branch
          %162 = sbr.rel (%p160) target = $region20
        $region19: #{tpu_custom_call.1} parent=11 // pred_region
          %164 = vsyncadd [#allocation9], 0
          %s166 = sshll.u32 %s2, 4
          %s167 = int_to_ptr.hbm [resolvable:$true] %s166
          %s168 = sshll.u32 [#allocation10], 4
          %s169 = int_to_ptr.vmem [resolvable:$true] %s168
          %171 = dma.hbm_to_vmem [thread:$0]  %s167, 64, %s169, [#allocation9]
        $region20: #{tpu_custom_call.1} parent=11 // pred_fallthru
          _
        // Predicated region
        $region21: #{tpu_custom_call.1} parent=11 // pred_check
          %p172 = pneg %p107
        $region22: #{tpu_custom_call.1} parent=11 // pred_check_branch
          %174 = sbr.rel (%p172) target = $region24
        $region23: #{tpu_custom_call.1} parent=11 // pred_region
          %176 = vsyncadd [#allocation7], 0
          %s178 = sshll.u32 %s3, 4
          %s179 = int_to_ptr.vmem [resolvable:$true] %s178
          %181 = dma.vmem_to_smem %s179, 16, [#allocation11], [#allocation7]
        $region24: #{tpu_custom_call.1} parent=11 // pred_fallthru
          _
      $region12: #{tpu_custom_call.1} parent=5 // pred_fallthru
        _
      %p182 = scmp.lt.s32.totalorder %s18, 2
      // Predicated region
      $region25: #{tpu_custom_call.1} parent=5 // pred_check
        %p183 = pneg %p182
      $region26: #{tpu_custom_call.1} parent=5 // pred_check_branch
        %185 = sbr.rel (%p183) target = $region28
      $region27: #{tpu_custom_call.1} parent=5 // pred_region
        // Predicated region
        $region29: #{tpu_custom_call.1} parent=27 // pred_check
          %p186 = pneg %p38
        $region30: #{tpu_custom_call.1} parent=27 // pred_check_branch
          %188 = sbr.rel (%p186) target = $region32
        $region31: #{tpu_custom_call.1} parent=27 // pred_region
          %s189 = sand.u32 %s28, 1
          %s190 = scalar_lea.sflag [#allocation5], %s189
          %s191 = sand.u32 %s28, 1
          %s192 = smul.addr %s191, 8
          %s193 = scalar_lea.vmem [#allocation4], %s192
          %195 = vsyncadd %s190, 0
          %s196 = smul.addr %s18, 2
          %s197 = smul.addr %s196, 4
          %s198 = scalar_lea.hbm %s0, %s197
          %s200 = sshll.u32 %s198, 4
          %s201 = int_to_ptr.hbm [resolvable:$true] %s200
          %s202 = sshll.u32 %s193, 4
          %s203 = int_to_ptr.vmem [resolvable:$true] %s202
          %205 = dma.hbm_to_vmem [thread:$0]  %s201, 128, %s203, %s190
        $region32: #{tpu_custom_call.1} parent=27 // pred_fallthru
          _
      $region28: #{tpu_custom_call.1} parent=5 // pred_fallthru
        _
      %p206 = scmp.le.s32.totalorder 1, %s18
      %p207 = scmp.lt.s32.totalorder %s18, 3
      %p208 = pnand %p206, %p207
      %p209 = pneg %p208
      // Predicated region
      $region33: #{tpu_custom_call.1} parent=5 // pred_check
        _
      $region34: #{tpu_custom_call.1} parent=5 // pred_check_branch
        %211 = sbr.rel (%p208) target = $region36
      $region35: #{tpu_custom_call.1} parent=5 // pred_region
        %s212 = ssub.s32 %s18, 1
        %s213 = sand.u32 %s31, 1
        %s214 = scalar_lea.sflag [#allocation5], %s213
        %s215 = sand.u32 %s31, 1
        %s216 = smul.addr %s215, 8
        %s217 = scalar_lea.vmem [#allocation4], %s216
        // Predicated region
        $region37: #{tpu_custom_call.1} parent=35 // pred_check
          %p218 = pneg %p44
        $region38: #{tpu_custom_call.1} parent=35 // pred_check_branch
          %220 = sbr.rel (%p218) target = $region40
        $region39: #{tpu_custom_call.1} parent=35 // pred_region
          %222 = dma.done %s214, 128
        $region40: #{tpu_custom_call.1} parent=35 // pred_fallthru
          _
        // Predicated region
        $region41: #{tpu_custom_call.1} parent=35 // pred_check
          %p223 = pneg %p65
        $region42: #{tpu_custom_call.1} parent=35 // pred_check_branch
          %225 = sbr.rel (%p223) target = $region44
        $region43: #{tpu_custom_call.1} parent=35 // pred_region
          %227 = dma.done [#allocation9], 64
        $region44: #{tpu_custom_call.1} parent=35 // pred_fallthru
          _
        // Predicated region
        $region45: #{tpu_custom_call.1} parent=35 // pred_check
          %p228 = pneg %p86
        $region46: #{tpu_custom_call.1} parent=35 // pred_check_branch
          %230 = sbr.rel (%p228) target = $region48
        $region47: #{tpu_custom_call.1} parent=35 // pred_region
          %232 = dma.done [#allocation9], 64
        $region48: #{tpu_custom_call.1} parent=35 // pred_fallthru
          _
        // Predicated region
        $region49: #{tpu_custom_call.1} parent=35 // pred_check
          %p233 = pneg %p107
        $region50: #{tpu_custom_call.1} parent=35 // pred_check_branch
          %235 = sbr.rel (%p233) target = $region52
        $region51: #{tpu_custom_call.1} parent=35 // pred_region
          %237 = dma.done [#allocation7], 16
        $region52: #{tpu_custom_call.1} parent=35 // pred_fallthru
          _
        %238 = sfence
        %s239 = sand.u32 %s31, 1
        %s240 = scalar_lea.sflag [#allocation5], %s239
        %s241 = sand.u32 %s31, 1
        %s242 = smul.addr %s241, 8
        %s243 = scalar_lea.vmem [#allocation4], %s242
        %p244 = pneg %p44
        %p245 = pneg %p41
        %p246 = pneg %p65
        %p247 = pneg %p62
        %p248 = pneg %p86
        %p249 = pneg %p83
        %p250 = pneg %p107
        %p251 = pneg %p104
        %p252 = pneg %p133
        %p253 = pneg %p130
        %s254 = sand.u32 %s120, 1
        %s255 = scalar_lea.sflag [#allocation6], %s254
        %s256 = sand.u32 %s120, 1
        %s257 = smul.addr %s256, 8
        %s258 = scalar_lea.vmem [#allocation12], %s257
        %v259 = vld [vmem:[%s217] sm:$0xff]
        %261 = vst [vmem:[#allocation1] ss:$2 sm:$0xff] %v259
        %v262 = vld.sshfl [vmem:[#allocation1] sm:$0xff pattern:$0x75316420]
        %v263 = vld.sshfl [vmem:[#allocation1 + $0x8] sm:$0xff pattern:$0x75316420]
        %vm266 = vcmask 1043456
        %v267 = vsel %vm266, %v262, 0.0
        %v268 = vsel %vm266, %v263, 0.0
        %v269 = vadd.f32 %v267, %v268
        %270 = vadd.xlane.f32.xlu0 %v269
        %v271 = vpop.xlane.xlu0 %270
        %v272 = vrcp.pop 256.0
        %v273 = vmul.f32 256.0, %v272
        %v274 = vsub.f32 1.0, %v273
        %v275 = vmul.f32 %v272, %v274
        %v276 = vadd.f32 %v272, %v275
        %vm277 = vweird.f32 %v272
        %v278 = vsel %vm277, %v272, %v276
        %v279 = vmul.f32 %v271, %v278
        %280 = vst [vmem:[#allocation1] ss:$2 sm:$0xff] %v259
        %v281 = vld.sshfl [vmem:[#allocation1] sm:$0xff pattern:$0x75316420]
        %v282 = vld.sshfl [vmem:[#allocation1 + $0x8] sm:$0xff pattern:$0x75316420]
        %v285 = vsel %vm266, %v281, -inf
        %v286 = vsel %vm266, %v282, -inf
        %v287 = vmax.f32 %v285, %v286
        %288 = vmax.xlane.f32.xlu0 %v287
        %v289 = vpop.xlane.xlu0 %288
        %vm290 = vcmask 7168
        %v291 = vsel %vm290, %v279, %v289
        %v292 = vld [vmem:[#allocation8] sm:$0xf]
        %v293 = vld [vmem:[#allocation10] sm:$0xf]
        %vm294 = vcmask 31744
        %v296 = vsel %vm294, %v292, 0
        %v299 = vsel %vm266, %v291, 0
        %301 = vmatpush.msra.mxu0 0.0
        %302 = vmatpush.msra.mxu0 0.0
        %303 = vmatpush.msra.mxu0 0.0
        %304 = vmatpush.msra.mxu0 0.0
        %305 = vmatpush.msra.mxu0 0.0
        %306 = vmatpush.msra.mxu0 0.0
        %307 = vmatpush.msra.mxu0 0.0
        %308 = vmatpush.msra.mxu0 0.0
        %309 = vmatpush.msra.mxu0 0.0
        %310 = vmatpush.msra.mxu0 0.0
        %311 = vmatpush.msra.mxu0 0.0
        %312 = vmatpush.msra.mxu0 0.0
        %313 = vmatpush.msra.mxu0 0.0
        %314 = vmatpush.msra.mxu0 0.0
        %315 = vmatpush.msra.mxu0 0.0
        %316 = vmatpush.msra.mxu0 %v299
        %317 = vmatmul.f32.gmra.mxu0 %v296
        %v318 = vpop.f32.mrf.mxu0
        %v319 = vadd.f32 0.0, %v318
        %320 = vdwg.mxu0
        %v321 = vmax.f32 %v319, 0.0
        %v323 = vsel %vm294, %v293, 0
        %v326 = vsel %vm266, %v321, 0
        %328 = vmatpush.msra.mxu0 0.0
        %329 = vmatpush.msra.mxu0 0.0
        %330 = vmatpush.msra.mxu0 0.0
        %331 = vmatpush.msra.mxu0 0.0
        %332 = vmatpush.msra.mxu0 0.0
        %333 = vmatpush.msra.mxu0 0.0
        %334 = vmatpush.msra.mxu0 0.0
        %335 = vmatpush.msra.mxu0 0.0
        %336 = vmatpush.msra.mxu0 0.0
        %337 = vmatpush.msra.mxu0 0.0
        %338 = vmatpush.msra.mxu0 0.0
        %339 = vmatpush.msra.mxu0 0.0
        %340 = vmatpush.msra.mxu0 0.0
        %341 = vmatpush.msra.mxu0 0.0
        %342 = vmatpush.msra.mxu0 0.0
        %343 = vmatpush.msra.mxu0 %v326
        %344 = vmatmul.f32.gmra.mxu0 %v323
        %v345 = vpop.f32.mrf.mxu0
        %v346 = vadd.f32 0.0, %v345
        %347 = vdwg.mxu0
        %349 = vrot.lane.b32.xlu0 %v346, 127
        %v350 = vpop.permute.xlu0 %349
        %v352 = vadd.f32 %v346, %v350
        %v353 = vxor.u32 %v352, 2147483648
        %v354 = vmul.f32 %v353, 1.442695
        %v355 = vpow.pop %v354
        %v356 = vadd.f32 %v355, 1.0
        %v357 = vrcp.pop %v356
        %v358 = vmul.f32 %v356, %v357
        %v359 = vsub.f32 1.0, %v358
        %v360 = vmul.f32 %v357, %v359
        %v361 = vadd.f32 %v357, %v360
        %vm362 = vweird.f32 %v356
        %vm363 = vweird.f32 %v357
        %vm364 = vmor %vm362, %vm363
        %v365 = vsel %vm364, %v357, %v361
        %v366 = vand.u32 2147483647, %v356
        %vm367 = vcmp.eq.f32.partialorder %v366, 8.507059e+37
        %v368 = vand.u32 %v356, 2147483648
        %v369 = vor.u32 1.1754944e-38, %v368
        %v370 = vsel %vm367, %v369, %v365
        %v371 = vmul.f32 1.0, %v370
        %373 = vset.pattern.permute.xlu0 0
        %374 = vperm.xlu0 %373, %v371
        %v375 = vpop.permute.xlu0 %374
        %v377 = vunpack.c.l.s4 839922192
        %v378 = vunpack.c.0.s8 %v377
        %v379 = vperm.slane %v375, %v378
        %v381 = vmul.f32 %v259, %v379
        %v382 = vadd.f32 %v259, %v381
        %384 = vst [vmem:[#allocation1] ss:$2 sm:$0xff] %v382
        %v385 = vld.sshfl [vmem:[#allocation1] sm:$0xff pattern:$0x75316420]
        %v386 = vld.sshfl [vmem:[#allocation1 + $0x8] sm:$0xff pattern:$0x75316420]
        %v389 = vsel %vm266, %v385, 0.0
        %v390 = vrot.slane %v389, 4
        %v391 = vadd.f32 %v389, %v390
        %v392 = vrot.slane %v391, 2
        %v393 = vadd.f32 %v391, %v392
        %v394 = vrot.slane %v393, 1
        %v395 = vadd.f32 %v393, %v394
        %v396 = vsel %vm266, %v386, 0.0
        %v397 = vrot.slane %v396, 4
        %v398 = vadd.f32 %v396, %v397
        %v399 = vrot.slane %v398, 2
        %v400 = vadd.f32 %v398, %v399
        %v401 = vrot.slane %v400, 1
        %v402 = vadd.f32 %v400, %v401
        %v403 = vrcp.pop 4.0
        %v404 = vmul.f32 4.0, %v403
        %v405 = vsub.f32 1.0, %v404
        %v406 = vmul.f32 %v403, %v405
        %v407 = vadd.f32 %v403, %v406
        %vm408 = vweird.f32 %v403
        %v409 = vsel %vm408, %v403, %v407
        %v410 = vmul.f32 %v395, %v409
        %v411 = vmul.f32 %v402, %v409
        %412 = vst [vmem:[#allocation1] ss:$2 sm:$0xff] %v382
        %v413 = vld.sshfl [vmem:[#allocation1] sm:$0xff pattern:$0x75316420]
        %v414 = vld.sshfl [vmem:[#allocation1 + $0x8] sm:$0xff pattern:$0x75316420]
        %v417 = vsel %vm266, %v413, -inf
        %v418 = vrot.slane %v417, 4
        %v419 = vmax.f32 %v417, %v418
        %v420 = vrot.slane %v419, 2
        %v421 = vmax.f32 %v419, %v420
        %v422 = vrot.slane %v421, 1
        %v423 = vmax.f32 %v421, %v422
        %v424 = vsel %vm266, %v414, -inf
        %v425 = vrot.slane %v424, 4
        %v426 = vmax.f32 %v424, %v425
        %v427 = vrot.slane %v426, 2
        %v428 = vmax.f32 %v426, %v427
        %v429 = vrot.slane %v428, 1
        %v430 = vmax.f32 %v428, %v429
        %vm431 = vcmask 179200
        %432 = vst.msk [vmem:[#allocation2] sm:$0xff] %vm431, 0.0
        %433 = vst.msk [vmem:[#allocation2 + $0x8] sm:$0xff] %vm431, 0.0
        %vm434 = vcmask 177152
        %435 = vst.msk [vmem:[#allocation2 + $0x10] sm:$0x3f] %vm434, 0.0
        %436 = vst.msk [vmem:[#allocation2 + $0x18] sm:$0xff] %vm431, 0.0
        %437 = vst.msk [vmem:[#allocation2 + $0x20] sm:$0xff] %vm431, 0.0
        %438 = vst.msk [vmem:[#allocation2 + $0x28] sm:$0x3f] %vm434, 0.0
        %440 = vrot.lane.b32.xlu0 %v410, 3
        %v441 = vpop.permute.xlu0 %440
        %vm443 = vcmask 147480
        %444 = vst.msk [vmem:[#allocation2 + $0x3] sm:$0x1] %vm443, %v441
        %446 = vrot.lane.b32.xlu0 %v423, 3
        %v447 = vpop.permute.xlu0 %446
        %s449 = scalar_lea.vmem [#allocation2], 24
        %450 = vst.msk [vmem:[%s449 + $0x3] sm:$0x1] %vm443, %v447
        %451 = vrot.lane.b32.xlu0 %v410, 115
        %v452 = vpop.permute.xlu0 %451
        %454 = vst.msk [vmem:[#allocation2 + $0x4] sm:$0x1] %vm443, %v452
        %455 = vrot.lane.b32.xlu0 %v423, 115
        %v456 = vpop.permute.xlu0 %455
        %458 = vst.msk [vmem:[%s449 + $0x4] sm:$0x1] %vm443, %v456
        %459 = vrot.lane.b32.xlu0 %v410, 99
        %v460 = vpop.permute.xlu0 %459
        %462 = vst.msk [vmem:[#allocation2 + $0x5] sm:$0x1] %vm443, %v460
        %463 = vrot.lane.b32.xlu0 %v423, 99
        %v464 = vpop.permute.xlu0 %463
        %466 = vst.msk [vmem:[%s449 + $0x5] sm:$0x1] %vm443, %v464
        %467 = vrot.lane.b32.xlu0 %v410, 83
        %v468 = vpop.permute.xlu0 %467
        %470 = vst.msk [vmem:[#allocation2 + $0x6] sm:$0x1] %vm443, %v468
        %471 = vrot.lane.b32.xlu0 %v423, 83
        %v472 = vpop.permute.xlu0 %471
        %474 = vst.msk [vmem:[%s449 + $0x6] sm:$0x1] %vm443, %v472
        %475 = vrot.lane.b32.xlu0 %v410, 67
        %v476 = vpop.permute.xlu0 %475
        %478 = vst.msk [vmem:[#allocation2 + $0x7] sm:$0x1] %vm443, %v476
        %479 = vrot.lane.b32.xlu0 %v423, 67
        %v480 = vpop.permute.xlu0 %479
        %482 = vst.msk [vmem:[%s449 + $0x7] sm:$0x1] %vm443, %v480
        %483 = vrot.lane.b32.xlu0 %v410, 51
        %v484 = vpop.permute.xlu0 %483
        %486 = vst.msk [vmem:[#allocation2 + $0x8] sm:$0x1] %vm443, %v484
        %487 = vrot.lane.b32.xlu0 %v423, 51
        %v488 = vpop.permute.xlu0 %487
        %490 = vst.msk [vmem:[%s449 + $0x8] sm:$0x1] %vm443, %v488
        %491 = vrot.lane.b32.xlu0 %v410, 35
        %v492 = vpop.permute.xlu0 %491
        %494 = vst.msk [vmem:[#allocation2 + $0x9] sm:$0x1] %vm443, %v492
        %495 = vrot.lane.b32.xlu0 %v423, 35
        %v496 = vpop.permute.xlu0 %495
        %498 = vst.msk [vmem:[%s449 + $0x9] sm:$0x1] %vm443, %v496
        %499 = vrot.lane.b32.xlu0 %v410, 19
        %v500 = vpop.permute.xlu0 %499
        %502 = vst.msk [vmem:[#allocation2 + $0xa] sm:$0x1] %vm443, %v500
        %503 = vrot.lane.b32.xlu0 %v423, 19
        %v504 = vpop.permute.xlu0 %503
        %506 = vst.msk [vmem:[%s449 + $0xa] sm:$0x1] %vm443, %v504
        %508 = vrot.lane.b32.xlu0 %v411, 3
        %v509 = vpop.permute.xlu0 %508
        %511 = vst.msk [vmem:[#allocation2 + $0xb] sm:$0x1] %vm443, %v509
        %513 = vrot.lane.b32.xlu0 %v430, 3
        %v514 = vpop.permute.xlu0 %513
        %516 = vst.msk [vmem:[%s449 + $0xb] sm:$0x1] %vm443, %v514
        %517 = vrot.lane.b32.xlu0 %v411, 115
        %v518 = vpop.permute.xlu0 %517
        %520 = vst.msk [vmem:[#allocation2 + $0xc] sm:$0x1] %vm443, %v518
        %521 = vrot.lane.b32.xlu0 %v430, 115
        %v522 = vpop.permute.xlu0 %521
        %524 = vst.msk [vmem:[%s449 + $0xc] sm:$0x1] %vm443, %v522
        %525 = vrot.lane.b32.xlu0 %v411, 99
        %v526 = vpop.permute.xlu0 %525
        %528 = vst.msk [vmem:[#allocation2 + $0xd] sm:$0x1] %vm443, %v526
        %529 = vrot.lane.b32.xlu0 %v430, 99
        %v530 = vpop.permute.xlu0 %529
        %532 = vst.msk [vmem:[%s449 + $0xd] sm:$0x1] %vm443, %v530
        %533 = vrot.lane.b32.xlu0 %v411, 83
        %v534 = vpop.permute.xlu0 %533
        %536 = vst.msk [vmem:[#allocation2 + $0xe] sm:$0x1] %vm443, %v534
        %537 = vrot.lane.b32.xlu0 %v430, 83
        %v538 = vpop.permute.xlu0 %537
        %540 = vst.msk [vmem:[%s449 + $0xe] sm:$0x1] %vm443, %v538
        %541 = vrot.lane.b32.xlu0 %v411, 67
        %v542 = vpop.permute.xlu0 %541
        %544 = vst.msk [vmem:[#allocation2 + $0xf] sm:$0x1] %vm443, %v542
        %545 = vrot.lane.b32.xlu0 %v430, 67
        %v546 = vpop.permute.xlu0 %545
        %548 = vst.msk [vmem:[%s449 + $0xf] sm:$0x1] %vm443, %v546
        %549 = vrot.lane.b32.xlu0 %v411, 51
        %v550 = vpop.permute.xlu0 %549
        %552 = vst.msk [vmem:[#allocation2 + $0x10] sm:$0x1] %vm443, %v550
        %553 = vrot.lane.b32.xlu0 %v430, 51
        %v554 = vpop.permute.xlu0 %553
        %556 = vst.msk [vmem:[%s449 + $0x10] sm:$0x1] %vm443, %v554
        %557 = vrot.lane.b32.xlu0 %v411, 35
        %v558 = vpop.permute.xlu0 %557
        %560 = vst.msk [vmem:[#allocation2 + $0x11] sm:$0x1] %vm443, %v558
        %561 = vrot.lane.b32.xlu0 %v430, 35
        %v562 = vpop.permute.xlu0 %561
        %564 = vst.msk [vmem:[%s449 + $0x11] sm:$0x1] %vm443, %v562
        %565 = vrot.lane.b32.xlu0 %v411, 19
        %v566 = vpop.permute.xlu0 %565
        %568 = vst.msk [vmem:[#allocation2 + $0x12] sm:$0x1] %vm443, %v566
        %569 = vrot.lane.b32.xlu0 %v430, 19
        %v570 = vpop.permute.xlu0 %569
        %572 = vst.msk [vmem:[%s449 + $0x12] sm:$0x1] %vm443, %v570
        %s573 = sld [smem:[#allocation11]]
        %v574 = vld [vmem:[#allocation2] sm:$0xff]
        %v575 = vld [vmem:[#allocation2 + $0x8] sm:$0xff]
        %v576 = vstv %s573
        %v577 = vmul.f32 %v576, %v574
        %v578 = vmul.f32 %v576, %v575
        %v579 = vadd.f32 %v577, 0.0
        %v580 = vadd.f32 %v578, 0.0
        %s581 = sld [smem:[#allocation11 + $0x1]]
        %v582 = vstv %s581
        %v583 = vmul.f32 %v582, %v574
        %v584 = vmul.f32 %v582, %v575
        %587 = vrot.lane.b32.xlu0 %v583, 127
        %v588 = vpop.permute.xlu0 %587
        %589 = vrot.lane.b32.xlu0 %v584, 127
        %v590 = vpop.permute.xlu0 %589
        %v593 = vadd.f32 %v579, %v588
        %v594 = vadd.f32 %v580, %v590
        %s595 = sld [smem:[#allocation11 + $0x2]]
        %v596 = vstv %s595
        %v597 = vmul.f32 %v596, %v574
        %v598 = vmul.f32 %v596, %v575
        %601 = vrot.lane.b32.xlu0 %v597, 126
        %v602 = vpop.permute.xlu0 %601
        %603 = vrot.lane.b32.xlu0 %v598, 126
        %v604 = vpop.permute.xlu0 %603
        %v607 = vadd.f32 %v593, %v602
        %v608 = vadd.f32 %v594, %v604
        %s609 = sld [smem:[#allocation11 + $0x3]]
        %v610 = vstv %s609
        %v611 = vmul.f32 %v610, %v574
        %v612 = vmul.f32 %v610, %v575
        %615 = vrot.lane.b32.xlu0 %v611, 125
        %v616 = vpop.permute.xlu0 %615
        %617 = vrot.lane.b32.xlu0 %v612, 125
        %v618 = vpop.permute.xlu0 %617
        %v621 = vadd.f32 %v607, %v616
        %v622 = vadd.f32 %v608, %v618
        %s623 = sld [smem:[#allocation11 + $0x4]]
        %v624 = vstv %s623
        %v625 = vmul.f32 %v624, %v574
        %v626 = vmul.f32 %v624, %v575
        %629 = vrot.lane.b32.xlu0 %v625, 124
        %v630 = vpop.permute.xlu0 %629
        %631 = vrot.lane.b32.xlu0 %v626, 124
        %v632 = vpop.permute.xlu0 %631
        %v635 = vadd.f32 %v621, %v630
        %v636 = vadd.f32 %v622, %v632
        %s637 = sld [smem:[#allocation11 + $0x5]]
        %v638 = vstv %s637
        %v639 = vmul.f32 %v638, %v574
        %v640 = vmul.f32 %v638, %v575
        %643 = vrot.lane.b32.xlu0 %v639, 123
        %v644 = vpop.permute.xlu0 %643
        %645 = vrot.lane.b32.xlu0 %v640, 123
        %v646 = vpop.permute.xlu0 %645
        %v649 = vadd.f32 %v635, %v644
        %v650 = vadd.f32 %v636, %v646
        %s651 = sld [smem:[#allocation11 + $0x6]]
        %v652 = vstv %s651
        %v653 = vmul.f32 %v652, %v574
        %v654 = vmul.f32 %v652, %v575
        %657 = vrot.lane.b32.xlu0 %v653, 122
        %v658 = vpop.permute.xlu0 %657
        %659 = vrot.lane.b32.xlu0 %v654, 122
        %v660 = vpop.permute.xlu0 %659
        %v663 = vadd.f32 %v649, %v658
        %v664 = vadd.f32 %v650, %v660
        %s665 = sld [smem:[#allocation11 + $0x7]]
        %v666 = vld [vmem:[#allocation2 + $0x1] sm:$0xff]
        %v667 = vld [vmem:[#allocation2 + $0x9] sm:$0xff]
        %v668 = vstv %s665
        %v669 = vmul.f32 %v668, %v666
        %v670 = vmul.f32 %v668, %v667
        %v671 = vadd.f32 %v663, %v669
        %v672 = vadd.f32 %v664, %v670
        %s673 = sld [smem:[#allocation11 + $0x8]]
        %v674 = vstv %s673
        %v675 = vmul.f32 %v674, %v666
        %v676 = vmul.f32 %v674, %v667
        %679 = vrot.lane.b32.xlu0 %v675, 127
        %v680 = vpop.permute.xlu0 %679
        %681 = vrot.lane.b32.xlu0 %v676, 127
        %v682 = vpop.permute.xlu0 %681
        %v685 = vadd.f32 %v671, %v680
        %v686 = vadd.f32 %v672, %v682
        %s687 = sld [smem:[#allocation11 + $0x9]]
        %v688 = vstv %s687
        %v689 = vmul.f32 %v688, %v666
        %v690 = vmul.f32 %v688, %v667
        %693 = vrot.lane.b32.xlu0 %v689, 126
        %v694 = vpop.permute.xlu0 %693
        %695 = vrot.lane.b32.xlu0 %v690, 126
        %v696 = vpop.permute.xlu0 %695
        %v699 = vadd.f32 %v685, %v694
        %v700 = vadd.f32 %v686, %v696
        %s701 = sld [smem:[#allocation11 + $0xa]]
        %v702 = vstv %s701
        %v703 = vmul.f32 %v702, %v666
        %v704 = vmul.f32 %v702, %v667
        %707 = vrot.lane.b32.xlu0 %v703, 125
        %v708 = vpop.permute.xlu0 %707
        %709 = vrot.lane.b32.xlu0 %v704, 125
        %v710 = vpop.permute.xlu0 %709
        %v713 = vadd.f32 %v699, %v708
        %v714 = vadd.f32 %v700, %v710
        %s715 = sld [smem:[#allocation11 + $0xb]]
        %v716 = vstv %s715
        %v717 = vmul.f32 %v716, %v666
        %v718 = vmul.f32 %v716, %v667
        %721 = vrot.lane.b32.xlu0 %v717, 124
        %v722 = vpop.permute.xlu0 %721
        %723 = vrot.lane.b32.xlu0 %v718, 124
        %v724 = vpop.permute.xlu0 %723
        %v727 = vadd.f32 %v713, %v722
        %v728 = vadd.f32 %v714, %v724
        %s729 = sld [smem:[#allocation11 + $0xc]]
        %v730 = vstv %s729
        %v731 = vmul.f32 %v730, %v666
        %v732 = vmul.f32 %v730, %v667
        %735 = vrot.lane.b32.xlu0 %v731, 123
        %v736 = vpop.permute.xlu0 %735
        %737 = vrot.lane.b32.xlu0 %v732, 123
        %v738 = vpop.permute.xlu0 %737
        %v741 = vadd.f32 %v727, %v736
        %v742 = vadd.f32 %v728, %v738
        %s743 = sld [smem:[#allocation11 + $0xd]]
        %v744 = vstv %s743
        %v745 = vmul.f32 %v744, %v666
        %v746 = vmul.f32 %v744, %v667
        %749 = vrot.lane.b32.xlu0 %v745, 122
        %v750 = vpop.permute.xlu0 %749
        %751 = vrot.lane.b32.xlu0 %v746, 122
        %v752 = vpop.permute.xlu0 %751
        %v755 = vadd.f32 %v741, %v750
        %v756 = vadd.f32 %v742, %v752
        %s757 = sld [smem:[#allocation11 + $0xe]]
        %v758 = vld [vmem:[#allocation2 + $0x2] sm:$0xff]
        %v759 = vld [vmem:[#allocation2 + $0xa] sm:$0xff]
        %v760 = vstv %s757
        %v761 = vmul.f32 %v760, %v758
        %v762 = vmul.f32 %v760, %v759
        %v763 = vadd.f32 %v755, %v761
        %v764 = vadd.f32 %v756, %v762
        %s765 = sld [smem:[#allocation11 + $0xf]]
        %v766 = vstv %s765
        %v767 = vmul.f32 %v766, %v758
        %v768 = vmul.f32 %v766, %v759
        %771 = vrot.lane.b32.xlu0 %v767, 127
        %v772 = vpop.permute.xlu0 %771
        %773 = vrot.lane.b32.xlu0 %v768, 127
        %v774 = vpop.permute.xlu0 %773
        %v777 = vadd.f32 %v763, %v772
        %v778 = vadd.f32 %v764, %v774
        %s779 = sld [smem:[#allocation11 + $0x10]]
        %v780 = vstv %s779
        %v781 = vmul.f32 %v780, %v758
        %v782 = vmul.f32 %v780, %v759
        %785 = vrot.lane.b32.xlu0 %v781, 126
        %v786 = vpop.permute.xlu0 %785
        %787 = vrot.lane.b32.xlu0 %v782, 126
        %v788 = vpop.permute.xlu0 %787
        %v791 = vadd.f32 %v777, %v786
        %v792 = vadd.f32 %v778, %v788
        %s793 = sld [smem:[#allocation11 + $0x11]]
        %v794 = vstv %s793
        %v795 = vmul.f32 %v794, %v758
        %v796 = vmul.f32 %v794, %v759
        %799 = vrot.lane.b32.xlu0 %v795, 125
        %v800 = vpop.permute.xlu0 %799
        %801 = vrot.lane.b32.xlu0 %v796, 125
        %v802 = vpop.permute.xlu0 %801
        %v805 = vadd.f32 %v791, %v800
        %v806 = vadd.f32 %v792, %v802
        %s807 = sld [smem:[#allocation11 + $0x12]]
        %v808 = vstv %s807
        %v809 = vmul.f32 %v808, %v758
        %v810 = vmul.f32 %v808, %v759
        %813 = vrot.lane.b32.xlu0 %v809, 124
        %v814 = vpop.permute.xlu0 %813
        %815 = vrot.lane.b32.xlu0 %v810, 124
        %v816 = vpop.permute.xlu0 %815
        %v819 = vadd.f32 %v805, %v814
        %v820 = vadd.f32 %v806, %v816
        %s821 = sld [smem:[#allocation11 + $0x13]]
        %v822 = vstv %s821
        %v823 = vmul.f32 %v822, %v758
        %v824 = vmul.f32 %v822, %v759
        %827 = vrot.lane.b32.xlu0 %v823, 123
        %v828 = vpop.permute.xlu0 %827
        %829 = vrot.lane.b32.xlu0 %v824, 123
        %v830 = vpop.permute.xlu0 %829
        %v833 = vadd.f32 %v819, %v828
        %v834 = vadd.f32 %v820, %v830
        %s835 = sld [smem:[#allocation11 + $0x14]]
        %v836 = vstv %s835
        %v837 = vmul.f32 %v836, %v758
        %v838 = vmul.f32 %v836, %v759
        %841 = vrot.lane.b32.xlu0 %v837, 122
        %v842 = vpop.permute.xlu0 %841
        %843 = vrot.lane.b32.xlu0 %v838, 122
        %v844 = vpop.permute.xlu0 %843
        %v847 = vadd.f32 %v833, %v842
        %v848 = vadd.f32 %v834, %v844
        %s849 = sld [smem:[#allocation11 + $0x15]]
        %v850 = vld [vmem:[#allocation2 + $0x3] sm:$0xff]
        %v851 = vld [vmem:[#allocation2 + $0xb] sm:$0xff]
        %v852 = vstv %s849
        %v853 = vmul.f32 %v852, %v850
        %v854 = vmul.f32 %v852, %v851
        %v855 = vadd.f32 %v847, %v853
        %v856 = vadd.f32 %v848, %v854
        %s857 = sld [smem:[#allocation11 + $0x16]]
        %v858 = vstv %s857
        %v859 = vmul.f32 %v858, %v850
        %v860 = vmul.f32 %v858, %v851
        %863 = vrot.lane.b32.xlu0 %v859, 127
        %v864 = vpop.permute.xlu0 %863
        %865 = vrot.lane.b32.xlu0 %v860, 127
        %v866 = vpop.permute.xlu0 %865
        %v869 = vadd.f32 %v855, %v864
        %v870 = vadd.f32 %v856, %v866
        %s871 = sld [smem:[#allocation11 + $0x17]]
        %v872 = vstv %s871
        %v873 = vmul.f32 %v872, %v850
        %v874 = vmul.f32 %v872, %v851
        %877 = vrot.lane.b32.xlu0 %v873, 126
        %v878 = vpop.permute.xlu0 %877
        %879 = vrot.lane.b32.xlu0 %v874, 126
        %v880 = vpop.permute.xlu0 %879
        %v883 = vadd.f32 %v869, %v878
        %v884 = vadd.f32 %v870, %v880
        %s885 = sld [smem:[#allocation11 + $0x18]]
        %v886 = vstv %s885
        %v887 = vmul.f32 %v886, %v850
        %v888 = vmul.f32 %v886, %v851
        %891 = vrot.lane.b32.xlu0 %v887, 125
        %v892 = vpop.permute.xlu0 %891
        %893 = vrot.lane.b32.xlu0 %v888, 125
        %v894 = vpop.permute.xlu0 %893
        %v897 = vadd.f32 %v883, %v892
        %v898 = vadd.f32 %v884, %v894
        %s899 = sld [smem:[#allocation11 + $0x19]]
        %v900 = vstv %s899
        %v901 = vmul.f32 %v900, %v850
        %v902 = vmul.f32 %v900, %v851
        %905 = vrot.lane.b32.xlu0 %v901, 124
        %v906 = vpop.permute.xlu0 %905
        %907 = vrot.lane.b32.xlu0 %v902, 124
        %v908 = vpop.permute.xlu0 %907
        %v911 = vadd.f32 %v897, %v906
        %v912 = vadd.f32 %v898, %v908
        %s913 = sld [smem:[#allocation11 + $0x1a]]
        %v914 = vstv %s913
        %v915 = vmul.f32 %v914, %v850
        %v916 = vmul.f32 %v914, %v851
        %919 = vrot.lane.b32.xlu0 %v915, 123
        %v920 = vpop.permute.xlu0 %919
        %921 = vrot.lane.b32.xlu0 %v916, 123
        %v922 = vpop.permute.xlu0 %921
        %v925 = vadd.f32 %v911, %v920
        %v926 = vadd.f32 %v912, %v922
        %s927 = sld [smem:[#allocation11 + $0x1b]]
        %v928 = vstv %s927
        %v929 = vmul.f32 %v928, %v850
        %v930 = vmul.f32 %v928, %v851
        %933 = vrot.lane.b32.xlu0 %v929, 122
        %v934 = vpop.permute.xlu0 %933
        %935 = vrot.lane.b32.xlu0 %v930, 122
        %v936 = vpop.permute.xlu0 %935
        %v939 = vadd.f32 %v925, %v934
        %v940 = vadd.f32 %v926, %v936
        %s941 = sld [smem:[#allocation11 + $0x1c]]
        %v942 = vld [vmem:[#allocation2 + $0x4] sm:$0xff]
        %v943 = vld [vmem:[#allocation2 + $0xc] sm:$0xff]
        %v944 = vstv %s941
        %v945 = vmul.f32 %v944, %v942
        %v946 = vmul.f32 %v944, %v943
        %v947 = vadd.f32 %v939, %v945
        %v948 = vadd.f32 %v940, %v946
        %s949 = sld [smem:[#allocation11 + $0x1d]]
        %v950 = vstv %s949
        %v951 = vmul.f32 %v950, %v942
        %v952 = vmul.f32 %v950, %v943
        %955 = vrot.lane.b32.xlu0 %v951, 127
        %v956 = vpop.permute.xlu0 %955
        %957 = vrot.lane.b32.xlu0 %v952, 127
        %v958 = vpop.permute.xlu0 %957
        %v961 = vadd.f32 %v947, %v956
        %v962 = vadd.f32 %v948, %v958
        %s963 = sld [smem:[#allocation11 + $0x1e]]
        %v964 = vstv %s963
        %v965 = vmul.f32 %v964, %v942
        %v966 = vmul.f32 %v964, %v943
        %969 = vrot.lane.b32.xlu0 %v965, 126
        %v970 = vpop.permute.xlu0 %969
        %971 = vrot.lane.b32.xlu0 %v966, 126
        %v972 = vpop.permute.xlu0 %971
        %v975 = vadd.f32 %v961, %v970
        %v976 = vadd.f32 %v962, %v972
        %s977 = sld [smem:[#allocation11 + $0x1f]]
        %v978 = vstv %s977
        %v979 = vmul.f32 %v978, %v942
        %v980 = vmul.f32 %v978, %v943
        %983 = vrot.lane.b32.xlu0 %v979, 125
        %v984 = vpop.permute.xlu0 %983
        %985 = vrot.lane.b32.xlu0 %v980, 125
        %v986 = vpop.permute.xlu0 %985
        %v989 = vadd.f32 %v975, %v984
        %v990 = vadd.f32 %v976, %v986
        %s991 = sld [smem:[#allocation11 + $0x20]]
        %v992 = vstv %s991
        %v993 = vmul.f32 %v992, %v942
        %v994 = vmul.f32 %v992, %v943
        %997 = vrot.lane.b32.xlu0 %v993, 124
        %v998 = vpop.permute.xlu0 %997
        %999 = vrot.lane.b32.xlu0 %v994, 124
        %v1000 = vpop.permute.xlu0 %999
        %v1003 = vadd.f32 %v989, %v998
        %v1004 = vadd.f32 %v990, %v1000
        %s1005 = sld [smem:[#allocation11 + $0x21]]
        %v1006 = vstv %s1005
        %v1007 = vmul.f32 %v1006, %v942
        %v1008 = vmul.f32 %v1006, %v943
        %1011 = vrot.lane.b32.xlu0 %v1007, 123
        %v1012 = vpop.permute.xlu0 %1011
        %1013 = vrot.lane.b32.xlu0 %v1008, 123
        %v1014 = vpop.permute.xlu0 %1013
        %v1017 = vadd.f32 %v1003, %v1012
        %v1018 = vadd.f32 %v1004, %v1014
        %s1019 = sld [smem:[#allocation11 + $0x22]]
        %v1020 = vstv %s1019
        %v1021 = vmul.f32 %v1020, %v942
        %v1022 = vmul.f32 %v1020, %v943
        %1025 = vrot.lane.b32.xlu0 %v1021, 122
        %v1026 = vpop.permute.xlu0 %1025
        %1027 = vrot.lane.b32.xlu0 %v1022, 122
        %v1028 = vpop.permute.xlu0 %1027
        %v1031 = vadd.f32 %v1017, %v1026
        %v1032 = vadd.f32 %v1018, %v1028
        %s1033 = sld [smem:[#allocation11 + $0x23]]
        %v1034 = vld [vmem:[#allocation2 + $0x5] sm:$0xff]
        %v1035 = vld [vmem:[#allocation2 + $0xd] sm:$0xff]
        %v1036 = vstv %s1033
        %v1037 = vmul.f32 %v1036, %v1034
        %v1038 = vmul.f32 %v1036, %v1035
        %v1039 = vadd.f32 %v1031, %v1037
        %v1040 = vadd.f32 %v1032, %v1038
        %s1041 = sld [smem:[#allocation11 + $0x24]]
        %v1042 = vstv %s1041
        %v1043 = vmul.f32 %v1042, %v1034
        %v1044 = vmul.f32 %v1042, %v1035
        %1047 = vrot.lane.b32.xlu0 %v1043, 127
        %v1048 = vpop.permute.xlu0 %1047
        %1049 = vrot.lane.b32.xlu0 %v1044, 127
        %v1050 = vpop.permute.xlu0 %1049
        %v1053 = vadd.f32 %v1039, %v1048
        %v1054 = vadd.f32 %v1040, %v1050
        %s1055 = sld [smem:[#allocation11 + $0x25]]
        %v1056 = vstv %s1055
        %v1057 = vmul.f32 %v1056, %v1034
        %v1058 = vmul.f32 %v1056, %v1035
        %1061 = vrot.lane.b32.xlu0 %v1057, 126
        %v1062 = vpop.permute.xlu0 %1061
        %1063 = vrot.lane.b32.xlu0 %v1058, 126
        %v1064 = vpop.permute.xlu0 %1063
        %v1067 = vadd.f32 %v1053, %v1062
        %v1068 = vadd.f32 %v1054, %v1064
        %s1069 = sld [smem:[#allocation11 + $0x26]]
        %v1070 = vstv %s1069
        %v1071 = vmul.f32 %v1070, %v1034
        %v1072 = vmul.f32 %v1070, %v1035
        %1075 = vrot.lane.b32.xlu0 %v1071, 125
        %v1076 = vpop.permute.xlu0 %1075
        %1077 = vrot.lane.b32.xlu0 %v1072, 125
        %v1078 = vpop.permute.xlu0 %1077
        %v1081 = vadd.f32 %v1067, %v1076
        %v1082 = vadd.f32 %v1068, %v1078
        %s1083 = sld [smem:[#allocation11 + $0x27]]
        %v1084 = vstv %s1083
        %v1085 = vmul.f32 %v1084, %v1034
        %v1086 = vmul.f32 %v1084, %v1035
        %1089 = vrot.lane.b32.xlu0 %v1085, 124
        %v1090 = vpop.permute.xlu0 %1089
        %1091 = vrot.lane.b32.xlu0 %v1086, 124
        %v1092 = vpop.permute.xlu0 %1091
        %v1095 = vadd.f32 %v1081, %v1090
        %v1096 = vadd.f32 %v1082, %v1092
        %s1097 = sld [smem:[#allocation11 + $0x28]]
        %v1098 = vstv %s1097
        %v1099 = vmul.f32 %v1098, %v1034
        %v1100 = vmul.f32 %v1098, %v1035
        %1103 = vrot.lane.b32.xlu0 %v1099, 123
        %v1104 = vpop.permute.xlu0 %1103
        %1105 = vrot.lane.b32.xlu0 %v1100, 123
        %v1106 = vpop.permute.xlu0 %1105
        %v1109 = vadd.f32 %v1095, %v1104
        %v1110 = vadd.f32 %v1096, %v1106
        %s1111 = sld [smem:[#allocation11 + $0x29]]
        %v1112 = vstv %s1111
        %v1113 = vmul.f32 %v1112, %v1034
        %v1114 = vmul.f32 %v1112, %v1035
        %1117 = vrot.lane.b32.xlu0 %v1113, 122
        %v1118 = vpop.permute.xlu0 %1117
        %1119 = vrot.lane.b32.xlu0 %v1114, 122
        %v1120 = vpop.permute.xlu0 %1119
        %v1123 = vadd.f32 %v1109, %v1118
        %v1124 = vadd.f32 %v1110, %v1120
        %s1125 = sld [smem:[#allocation11 + $0x2a]]
        %v1126 = vld [vmem:[#allocation2 + $0x6] sm:$0xff]
        %v1127 = vld [vmem:[#allocation2 + $0xe] sm:$0xff]
        %v1128 = vstv %s1125
        %v1129 = vmul.f32 %v1128, %v1126
        %v1130 = vmul.f32 %v1128, %v1127
        %v1131 = vadd.f32 %v1123, %v1129
        %v1132 = vadd.f32 %v1124, %v1130
        %s1133 = sld [smem:[#allocation11 + $0x2b]]
        %v1134 = vstv %s1133
        %v1135 = vmul.f32 %v1134, %v1126
        %v1136 = vmul.f32 %v1134, %v1127
        %1139 = vrot.lane.b32.xlu0 %v1135, 127
        %v1140 = vpop.permute.xlu0 %1139
        %1141 = vrot.lane.b32.xlu0 %v1136, 127
        %v1142 = vpop.permute.xlu0 %1141
        %v1145 = vadd.f32 %v1131, %v1140
        %v1146 = vadd.f32 %v1132, %v1142
        %s1147 = sld [smem:[#allocation11 + $0x2c]]
        %v1148 = vstv %s1147
        %v1149 = vmul.f32 %v1148, %v1126
        %v1150 = vmul.f32 %v1148, %v1127
        %1153 = vrot.lane.b32.xlu0 %v1149, 126
        %v1154 = vpop.permute.xlu0 %1153
        %1155 = vrot.lane.b32.xlu0 %v1150, 126
        %v1156 = vpop.permute.xlu0 %1155
        %v1159 = vadd.f32 %v1145, %v1154
        %v1160 = vadd.f32 %v1146, %v1156
        %s1161 = sld [smem:[#allocation11 + $0x2d]]
        %v1162 = vstv %s1161
        %v1163 = vmul.f32 %v1162, %v1126
        %v1164 = vmul.f32 %v1162, %v1127
        %1167 = vrot.lane.b32.xlu0 %v1163, 125
        %v1168 = vpop.permute.xlu0 %1167
        %1169 = vrot.lane.b32.xlu0 %v1164, 125
        %v1170 = vpop.permute.xlu0 %1169
        %v1173 = vadd.f32 %v1159, %v1168
        %v1174 = vadd.f32 %v1160, %v1170
        %s1175 = sld [smem:[#allocation11 + $0x2e]]
        %v1176 = vstv %s1175
        %v1177 = vmul.f32 %v1176, %v1126
        %v1178 = vmul.f32 %v1176, %v1127
        %1181 = vrot.lane.b32.xlu0 %v1177, 124
        %v1182 = vpop.permute.xlu0 %1181
        %1183 = vrot.lane.b32.xlu0 %v1178, 124
        %v1184 = vpop.permute.xlu0 %1183
        %v1187 = vadd.f32 %v1173, %v1182
        %v1188 = vadd.f32 %v1174, %v1184
        %s1189 = sld [smem:[#allocation11 + $0x2f]]
        %v1190 = vstv %s1189
        %v1191 = vmul.f32 %v1190, %v1126
        %v1192 = vmul.f32 %v1190, %v1127
        %1195 = vrot.lane.b32.xlu0 %v1191, 123
        %v1196 = vpop.permute.xlu0 %1195
        %1197 = vrot.lane.b32.xlu0 %v1192, 123
        %v1198 = vpop.permute.xlu0 %1197
        %v1201 = vadd.f32 %v1187, %v1196
        %v1202 = vadd.f32 %v1188, %v1198
        %s1203 = sld [smem:[#allocation11 + $0x30]]
        %v1204 = vstv %s1203
        %v1205 = vmul.f32 %v1204, %v1126
        %v1206 = vmul.f32 %v1204, %v1127
        %1209 = vrot.lane.b32.xlu0 %v1205, 122
        %v1210 = vpop.permute.xlu0 %1209
        %1211 = vrot.lane.b32.xlu0 %v1206, 122
        %v1212 = vpop.permute.xlu0 %1211
        %v1215 = vadd.f32 %v1201, %v1210
        %v1216 = vadd.f32 %v1202, %v1212
        %s1217 = sld [smem:[#allocation11 + $0x31]]
        %v1218 = vld [vmem:[%s449] sm:$0xff]
        %v1219 = vld [vmem:[%s449 + $0x8] sm:$0xff]
        %v1220 = vstv %s1217
        %v1221 = vmul.f32 %v1220, %v1218
        %v1222 = vmul.f32 %v1220, %v1219
        %v1223 = vadd.f32 %v1215, %v1221
        %v1224 = vadd.f32 %v1216, %v1222
        %s1225 = sld [smem:[#allocation11 + $0x32]]
        %v1226 = vstv %s1225
        %v1227 = vmul.f32 %v1226, %v1218
        %v1228 = vmul.f32 %v1226, %v1219
        %1231 = vrot.lane.b32.xlu0 %v1227, 127
        %v1232 = vpop.permute.xlu0 %1231
        %1233 = vrot.lane.b32.xlu0 %v1228, 127
        %v1234 = vpop.permute.xlu0 %1233
        %v1237 = vadd.f32 %v1223, %v1232
        %v1238 = vadd.f32 %v1224, %v1234
        %s1239 = sld [smem:[#allocation11 + $0x33]]
        %v1240 = vstv %s1239
        %v1241 = vmul.f32 %v1240, %v1218
        %v1242 = vmul.f32 %v1240, %v1219
        %1245 = vrot.lane.b32.xlu0 %v1241, 126
        %v1246 = vpop.permute.xlu0 %1245
        %1247 = vrot.lane.b32.xlu0 %v1242, 126
        %v1248 = vpop.permute.xlu0 %1247
        %v1251 = vadd.f32 %v1237, %v1246
        %v1252 = vadd.f32 %v1238, %v1248
        %s1253 = sld [smem:[#allocation11 + $0x34]]
        %v1254 = vstv %s1253
        %v1255 = vmul.f32 %v1254, %v1218
        %v1256 = vmul.f32 %v1254, %v1219
        %1259 = vrot.lane.b32.xlu0 %v1255, 125
        %v1260 = vpop.permute.xlu0 %1259
        %1261 = vrot.lane.b32.xlu0 %v1256, 125
        %v1262 = vpop.permute.xlu0 %1261
        %v1265 = vadd.f32 %v1251, %v1260
        %v1266 = vadd.f32 %v1252, %v1262
        %s1267 = sld [smem:[#allocation11 + $0x35]]
        %v1268 = vstv %s1267
        %v1269 = vmul.f32 %v1268, %v1218
        %v1270 = vmul.f32 %v1268, %v1219
        %1273 = vrot.lane.b32.xlu0 %v1269, 124
        %v1274 = vpop.permute.xlu0 %1273
        %1275 = vrot.lane.b32.xlu0 %v1270, 124
        %v1276 = vpop.permute.xlu0 %1275
        %v1279 = vadd.f32 %v1265, %v1274
        %v1280 = vadd.f32 %v1266, %v1276
        %s1281 = sld [smem:[#allocation11 + $0x36]]
        %v1282 = vstv %s1281
        %v1283 = vmul.f32 %v1282, %v1218
        %v1284 = vmul.f32 %v1282, %v1219
        %1287 = vrot.lane.b32.xlu0 %v1283, 123
        %v1288 = vpop.permute.xlu0 %1287
        %1289 = vrot.lane.b32.xlu0 %v1284, 123
        %v1290 = vpop.permute.xlu0 %1289
        %v1293 = vadd.f32 %v1279, %v1288
        %v1294 = vadd.f32 %v1280, %v1290
        %s1295 = sld [smem:[#allocation11 + $0x37]]
        %v1296 = vstv %s1295
        %v1297 = vmul.f32 %v1296, %v1218
        %v1298 = vmul.f32 %v1296, %v1219
        %1301 = vrot.lane.b32.xlu0 %v1297, 122
        %v1302 = vpop.permute.xlu0 %1301
        %1303 = vrot.lane.b32.xlu0 %v1298, 122
        %v1304 = vpop.permute.xlu0 %1303
        %v1307 = vadd.f32 %v1293, %v1302
        %v1308 = vadd.f32 %v1294, %v1304
        %s1309 = sld [smem:[#allocation11 + $0x38]]
        %v1310 = vld [vmem:[%s449 + $0x1] sm:$0xff]
        %v1311 = vld [vmem:[%s449 + $0x9] sm:$0xff]
        %v1312 = vstv %s1309
        %v1313 = vmul.f32 %v1312, %v1310
        %v1314 = vmul.f32 %v1312, %v1311
        %v1315 = vadd.f32 %v1307, %v1313
        %v1316 = vadd.f32 %v1308, %v1314
        %s1317 = sld [smem:[#allocation11 + $0x39]]
        %v1318 = vstv %s1317
        %v1319 = vmul.f32 %v1318, %v1310
        %v1320 = vmul.f32 %v1318, %v1311
        %1323 = vrot.lane.b32.xlu0 %v1319, 127
        %v1324 = vpop.permute.xlu0 %1323
        %1325 = vrot.lane.b32.xlu0 %v1320, 127
        %v1326 = vpop.permute.xlu0 %1325
        %v1329 = vadd.f32 %v1315, %v1324
        %v1330 = vadd.f32 %v1316, %v1326
        %s1331 = sld [smem:[#allocation11 + $0x3a]]
        %v1332 = vstv %s1331
        %v1333 = vmul.f32 %v1332, %v1310
        %v1334 = vmul.f32 %v1332, %v1311
        %1337 = vrot.lane.b32.xlu0 %v1333, 126
        %v1338 = vpop.permute.xlu0 %1337
        %1339 = vrot.lane.b32.xlu0 %v1334, 126
        %v1340 = vpop.permute.xlu0 %1339
        %v1343 = vadd.f32 %v1329, %v1338
        %v1344 = vadd.f32 %v1330, %v1340
        %s1345 = sld [smem:[#allocation11 + $0x3b]]
        %v1346 = vstv %s1345
        %v1347 = vmul.f32 %v1346, %v1310
        %v1348 = vmul.f32 %v1346, %v1311
        %1351 = vrot.lane.b32.xlu0 %v1347, 125
        %v1352 = vpop.permute.xlu0 %1351
        %1353 = vrot.lane.b32.xlu0 %v1348, 125
        %v1354 = vpop.permute.xlu0 %1353
        %v1357 = vadd.f32 %v1343, %v1352
        %v1358 = vadd.f32 %v1344, %v1354
        %s1359 = sld [smem:[#allocation11 + $0x3c]]
        %v1360 = vstv %s1359
        %v1361 = vmul.f32 %v1360, %v1310
        %v1362 = vmul.f32 %v1360, %v1311
        %1365 = vrot.lane.b32.xlu0 %v1361, 124
        %v1366 = vpop.permute.xlu0 %1365
        %1367 = vrot.lane.b32.xlu0 %v1362, 124
        %v1368 = vpop.permute.xlu0 %1367
        %v1371 = vadd.f32 %v1357, %v1366
        %v1372 = vadd.f32 %v1358, %v1368
        %s1373 = sld [smem:[#allocation11 + $0x3d]]
        %v1374 = vstv %s1373
        %v1375 = vmul.f32 %v1374, %v1310
        %v1376 = vmul.f32 %v1374, %v1311
        %1379 = vrot.lane.b32.xlu0 %v1375, 123
        %v1380 = vpop.permute.xlu0 %1379
        %1381 = vrot.lane.b32.xlu0 %v1376, 123
        %v1382 = vpop.permute.xlu0 %1381
        %v1385 = vadd.f32 %v1371, %v1380
        %v1386 = vadd.f32 %v1372, %v1382
        %s1387 = sld [smem:[#allocation11 + $0x3e]]
        %v1388 = vstv %s1387
        %v1389 = vmul.f32 %v1388, %v1310
        %v1390 = vmul.f32 %v1388, %v1311
        %1393 = vrot.lane.b32.xlu0 %v1389, 122
        %v1394 = vpop.permute.xlu0 %1393
        %1395 = vrot.lane.b32.xlu0 %v1390, 122
        %v1396 = vpop.permute.xlu0 %1395
        %v1399 = vadd.f32 %v1385, %v1394
        %v1400 = vadd.f32 %v1386, %v1396
        %s1401 = sld [smem:[#allocation11 + $0x3f]]
        %v1402 = vld [vmem:[%s449 + $0x2] sm:$0xff]
        %v1403 = vld [vmem:[%s449 + $0xa] sm:$0xff]
        %v1404 = vstv %s1401
        %v1405 = vmul.f32 %v1404, %v1402
        %v1406 = vmul.f32 %v1404, %v1403
        %v1407 = vadd.f32 %v1399, %v1405
        %v1408 = vadd.f32 %v1400, %v1406
        %s1409 = sld [smem:[#allocation11 + $0x40]]
        %v1410 = vstv %s1409
        %v1411 = vmul.f32 %v1410, %v1402
        %v1412 = vmul.f32 %v1410, %v1403
        %1415 = vrot.lane.b32.xlu0 %v1411, 127
        %v1416 = vpop.permute.xlu0 %1415
        %1417 = vrot.lane.b32.xlu0 %v1412, 127
        %v1418 = vpop.permute.xlu0 %1417
        %v1421 = vadd.f32 %v1407, %v1416
        %v1422 = vadd.f32 %v1408, %v1418
        %s1423 = sld [smem:[#allocation11 + $0x41]]
        %v1424 = vstv %s1423
        %v1425 = vmul.f32 %v1424, %v1402
        %v1426 = vmul.f32 %v1424, %v1403
        %1429 = vrot.lane.b32.xlu0 %v1425, 126
        %v1430 = vpop.permute.xlu0 %1429
        %1431 = vrot.lane.b32.xlu0 %v1426, 126
        %v1432 = vpop.permute.xlu0 %1431
        %v1435 = vadd.f32 %v1421, %v1430
        %v1436 = vadd.f32 %v1422, %v1432
        %s1437 = sld [smem:[#allocation11 + $0x42]]
        %v1438 = vstv %s1437
        %v1439 = vmul.f32 %v1438, %v1402
        %v1440 = vmul.f32 %v1438, %v1403
        %1443 = vrot.lane.b32.xlu0 %v1439, 125
        %v1444 = vpop.permute.xlu0 %1443
        %1445 = vrot.lane.b32.xlu0 %v1440, 125
        %v1446 = vpop.permute.xlu0 %1445
        %v1449 = vadd.f32 %v1435, %v1444
        %v1450 = vadd.f32 %v1436, %v1446
        %s1451 = sld [smem:[#allocation11 + $0x43]]
        %v1452 = vstv %s1451
        %v1453 = vmul.f32 %v1452, %v1402
        %v1454 = vmul.f32 %v1452, %v1403
        %1457 = vrot.lane.b32.xlu0 %v1453, 124
        %v1458 = vpop.permute.xlu0 %1457
        %1459 = vrot.lane.b32.xlu0 %v1454, 124
        %v1460 = vpop.permute.xlu0 %1459
        %v1463 = vadd.f32 %v1449, %v1458
        %v1464 = vadd.f32 %v1450, %v1460
        %s1465 = sld [smem:[#allocation11 + $0x44]]
        %v1466 = vstv %s1465
        %v1467 = vmul.f32 %v1466, %v1402
        %v1468 = vmul.f32 %v1466, %v1403
        %1471 = vrot.lane.b32.xlu0 %v1467, 123
        %v1472 = vpop.permute.xlu0 %1471
        %1473 = vrot.lane.b32.xlu0 %v1468, 123
        %v1474 = vpop.permute.xlu0 %1473
        %v1477 = vadd.f32 %v1463, %v1472
        %v1478 = vadd.f32 %v1464, %v1474
        %s1479 = sld [smem:[#allocation11 + $0x45]]
        %v1480 = vstv %s1479
        %v1481 = vmul.f32 %v1480, %v1402
        %v1482 = vmul.f32 %v1480, %v1403
        %1485 = vrot.lane.b32.xlu0 %v1481, 122
        %v1486 = vpop.permute.xlu0 %1485
        %1487 = vrot.lane.b32.xlu0 %v1482, 122
        %v1488 = vpop.permute.xlu0 %1487
        %v1491 = vadd.f32 %v1477, %v1486
        %v1492 = vadd.f32 %v1478, %v1488
        %s1493 = sld [smem:[#allocation11 + $0x46]]
        %v1494 = vld [vmem:[%s449 + $0x3] sm:$0xff]
        %v1495 = vld [vmem:[%s449 + $0xb] sm:$0xff]
        %v1496 = vstv %s1493
        %v1497 = vmul.f32 %v1496, %v1494
        %v1498 = vmul.f32 %v1496, %v1495
        %v1499 = vadd.f32 %v1491, %v1497
        %v1500 = vadd.f32 %v1492, %v1498
        %s1501 = sld [smem:[#allocation11 + $0x47]]
        %v1502 = vstv %s1501
        %v1503 = vmul.f32 %v1502, %v1494
        %v1504 = vmul.f32 %v1502, %v1495
        %1507 = vrot.lane.b32.xlu0 %v1503, 127
        %v1508 = vpop.permute.xlu0 %1507
        %1509 = vrot.lane.b32.xlu0 %v1504, 127
        %v1510 = vpop.permute.xlu0 %1509
        %v1513 = vadd.f32 %v1499, %v1508
        %v1514 = vadd.f32 %v1500, %v1510
        %s1515 = sld [smem:[#allocation11 + $0x48]]
        %v1516 = vstv %s1515
        %v1517 = vmul.f32 %v1516, %v1494
        %v1518 = vmul.f32 %v1516, %v1495
        %1521 = vrot.lane.b32.xlu0 %v1517, 126
        %v1522 = vpop.permute.xlu0 %1521
        %1523 = vrot.lane.b32.xlu0 %v1518, 126
        %v1524 = vpop.permute.xlu0 %1523
        %v1527 = vadd.f32 %v1513, %v1522
        %v1528 = vadd.f32 %v1514, %v1524
        %s1529 = sld [smem:[#allocation11 + $0x49]]
        %v1530 = vstv %s1529
        %v1531 = vmul.f32 %v1530, %v1494
        %v1532 = vmul.f32 %v1530, %v1495
        %1535 = vrot.lane.b32.xlu0 %v1531, 125
        %v1536 = vpop.permute.xlu0 %1535
        %1537 = vrot.lane.b32.xlu0 %v1532, 125
        %v1538 = vpop.permute.xlu0 %1537
        %v1541 = vadd.f32 %v1527, %v1536
        %v1542 = vadd.f32 %v1528, %v1538
        %s1543 = sld [smem:[#allocation11 + $0x4a]]
        %v1544 = vstv %s1543
        %v1545 = vmul.f32 %v1544, %v1494
        %v1546 = vmul.f32 %v1544, %v1495
        %1549 = vrot.lane.b32.xlu0 %v1545, 124
        %v1550 = vpop.permute.xlu0 %1549
        %1551 = vrot.lane.b32.xlu0 %v1546, 124
        %v1552 = vpop.permute.xlu0 %1551
        %v1555 = vadd.f32 %v1541, %v1550
        %v1556 = vadd.f32 %v1542, %v1552
        %s1557 = sld [smem:[#allocation11 + $0x4b]]
        %v1558 = vstv %s1557
        %v1559 = vmul.f32 %v1558, %v1494
        %v1560 = vmul.f32 %v1558, %v1495
        %1563 = vrot.lane.b32.xlu0 %v1559, 123
        %v1564 = vpop.permute.xlu0 %1563
        %1565 = vrot.lane.b32.xlu0 %v1560, 123
        %v1566 = vpop.permute.xlu0 %1565
        %v1569 = vadd.f32 %v1555, %v1564
        %v1570 = vadd.f32 %v1556, %v1566
        %s1571 = sld [smem:[#allocation11 + $0x4c]]
        %v1572 = vstv %s1571
        %v1573 = vmul.f32 %v1572, %v1494
        %v1574 = vmul.f32 %v1572, %v1495
        %1577 = vrot.lane.b32.xlu0 %v1573, 122
        %v1578 = vpop.permute.xlu0 %1577
        %1579 = vrot.lane.b32.xlu0 %v1574, 122
        %v1580 = vpop.permute.xlu0 %1579
        %v1583 = vadd.f32 %v1569, %v1578
        %v1584 = vadd.f32 %v1570, %v1580
        %s1585 = sld [smem:[#allocation11 + $0x4d]]
        %v1586 = vld [vmem:[%s449 + $0x4] sm:$0xff]
        %v1587 = vld [vmem:[%s449 + $0xc] sm:$0xff]
        %v1588 = vstv %s1585
        %v1589 = vmul.f32 %v1588, %v1586
        %v1590 = vmul.f32 %v1588, %v1587
        %v1591 = vadd.f32 %v1583, %v1589
        %v1592 = vadd.f32 %v1584, %v1590
        %s1593 = sld [smem:[#allocation11 + $0x4e]]
        %v1594 = vstv %s1593
        %v1595 = vmul.f32 %v1594, %v1586
        %v1596 = vmul.f32 %v1594, %v1587
        %1599 = vrot.lane.b32.xlu0 %v1595, 127
        %v1600 = vpop.permute.xlu0 %1599
        %1601 = vrot.lane.b32.xlu0 %v1596, 127
        %v1602 = vpop.permute.xlu0 %1601
        %v1605 = vadd.f32 %v1591, %v1600
        %v1606 = vadd.f32 %v1592, %v1602
        %s1607 = sld [smem:[#allocation11 + $0x4f]]
        %v1608 = vstv %s1607
        %v1609 = vmul.f32 %v1608, %v1586
        %v1610 = vmul.f32 %v1608, %v1587
        %1613 = vrot.lane.b32.xlu0 %v1609, 126
        %v1614 = vpop.permute.xlu0 %1613
        %1615 = vrot.lane.b32.xlu0 %v1610, 126
        %v1616 = vpop.permute.xlu0 %1615
        %v1619 = vadd.f32 %v1605, %v1614
        %v1620 = vadd.f32 %v1606, %v1616
        %s1621 = sld [smem:[#allocation11 + $0x50]]
        %v1622 = vstv %s1621
        %v1623 = vmul.f32 %v1622, %v1586
        %v1624 = vmul.f32 %v1622, %v1587
        %1627 = vrot.lane.b32.xlu0 %v1623, 125
        %v1628 = vpop.permute.xlu0 %1627
        %1629 = vrot.lane.b32.xlu0 %v1624, 125
        %v1630 = vpop.permute.xlu0 %1629
        %v1633 = vadd.f32 %v1619, %v1628
        %v1634 = vadd.f32 %v1620, %v1630
        %s1635 = sld [smem:[#allocation11 + $0x51]]
        %v1636 = vstv %s1635
        %v1637 = vmul.f32 %v1636, %v1586
        %v1638 = vmul.f32 %v1636, %v1587
        %1641 = vrot.lane.b32.xlu0 %v1637, 124
        %v1642 = vpop.permute.xlu0 %1641
        %1643 = vrot.lane.b32.xlu0 %v1638, 124
        %v1644 = vpop.permute.xlu0 %1643
        %v1647 = vadd.f32 %v1633, %v1642
        %v1648 = vadd.f32 %v1634, %v1644
        %s1649 = sld [smem:[#allocation11 + $0x52]]
        %v1650 = vstv %s1649
        %v1651 = vmul.f32 %v1650, %v1586
        %v1652 = vmul.f32 %v1650, %v1587
        %1655 = vrot.lane.b32.xlu0 %v1651, 123
        %v1656 = vpop.permute.xlu0 %1655
        %1657 = vrot.lane.b32.xlu0 %v1652, 123
        %v1658 = vpop.permute.xlu0 %1657
        %v1661 = vadd.f32 %v1647, %v1656
        %v1662 = vadd.f32 %v1648, %v1658
        %s1663 = sld [smem:[#allocation11 + $0x53]]
        %v1664 = vstv %s1663
        %v1665 = vmul.f32 %v1664, %v1586
        %v1666 = vmul.f32 %v1664, %v1587
        %1669 = vrot.lane.b32.xlu0 %v1665, 122
        %v1670 = vpop.permute.xlu0 %1669
        %1671 = vrot.lane.b32.xlu0 %v1666, 122
        %v1672 = vpop.permute.xlu0 %1671
        %v1675 = vadd.f32 %v1661, %v1670
        %v1676 = vadd.f32 %v1662, %v1672
        %s1677 = sld [smem:[#allocation11 + $0x54]]
        %v1678 = vld [vmem:[%s449 + $0x5] sm:$0xff]
        %v1679 = vld [vmem:[%s449 + $0xd] sm:$0xff]
        %v1680 = vstv %s1677
        %v1681 = vmul.f32 %v1680, %v1678
        %v1682 = vmul.f32 %v1680, %v1679
        %v1683 = vadd.f32 %v1675, %v1681
        %v1684 = vadd.f32 %v1676, %v1682
        %s1685 = sld [smem:[#allocation11 + $0x55]]
        %v1686 = vstv %s1685
        %v1687 = vmul.f32 %v1686, %v1678
        %v1688 = vmul.f32 %v1686, %v1679
        %1691 = vrot.lane.b32.xlu0 %v1687, 127
        %v1692 = vpop.permute.xlu0 %1691
        %1693 = vrot.lane.b32.xlu0 %v1688, 127
        %v1694 = vpop.permute.xlu0 %1693
        %v1697 = vadd.f32 %v1683, %v1692
        %v1698 = vadd.f32 %v1684, %v1694
        %s1699 = sld [smem:[#allocation11 + $0x56]]
        %v1700 = vstv %s1699
        %v1701 = vmul.f32 %v1700, %v1678
        %v1702 = vmul.f32 %v1700, %v1679
        %1705 = vrot.lane.b32.xlu0 %v1701, 126
        %v1706 = vpop.permute.xlu0 %1705
        %1707 = vrot.lane.b32.xlu0 %v1702, 126
        %v1708 = vpop.permute.xlu0 %1707
        %v1711 = vadd.f32 %v1697, %v1706
        %v1712 = vadd.f32 %v1698, %v1708
        %s1713 = sld [smem:[#allocation11 + $0x57]]
        %v1714 = vstv %s1713
        %v1715 = vmul.f32 %v1714, %v1678
        %v1716 = vmul.f32 %v1714, %v1679
        %1719 = vrot.lane.b32.xlu0 %v1715, 125
        %v1720 = vpop.permute.xlu0 %1719
        %1721 = vrot.lane.b32.xlu0 %v1716, 125
        %v1722 = vpop.permute.xlu0 %1721
        %v1725 = vadd.f32 %v1711, %v1720
        %v1726 = vadd.f32 %v1712, %v1722
        %s1727 = sld [smem:[#allocation11 + $0x58]]
        %v1728 = vstv %s1727
        %v1729 = vmul.f32 %v1728, %v1678
        %v1730 = vmul.f32 %v1728, %v1679
        %1733 = vrot.lane.b32.xlu0 %v1729, 124
        %v1734 = vpop.permute.xlu0 %1733
        %1735 = vrot.lane.b32.xlu0 %v1730, 124
        %v1736 = vpop.permute.xlu0 %1735
        %v1739 = vadd.f32 %v1725, %v1734
        %v1740 = vadd.f32 %v1726, %v1736
        %s1741 = sld [smem:[#allocation11 + $0x59]]
        %v1742 = vstv %s1741
        %v1743 = vmul.f32 %v1742, %v1678
        %v1744 = vmul.f32 %v1742, %v1679
        %1747 = vrot.lane.b32.xlu0 %v1743, 123
        %v1748 = vpop.permute.xlu0 %1747
        %1749 = vrot.lane.b32.xlu0 %v1744, 123
        %v1750 = vpop.permute.xlu0 %1749
        %v1753 = vadd.f32 %v1739, %v1748
        %v1754 = vadd.f32 %v1740, %v1750
        %s1755 = sld [smem:[#allocation11 + $0x5a]]
        %v1756 = vstv %s1755
        %v1757 = vmul.f32 %v1756, %v1678
        %v1758 = vmul.f32 %v1756, %v1679
        %1761 = vrot.lane.b32.xlu0 %v1757, 122
        %v1762 = vpop.permute.xlu0 %1761
        %1763 = vrot.lane.b32.xlu0 %v1758, 122
        %v1764 = vpop.permute.xlu0 %1763
        %v1767 = vadd.f32 %v1753, %v1762
        %v1768 = vadd.f32 %v1754, %v1764
        %s1769 = sld [smem:[#allocation11 + $0x5b]]
        %v1770 = vld [vmem:[%s449 + $0x6] sm:$0xff]
        %v1771 = vld [vmem:[%s449 + $0xe] sm:$0xff]
        %v1772 = vstv %s1769
        %v1773 = vmul.f32 %v1772, %v1770
        %v1774 = vmul.f32 %v1772, %v1771
        %v1775 = vadd.f32 %v1767, %v1773
        %v1776 = vadd.f32 %v1768, %v1774
        %s1777 = sld [smem:[#allocation11 + $0x5c]]
        %v1778 = vstv %s1777
        %v1779 = vmul.f32 %v1778, %v1770
        %v1780 = vmul.f32 %v1778, %v1771
        %1783 = vrot.lane.b32.xlu0 %v1779, 127
        %v1784 = vpop.permute.xlu0 %1783
        %1785 = vrot.lane.b32.xlu0 %v1780, 127
        %v1786 = vpop.permute.xlu0 %1785
        %v1789 = vadd.f32 %v1775, %v1784
        %v1790 = vadd.f32 %v1776, %v1786
        %s1791 = sld [smem:[#allocation11 + $0x5d]]
        %v1792 = vstv %s1791
        %v1793 = vmul.f32 %v1792, %v1770
        %v1794 = vmul.f32 %v1792, %v1771
        %1797 = vrot.lane.b32.xlu0 %v1793, 126
        %v1798 = vpop.permute.xlu0 %1797
        %1799 = vrot.lane.b32.xlu0 %v1794, 126
        %v1800 = vpop.permute.xlu0 %1799
        %v1803 = vadd.f32 %v1789, %v1798
        %v1804 = vadd.f32 %v1790, %v1800
        %s1805 = sld [smem:[#allocation11 + $0x5e]]
        %v1806 = vstv %s1805
        %v1807 = vmul.f32 %v1806, %v1770
        %v1808 = vmul.f32 %v1806, %v1771
        %1811 = vrot.lane.b32.xlu0 %v1807, 125
        %v1812 = vpop.permute.xlu0 %1811
        %1813 = vrot.lane.b32.xlu0 %v1808, 125
        %v1814 = vpop.permute.xlu0 %1813
        %v1817 = vadd.f32 %v1803, %v1812
        %v1818 = vadd.f32 %v1804, %v1814
        %s1819 = sld [smem:[#allocation11 + $0x5f]]
        %v1820 = vstv %s1819
        %v1821 = vmul.f32 %v1820, %v1770
        %v1822 = vmul.f32 %v1820, %v1771
        %1825 = vrot.lane.b32.xlu0 %v1821, 124
        %v1826 = vpop.permute.xlu0 %1825
        %1827 = vrot.lane.b32.xlu0 %v1822, 124
        %v1828 = vpop.permute.xlu0 %1827
        %v1831 = vadd.f32 %v1817, %v1826
        %v1832 = vadd.f32 %v1818, %v1828
        %s1833 = sld [smem:[#allocation11 + $0x60]]
        %v1834 = vstv %s1833
        %v1835 = vmul.f32 %v1834, %v1770
        %v1836 = vmul.f32 %v1834, %v1771
        %1839 = vrot.lane.b32.xlu0 %v1835, 123
        %v1840 = vpop.permute.xlu0 %1839
        %1841 = vrot.lane.b32.xlu0 %v1836, 123
        %v1842 = vpop.permute.xlu0 %1841
        %v1845 = vadd.f32 %v1831, %v1840
        %v1846 = vadd.f32 %v1832, %v1842
        %s1847 = sld [smem:[#allocation11 + $0x61]]
        %v1848 = vstv %s1847
        %v1849 = vmul.f32 %v1848, %v1770
        %v1850 = vmul.f32 %v1848, %v1771
        %1853 = vrot.lane.b32.xlu0 %v1849, 122
        %v1854 = vpop.permute.xlu0 %1853
        %1855 = vrot.lane.b32.xlu0 %v1850, 122
        %v1856 = vpop.permute.xlu0 %1855
        %v1859 = vadd.f32 %v1845, %v1854
        %v1860 = vadd.f32 %v1846, %v1856
        %v1861 = vxor.u32 %v1859, 2147483648
        %v1862 = vxor.u32 %v1860, 2147483648
        %v1863 = vmul.f32 %v1861, 1.442695
        %v1864 = vpow.pop %v1863
        %v1865 = vmul.f32 %v1862, 1.442695
        %v1866 = vpow.pop %v1865
        %v1867 = vadd.f32 %v1864, 1.0
        %v1868 = vadd.f32 %v1866, 1.0
        %v1869 = vrcp.pop %v1867
        %v1870 = vmul.f32 %v1867, %v1869
        %v1871 = vsub.f32 1.0, %v1870
        %v1872 = vmul.f32 %v1869, %v1871
        %v1873 = vadd.f32 %v1869, %v1872
        %vm1874 = vweird.f32 %v1867
        %vm1875 = vweird.f32 %v1869
        %vm1876 = vmor %vm1874, %vm1875
        %v1877 = vsel %vm1876, %v1869, %v1873
        %v1878 = vand.u32 2147483647, %v1867
        %vm1879 = vcmp.eq.f32.partialorder %v1878, 8.507059e+37
        %v1880 = vand.u32 %v1867, 2147483648
        %v1881 = vor.u32 1.1754944e-38, %v1880
        %v1882 = vsel %vm1879, %v1881, %v1877
        %v1883 = vmul.f32 1.0, %v1882
        %v1884 = vrcp.pop %v1868
        %v1885 = vmul.f32 %v1868, %v1884
        %v1886 = vsub.f32 1.0, %v1885
        %v1887 = vmul.f32 %v1884, %v1886
        %v1888 = vadd.f32 %v1884, %v1887
        %vm1889 = vweird.f32 %v1868
        %vm1890 = vweird.f32 %v1884
        %vm1891 = vmor %vm1889, %vm1890
        %v1892 = vsel %vm1891, %v1884, %v1888
        %v1893 = vand.u32 2147483647, %v1868
        %vm1894 = vcmp.eq.f32.partialorder %v1893, 8.507059e+37
        %v1895 = vand.u32 %v1868, 2147483648
        %v1896 = vor.u32 1.1754944e-38, %v1895
        %v1897 = vsel %vm1894, %v1896, %v1892
        %v1898 = vmul.f32 1.0, %v1897
        %v1899 = vlaneseq
        %vm1900 = vcmp.ge.s32.totalorder %v1899, 0
        %vm1901 = vcmp.lt.s32.totalorder %v1899, 16
        %vm1902 = vmand %vm1900, %vm1901
        %1903 = vst.msk [vmem:[#allocation3] sm:$0x1] %vm1902, %v1883
        %1905 = vst [vmem:[#allocation1] sm:$0xff] %v1883
        %s1906 = scalar_lea.vmem [#allocation1], 1
        %v1907 = vld [vmem:[%s1906] ss:$9 sm:$0xff]
        %1908 = vrot.lane.b32.xlu0 %v1907, 16
        %v1909 = vpop.permute.xlu0 %1908
        %vm1911 = vcmp.ge.s32.totalorder %v1899, 16
        %vm1912 = vcmp.lt.s32.totalorder %v1899, 32
        %vm1913 = vmand %vm1911, %vm1912
        %1914 = vst.msk [vmem:[#allocation3] sm:$0x1] %vm1913, %v1909
        %1915 = vst [vmem:[#allocation1] sm:$0xff] %v1883
        %s1916 = scalar_lea.vmem [#allocation1], 2
        %v1917 = vld [vmem:[%s1916] ss:$9 sm:$0xff]
        %1918 = vrot.lane.b32.xlu0 %v1917, 32
        %v1919 = vpop.permute.xlu0 %1918
        %vm1921 = vcmp.ge.s32.totalorder %v1899, 32
        %vm1922 = vcmp.lt.s32.totalorder %v1899, 48
        %vm1923 = vmand %vm1921, %vm1922
        %1924 = vst.msk [vmem:[#allocation3] sm:$0x1] %vm1923, %v1919
        %1925 = vst [vmem:[#allocation1] sm:$0xff] %v1883
        %s1926 = scalar_lea.vmem [#allocation1], 3
        %v1927 = vld [vmem:[%s1926] ss:$9 sm:$0xff]
        %1928 = vrot.lane.b32.xlu0 %v1927, 48
        %v1929 = vpop.permute.xlu0 %1928
        %vm1931 = vcmp.ge.s32.totalorder %v1899, 48
        %vm1932 = vcmp.lt.s32.totalorder %v1899, 64
        %vm1933 = vmand %vm1931, %vm1932
        %1934 = vst.msk [vmem:[#allocation3] sm:$0x1] %vm1933, %v1929
        %1935 = vst [vmem:[#allocation1] sm:$0xff] %v1883
        %s1936 = scalar_lea.vmem [#allocation1], 4
        %v1937 = vld [vmem:[%s1936] ss:$9 sm:$0xff]
        %1938 = vrot.lane.b32.xlu0 %v1937, 64
        %v1939 = vpop.permute.xlu0 %1938
        %vm1941 = vcmp.ge.s32.totalorder %v1899, 64
        %vm1942 = vcmp.lt.s32.totalorder %v1899, 80
        %vm1943 = vmand %vm1941, %vm1942
        %1944 = vst.msk [vmem:[#allocation3] sm:$0x1] %vm1943, %v1939
        %1945 = vst [vmem:[#allocation1] sm:$0xff] %v1883
        %s1946 = scalar_lea.vmem [#allocation1], 5
        %v1947 = vld [vmem:[%s1946] ss:$9 sm:$0xff]
        %1948 = vrot.lane.b32.xlu0 %v1947, 80
        %v1949 = vpop.permute.xlu0 %1948
        %vm1951 = vcmp.ge.s32.totalorder %v1899, 80
        %vm1952 = vcmp.lt.s32.totalorder %v1899, 96
        %vm1953 = vmand %vm1951, %vm1952
        %1954 = vst.msk [vmem:[#allocation3] sm:$0x1] %vm1953, %v1949
        %1955 = vst [vmem:[#allocation1] sm:$0xff] %v1883
        %s1956 = scalar_lea.vmem [#allocation1], 6
        %v1957 = vld [vmem:[%s1956] ss:$9 sm:$0xff]
        %1958 = vrot.lane.b32.xlu0 %v1957, 96
        %v1959 = vpop.permute.xlu0 %1958
        %vm1961 = vcmp.ge.s32.totalorder %v1899, 96
        %vm1962 = vcmp.lt.s32.totalorder %v1899, 112
        %vm1963 = vmand %vm1961, %vm1962
        %1964 = vst.msk [vmem:[#allocation3] sm:$0x1] %vm1963, %v1959
        %1965 = vst [vmem:[#allocation1] sm:$0xff] %v1883
        %s1966 = scalar_lea.vmem [#allocation1], 7
        %v1967 = vld [vmem:[%s1966] ss:$9 sm:$0xff]
        %1968 = vrot.lane.b32.xlu0 %v1967, 112
        %v1969 = vpop.permute.xlu0 %1968
        %vm1971 = vcmp.ge.s32.totalorder %v1899, 112
        %vm1972 = vcmp.lt.s32.totalorder %v1899, 128
        %vm1973 = vmand %vm1971, %vm1972
        %1974 = vst.msk [vmem:[#allocation3] sm:$0x1] %vm1973, %v1969
        %1975 = vst.msk [vmem:[#allocation3 + $0x1] sm:$0x1] %vm1902, %v1898
        %1977 = vst [vmem:[#allocation1] sm:$0xff] %v1898
        %s1978 = scalar_lea.vmem [#allocation1], 1
        %v1979 = vld [vmem:[%s1978] ss:$9 sm:$0xff]
        %1980 = vrot.lane.b32.xlu0 %v1979, 16
        %v1981 = vpop.permute.xlu0 %1980
        %1983 = vst.msk [vmem:[#allocation3 + $0x1] sm:$0x1] %vm1913, %v1981
        %1984 = vst [vmem:[#allocation1] sm:$0xff] %v1898
        %s1985 = scalar_lea.vmem [#allocation1], 2
        %v1986 = vld [vmem:[%s1985] ss:$9 sm:$0xff]
        %1987 = vrot.lane.b32.xlu0 %v1986, 32
        %v1988 = vpop.permute.xlu0 %1987
        %1990 = vst.msk [vmem:[#allocation3 + $0x1] sm:$0x1] %vm1923, %v1988
        %1991 = vst [vmem:[#allocation1] sm:$0xff] %v1898
        %s1992 = scalar_lea.vmem [#allocation1], 3
        %v1993 = vld [vmem:[%s1992] ss:$9 sm:$0xff]
        %1994 = vrot.lane.b32.xlu0 %v1993, 48
        %v1995 = vpop.permute.xlu0 %1994
        %1997 = vst.msk [vmem:[#allocation3 + $0x1] sm:$0x1] %vm1933, %v1995
        %1998 = vst [vmem:[#allocation1] sm:$0xff] %v1898
        %s1999 = scalar_lea.vmem [#allocation1], 4
        %v2000 = vld [vmem:[%s1999] ss:$9 sm:$0xff]
        %2001 = vrot.lane.b32.xlu0 %v2000, 64
        %v2002 = vpop.permute.xlu0 %2001
        %2004 = vst.msk [vmem:[#allocation3 + $0x1] sm:$0x1] %vm1943, %v2002
        %2005 = vst [vmem:[#allocation1] sm:$0xff] %v1898
        %s2006 = scalar_lea.vmem [#allocation1], 5
        %v2007 = vld [vmem:[%s2006] ss:$9 sm:$0xff]
        %2008 = vrot.lane.b32.xlu0 %v2007, 80
        %v2009 = vpop.permute.xlu0 %2008
        %2011 = vst.msk [vmem:[#allocation3 + $0x1] sm:$0x1] %vm1953, %v2009
        %2012 = vst [vmem:[#allocation1] sm:$0xff] %v1898
        %s2013 = scalar_lea.vmem [#allocation1], 6
        %v2014 = vld [vmem:[%s2013] ss:$9 sm:$0xff]
        %2015 = vrot.lane.b32.xlu0 %v2014, 96
        %v2016 = vpop.permute.xlu0 %2015
        %2018 = vst.msk [vmem:[#allocation3 + $0x1] sm:$0x1] %vm1963, %v2016
        %2019 = vst [vmem:[#allocation1] sm:$0xff] %v1898
        %s2020 = scalar_lea.vmem [#allocation1], 7
        %v2021 = vld [vmem:[%s2020] ss:$9 sm:$0xff]
        %2022 = vrot.lane.b32.xlu0 %v2021, 112
        %v2023 = vpop.permute.xlu0 %2022
        %2025 = vst.msk [vmem:[#allocation3 + $0x1] sm:$0x1] %vm1973, %v2023
        %v2026 = vld [vmem:[#allocation3] sm:$0x3]
        %v2028 = vperm.slane %v2026, 0
        %v2029 = vperm.slane %v2026, 1
        %v2030 = vrot.slane %v2029, 4
        %v2031 = vsel %vm266, %v2028, %v2030
        %v2033 = vmul.f32 %v382, %v2031
        %v2034 = vadd.f32 %v382, %v2033
        %2035 = vst [vmem:[%s258] sm:$0xff] %v2034
        %s2036 = sand.u32 %s120, 1
        %s2037 = scalar_lea.sflag [#allocation6], %s2036
        %s2038 = sand.u32 %s120, 1
        %s2039 = smul.addr %s2038, 8
        %s2040 = scalar_lea.vmem [#allocation12], %s2039
        // Predicated region
        $region53: #{tpu_custom_call.1} parent=35 // pred_check
          %p2041 = pneg %p130
        $region54: #{tpu_custom_call.1} parent=35 // pred_check_branch
          %2043 = sbr.rel (%p2041) target = $region56
        $region55: #{tpu_custom_call.1} parent=35 // pred_region
          %2045 = vsyncadd %s2037, 0
          %s2046 = smul.addr %s23, 2
          %s2047 = smul.addr %s2046, 4
          %s2048 = scalar_lea.hbm %s4, %s2047
          %s2050 = sshll.u32 %s2040, 4
          %s2051 = int_to_ptr.vmem [resolvable:$true] %s2050
          %s2052 = sshll.u32 %s2048, 4
          %s2053 = int_to_ptr.hbm [resolvable:$true] %s2052
          %2055 = dma.vmem_to_hbm [thread:$0]  %s2051, 128, %s2053, %s2037
        $region56: #{tpu_custom_call.1} parent=35 // pred_fallthru
          _
      $region36: #{tpu_custom_call.1} parent=5 // pred_fallthru
        _
      %p2056 = scmp.le.s32.totalorder 2, %s18
      // Predicated region
      $region57: #{tpu_custom_call.1} parent=5 // pred_check
        %p2057 = pneg %p2056
      $region58: #{tpu_custom_call.1} parent=5 // pred_check_branch
        %2059 = sbr.rel (%p2057) target = $region60
      $region59: #{tpu_custom_call.1} parent=5 // pred_region
        %s2060 = ssub.s32 %s18, 2
        // Predicated region
        $region61: #{tpu_custom_call.1} parent=59 // pred_check
          %p2061 = pneg %p136
        $region62: #{tpu_custom_call.1} parent=59 // pred_check_branch
          %2063 = sbr.rel (%p2061) target = $region64
        $region63: #{tpu_custom_call.1} parent=59 // pred_region
          %s2064 = sand.u32 %s121, 1
          %s2065 = scalar_lea.sflag [#allocation6], %s2064
          %s2066 = sand.u32 %s121, 1
          %s2067 = smul.addr %s2066, 8
          %s2068 = scalar_lea.vmem [#allocation12], %s2067
          %2070 = dma.done %s2065, 128
        $region64: #{tpu_custom_call.1} parent=59 // pred_fallthru
          _
      $region60: #{tpu_custom_call.1} parent=5 // pred_fallthru
        _
    $region6: #{tpu_custom_call.1} parent=1 // loop_footer
      %s22 = sadd.s32 1, %s18
    $region7: #{tpu_custom_call.1} parent=1 // loop_footer_branch
      %17 = sbr.rel target = $region3
    $region8: #{tpu_custom_call.1} parent=1 // loop_exit
      _
    %2071 = vsyncpa [#allocation5], 1
    %s2072 = scalar_lea.sflag [#allocation5], 1
    %2073 = vsyncpa %s2072, 1
    %2074 = vsyncpa [#allocation9], 1
    %2075 = vsyncpa [#allocation6], 1
    %s2076 = scalar_lea.sflag [#allocation6], 1
    %2077 = vsyncpa %s2076, 1
    %2078 = vsyncpa [#allocation7], 1
    %s2079 = scalar_lea.sflag [#allocation7], 1
    %2080 = vsyncpa %s2079, 1

</llo_original>
